<compile_context>
chip_gen: v5e
topology: v5e:2x2
jax: 0.10.0
libtpu: 0.0.40
codegen_flags: <defaults>
</compile_context>

<pallas_src>
import functools

import jax
import jax.numpy as jnp
from jax.experimental import pallas as pl
from jax.experimental.pallas import tpu as pltpu


def _round_up(v, m):
    return (v + m - 1) // m * m


# ---------------------------------------------------------------------------
# Pallas kernel: tiled matmul (+ optional bias / tanh epilogue), bf16 MXU,
# f32 VMEM accumulator over the K reduction grid axis.
# ---------------------------------------------------------------------------
def _matmul_kernel(x_ref, w_ref, *rest, activation, has_bias):
    if has_bias:
        b_ref, o_ref, acc_ref = rest
    else:
        o_ref, acc_ref = rest
        b_ref = None
    k = pl.program_id(2)

    @pl.when(k == 0)
    def _():
        acc_ref[...] = jnp.zeros_like(acc_ref)

    acc_ref[...] += jnp.dot(x_ref[...], w_ref[...],
                            preferred_element_type=jnp.float32)

    @pl.when(k == pl.num_programs(2) - 1)
    def _():
        r = acc_ref[...]
        if has_bias:
            r = r + b_ref[...]
        if activation == "tanh":
            r = jnp.tanh(r)               # f32 EUP tanh (free slot, v5e-safe)
        o_ref[...] = r.astype(o_ref.dtype)


def matmul_fused(x, w, b=None, activation=None, out_dtype=jnp.float32,
                 tile_m=512, tile_n=512, tile_k=1024):
    """(M,K) @ (K,N) [+ b] [tanh], bf16 inputs / f32 accumulation."""
    M, K = x.shape
    Kw, N = w.shape
    assert K == Kw
    tm = min(tile_m, _round_up(M, 8))
    tn = N if N <= tile_n else tile_n          # full-N block or 128-aligned tile
    tk = K if K <= tile_k else tile_k          # full-K block or aligned K tile
    Mp, Np, Kp = _round_up(M, tm), _round_up(N, tn), _round_up(K, tk)

    xb = x.astype(jnp.bfloat16)
    wb = w.astype(jnp.bfloat16)
    if (Mp, Kp) != (M, K):
        xb = jnp.pad(xb, ((0, Mp - M), (0, Kp - K)))
    if (Kp, Np) != (K, N):
        wb = jnp.pad(wb, ((0, Kp - K), (0, Np - N)))

    has_bias = b is not None
    inputs = [xb, wb]
    in_specs = [
        pl.BlockSpec((tm, tk), lambda i, j, k: (i, k)),
        pl.BlockSpec((tk, tn), lambda i, j, k: (k, j)),
    ]
    if has_bias:
        bb = b.reshape(1, N).astype(jnp.float32)
        if Np != N:
            bb = jnp.pad(bb, ((0, 0), (0, Np - N)))
        inputs.append(bb)
        in_specs.append(pl.BlockSpec((1, tn), lambda i, j, k: (0, j)))

    out = pl.pallas_call(
        functools.partial(_matmul_kernel, activation=activation,
                          has_bias=has_bias),
        out_shape=jax.ShapeDtypeStruct((Mp, Np), out_dtype),
        grid=(Mp // tm, Np // tn, Kp // tk),
        in_specs=in_specs,
        out_specs=pl.BlockSpec((tm, tn), lambda i, j, k: (i, j)),
        scratch_shapes=[pltpu.VMEM((tm, tn), jnp.float32)],
        compiler_params=pltpu.CompilerParams(
            dimension_semantics=("parallel", "parallel", "arbitrary")),
    )(*inputs)
    return out[:M, :N]


# ---------------------------------------------------------------------------
# Pallas kernels: train-mode BatchNorm2d + ReLU on an (M, C) slab, tiled in M.
# Pass 1: per-channel sum / sum-of-squares reduction (output-resident accum).
# Pass 2: normalize + affine + ReLU per tile (f32 math, bf16 output).
# ---------------------------------------------------------------------------
def _bn_stats_kernel(x_ref, sum_ref, sq_ref):
    @pl.when(pl.program_id(0) == 0)
    def _():
        sum_ref[...] = jnp.zeros_like(sum_ref)
        sq_ref[...] = jnp.zeros_like(sq_ref)

    x = x_ref[...].astype(jnp.float32)
    sum_ref[...] += jnp.sum(x, axis=0, keepdims=True)
    sq_ref[...] += jnp.sum(x * x, axis=0, keepdims=True)


def _bn_apply_kernel(x_ref, sum_ref, sq_ref, g_ref, b_ref, o_ref, *, inv_m, eps):
    x = x_ref[...].astype(jnp.float32)
    mean = sum_ref[...] * inv_m
    var = jnp.maximum(sq_ref[...] * inv_m - mean * mean, 0.0)  # biased (train mode)
    scale = g_ref[...] * jax.lax.rsqrt(var + eps)
    shift = b_ref[...] - mean * scale
    o_ref[...] = jnp.maximum(x * scale + shift, 0.0).astype(o_ref.dtype)


def batchnorm_relu(x, gamma, beta, eps=1e-5, tile_m=512, out_dtype=jnp.bfloat16):
    """Train-mode BatchNorm2d + ReLU on an (M, C) slab (stats over rows)."""
    M, C = x.shape
    tm = min(tile_m, _round_up(M, 8))
    Mp = _round_up(M, tm)
    xp = jnp.pad(x, ((0, Mp - M), (0, 0))) if Mp != M else x   # zero rows: no-op for sums

    s, sq = pl.pallas_call(
        _bn_stats_kernel,
        out_shape=(jax.ShapeDtypeStruct((1, C), jnp.float32),
                   jax.ShapeDtypeStruct((1, C), jnp.float32)),
        grid=(Mp // tm,),
        in_specs=[pl.BlockSpec((tm, C), lambda i: (i, 0))],
        out_specs=(pl.BlockSpec((1, C), lambda i: (0, 0)),
                   pl.BlockSpec((1, C), lambda i: (0, 0))),
        compiler_params=pltpu.CompilerParams(dimension_semantics=("arbitrary",)),
    )(xp)

    out = pl.pallas_call(
        functools.partial(_bn_apply_kernel, inv_m=1.0 / M, eps=eps),
        out_shape=jax.ShapeDtypeStruct((Mp, C), out_dtype),
        grid=(Mp // tm,),
        in_specs=[
            pl.BlockSpec((tm, C), lambda i: (i, 0)),
            pl.BlockSpec((1, C), lambda i: (0, 0)),
            pl.BlockSpec((1, C), lambda i: (0, 0)),
            pl.BlockSpec((1, C), lambda i: (0, 0)),
            pl.BlockSpec((1, C), lambda i: (0, 0)),
        ],
        out_specs=pl.BlockSpec((tm, C), lambda i: (i, 0)),
        compiler_params=pltpu.CompilerParams(dimension_semantics=("parallel",)),
    )(xp, s, sq, gamma.reshape(1, C).astype(jnp.float32),
      beta.reshape(1, C).astype(jnp.float32))
    return out[:M]


# ---------------------------------------------------------------------------
# ConvTranspose2d(k=4, s=2, p=1): sub-pixel (4-phase) decomposition.
# Each output phase (ph, pw) is a 2x2 conv over the once-padded input with a
# window shift of (ph, pw); all 4 phases are computed in ONE matmul with
# K = 4*Cin and N = 4*Cout (lane-dense), then interleaved back to 2H x 2W.
# ---------------------------------------------------------------------------
def conv_transpose_s2(x_nhwc, w_t, bias=None, activation=None,
                      out_dtype=jnp.float32):
    """x_nhwc: (N,H,W,Cin); w_t: PyTorch ConvTranspose2d weight (Cin,Cout,4,4)."""
    N, H, W, Cin = x_nhwc.shape
    _, Cout, kh, kw = w_t.shape
    assert kh == 4 and kw == 4

    # im2col of 2x2 windows over the once-padded input: K = 4*Cin (not 16*Cin).
    # TODO(synk): the tap stacking still materializes a 4x patch tensor in HBM;
    # it could be folded into the matmul as a tap-reduction grid axis with
    # pl.Element-offset index maps to eliminate the copy entirely.
    x_pad = jnp.pad(x_nhwc, ((0, 0), (1, 1), (1, 1), (0, 0)))
    cols = [x_pad[:, a:a + H + 1, c:c + W + 1, :] for a in (0, 1) for c in (0, 1)]
    patches = jnp.stack(cols, axis=3)                     # (N, H+1, W+1, 4, Cin)
    patches = patches.reshape(N * (H + 1) * (W + 1), 4 * Cin)

    # Phase weights: w_mat[(a,b,ci),(ph,pw,co)] = w_t[ci,co, 3-ph-2a, 3-pw-2b]
    w_sub = w_t[:, :, ::-1, ::-1]                         # [m,n] = w_t[3-m,3-n]
    w6 = w_sub.reshape(Cin, Cout, 2, 2, 2, 2)             # (ci, co, a, ph, b, pw)
    w_mat = w6.transpose(2, 4, 0, 3, 5, 1).reshape(4 * Cin, 4 * Cout)

    b_packed = None if bias is None else jnp.tile(bias, 4)   # per (phase, co)

    out2d = matmul_fused(patches, w_mat, b_packed, activation=activation,
                         out_dtype=out_dtype)
    out6 = out2d.reshape(N, H + 1, W + 1, 2, 2, Cout)

    # Interleave phases: y[n, 2i+ph, 2j+pw, c] = out6[n, i+ph, j+pw, ph, pw, c]
    rows = []
    for ph in (0, 1):
        cols_p = [out6[:, ph:ph + H, pw:pw + W, ph, pw, :] for pw in (0, 1)]
        rows.append(jnp.stack(cols_p, axis=3))            # (N, H, W, 2, Cout)
    z = jnp.stack(rows, axis=2)                           # (N, H, 2, W, 2, Cout)
    y = z.reshape(N * 2 * H * 2 * W, Cout)
    return y, (N, 2 * H, 2 * W, Cout)


# ---------------------------------------------------------------------------
# Generator
# ---------------------------------------------------------------------------
def init_params(key, nz, ngf, nc, init_size):
    ks = jax.random.split(key, 12)

    def rnd(k, shape):
        return 0.02 * jax.random.normal(k, shape, jnp.float32)

    c = [ngf * 8, ngf * 4, ngf * 2, ngf, nc]
    params = {
        # layer 1: ConvTranspose2d(nz, ngf*8, k=init_size)
        "w1": rnd(ks[0], (nz, c[0], init_size, init_size)),
        "b1": rnd(ks[1], (c[0],)),     # present to mirror PyTorch; no-op before BN
        "g1": jnp.ones((c[0],), jnp.float32),
        "be1": jnp.zeros((c[0],), jnp.float32),
    }
    for li, (cin, cout) in enumerate(zip(c[:-1], c[1:]), start=2):
        params[f"w{li}"] = rnd(ks[2 * li - 2], (cin, cout, 4, 4))
        params[f"b{li}"] = rnd(ks[2 * li - 1], (cout,))
        if li < 5:
            params[f"g{li}"] = jnp.ones((cout,), jnp.float32)
            params[f"be{li}"] = jnp.zeros((cout,), jnp.float32)
    return params


def generator_forward(x_nchw, params, *, nz, ngf, nc, init_size):
    N = x_nchw.shape[0]
    x = x_nchw.reshape(N, nz).astype(jnp.float32)     # latent is (N, nz, 1, 1)
    c1 = ngf * 8

    # Layer 1: ConvTranspose2d(nz, ngf*8, k=init_size) on a 1x1 input == matmul.
    # Weight is pre-permuted so the output is directly the channel-last slab
    # (no NCHW<->NHWC transpose between layers).  Bias b1 is dropped: a
    # per-channel constant before train-mode BN is exactly cancelled by the
    # mean subtraction (same for b2..b4 below).
    w1 = params["w1"].transpose(0, 2, 3, 1).reshape(nz, init_size * init_size * c1)
    h = matmul_fused(x, w1, out_dtype=jnp.bfloat16)       # (N, init*init*c1)
    h = h.reshape(N * init_size * init_size, c1)
    h = batchnorm_relu(h, params["g1"], params["be1"])
    shape = (N, init_size, init_size, c1)

    # Layers 2..5: ConvTranspose2d(k=4, s=2, p=1) [+ BN + ReLU | + bias + Tanh]
    for li in range(2, 6):
        last = li == 5
        h, shape = conv_transpose_s2(
            h.reshape(shape), params[f"w{li}"],
            bias=params[f"b{li}"] if last else None,
            activation="tanh" if last else None,
            out_dtype=jnp.float32 if last else jnp.bfloat16)
        if not last:
            h = batchnorm_relu(h, params[f"g{li}"], params[f"be{li}"])

    Nb, Ho, Wo, Co = shape
    return h.reshape(Nb, Ho, Wo, Co).transpose(0, 3, 1, 2)    # back to NCHW
    # TODO(synk): BatchNorm running-stat tracking (momentum updates) is stateful
    # and not modeled; forward uses training-mode batch statistics like PyTorch.


if __name__ == "__main__":
    # Small-shape configuration consistent with the module's structure.
    nz, ngf, nc, img_size = 16, 8, 3, 32
    init_size = img_size // 2 ** 4          # = 2
    batch = 2

    key = jax.random.PRNGKey(0)
    kp, kx = jax.random.split(key)
    params = init_params(kp, nz, ngf, nc, init_size)
    x = jax.random.normal(kx, (batch, nz, 1, 1), jnp.float32)

    fwd = jax.jit(functools.partial(generator_forward, nz=nz, ngf=ngf,
                                    nc=nc, init_size=init_size))
    y = jax.block_until_ready(fwd(x, params))

    assert y.shape == (batch, nc, img_size, img_size), y.shape
    assert bool(jnp.all(jnp.isfinite(y)))
    assert bool(jnp.max(jnp.abs(y)) <= 1.0 + 1e-6)   # tanh output range
    print("KERNEL_OK")
</pallas_src>

<mosaic_0001>
module attributes {stable_mosaic.version = 11 : i64} {
  func.func @_matmul_kernel(%arg0: i32, %arg1: i32, %arg2: i32, %arg3: memref<8x16xbf16, #tpu.memory_space<vmem>>, %arg4: memref<16x256xbf16, #tpu.memory_space<vmem>>, %arg5: memref<8x256xbf16, #tpu.memory_space<vmem>>, %arg6: memref<8x256xf32, #tpu.memory_space<vmem>>) attributes {dimension_semantics = [#tpu.dimension_semantics<parallel>, #tpu.dimension_semantics<parallel>, #tpu.dimension_semantics<arbitrary>], iteration_bounds = array<i64: 1, 1, 1>, scalar_prefetch = 0 : i64, scratch_operands = 1 : i64, tpu.core_type = #tpu.core_type<tc>, window_params = [{transform_indices = @transform_0, window_bounds = array<i64: 8, 16>}, {transform_indices = @transform_1, window_bounds = array<i64: 16, 256>}, {transform_indices = @transform_2, window_bounds = array<i64: 8, 256>}]} {
    %c0_i32 = arith.constant 0 : i32
    %0 = arith.cmpi eq, %arg2, %c0_i32 : i32
    %1 = arith.extui %0 : i1 to i32
    %c0_i32_0 = arith.constant 0 : i32
    %2 = arith.cmpi ne, %1, %c0_i32_0 : i32
    scf.if %2 {
      %cst_10 = arith.constant 0.000000e+00 : f32
      %12 = vector.broadcast %cst_10 : f32 to vector<8x256xf32>
      %c0_11 = arith.constant 0 : index
      %c0_12 = arith.constant 0 : index
      %13 = vector.load %arg6[%c0_11, %c0_12] : memref<8x256xf32, #tpu.memory_space<vmem>>, vector<8x256xf32>
      tpu.vector_store %arg6[%c0_11, %c0_12], %12 {strides = array<i32>} : memref<8x256xf32, #tpu.memory_space<vmem>>, vector<8x256xf32>,
    } else {
    }
    %c0 = arith.constant 0 : index
    %c0_1 = arith.constant 0 : index
    %3 = vector.load %arg6[%c0, %c0_1] : memref<8x256xf32, #tpu.memory_space<vmem>>, vector<8x256xf32>
    %c0_2 = arith.constant 0 : index
    %c0_3 = arith.constant 0 : index
    %4 = vector.load %arg3[%c0_2, %c0_3] : memref<8x16xbf16, #tpu.memory_space<vmem>>, vector<8x16xbf16>
    %c0_4 = arith.constant 0 : index
    %c0_5 = arith.constant 0 : index
    %5 = vector.load %arg4[%c0_4, %c0_5] : memref<16x256xbf16, #tpu.memory_space<vmem>>, vector<16x256xbf16>
    %cst = arith.constant dense<0.000000e+00> : vector<8x256xf32>
    %6 = tpu.matmul %4, %5, %cst {dimension_numbers = #tpu.dot_dimension_numbers<[1], [0], [0], [1], [0, 0, 1, 1], [], []>} : vector<8x16xbf16>, vector<16x256xbf16>, vector<8x256xf32> -> vector<8x256xf32>
    %7 = arith.addf %3, %6 : vector<8x256xf32>
    %c0_6 = arith.constant 0 : index
    %c0_7 = arith.constant 0 : index
    %8 = vector.load %arg6[%c0_6, %c0_7] : memref<8x256xf32, #tpu.memory_space<vmem>>, vector<8x256xf32>
    tpu.vector_store %arg6[%c0_6, %c0_7], %7 {strides = array<i32>} : memref<8x256xf32, #tpu.memory_space<vmem>>, vector<8x256xf32>,
    %c0_i32_8 = arith.constant 0 : i32
    %9 = arith.cmpi eq, %arg2, %c0_i32_8 : i32
    %10 = arith.extui %9 : i1 to i32
    %c0_i32_9 = arith.constant 0 : i32
    %11 = arith.cmpi ne, %10, %c0_i32_9 : i32
    scf.if %11 {
      %c0_10 = arith.constant 0 : index
      %c0_11 = arith.constant 0 : index
      %12 = vector.load %arg6[%c0_10, %c0_11] : memref<8x256xf32, #tpu.memory_space<vmem>>, vector<8x256xf32>
      %13 = arith.truncf %12 : vector<8x256xf32> to vector<8x256xbf16>
      %c0_12 = arith.constant 0 : index
      %c0_13 = arith.constant 0 : index
      %14 = vector.load %arg5[%c0_12, %c0_13] : memref<8x256xbf16, #tpu.memory_space<vmem>>, vector<8x256xbf16>
      tpu.vector_store %arg5[%c0_12, %c0_13], %13 {strides = array<i32>} : memref<8x256xbf16, #tpu.memory_space<vmem>>, vector<8x256xbf16>,
    } else {
    }
    return
  }
  func.func @transform_0(%arg0: i32, %arg1: i32, %arg2: i32) -> (i32, i32) {
    %c0_i32 = arith.constant 0 : i32
    return %arg0, %arg2 : i32, i32
  }
  func.func @transform_1(%arg0: i32, %arg1: i32, %arg2: i32) -> (i32, i32) {
    %c0_i32 = arith.constant 0 : i32
    return %arg2, %arg1 : i32, i32
  }
  func.func @transform_2(%arg0: i32, %arg1: i32, %arg2: i32) -> (i32, i32) {
    %c0_i32 = arith.constant 0 : i32
    return %arg0, %arg1 : i32, i32
  }
}

module attributes {stable_mosaic.version = 11 : i64} {
  func.func @_bn_apply_kernel(%arg0: i32, %arg1: memref<8x64xbf16, #tpu.memory_space<vmem>>, %arg2: memref<1x64xf32, #tpu.memory_space<vmem>>, %arg3: memref<1x64xf32, #tpu.memory_space<vmem>>, %arg4: memref<1x64xf32, #tpu.memory_space<vmem>>, %arg5: memref<1x64xf32, #tpu.memory_space<vmem>>, %arg6: memref<8x64xbf16, #tpu.memory_space<vmem>>) attributes {dimension_semantics = [#tpu.dimension_semantics<parallel>], iteration_bounds = array<i64: 1>, scalar_prefetch = 0 : i64, scratch_operands = 0 : i64, tpu.core_type = #tpu.core_type<tc>, window_params = [{transform_indices = @transform_0, window_bounds = array<i64: 8, 64>}, {pipeline_mode = #tpu.pipeline_mode<synchronous>, transform_indices = @transform_1, window_bounds = array<i64: 1, 64>}, {pipeline_mode = #tpu.pipeline_mode<synchronous>, transform_indices = @transform_2, window_bounds = array<i64: 1, 64>}, {pipeline_mode = #tpu.pipeline_mode<synchronous>, transform_indices = @transform_3, window_bounds = array<i64: 1, 64>}, {pipeline_mode = #tpu.pipeline_mode<synchronous>, transform_indices = @transform_4, window_bounds = array<i64: 1, 64>}, {transform_indices = @transform_5, window_bounds = array<i64: 8, 64>}]} {
    %c0 = arith.constant 0 : index
    %c0_0 = arith.constant 0 : index
    %0 = vector.load %arg1[%c0, %c0_0] : memref<8x64xbf16, #tpu.memory_space<vmem>>, vector<8x64xbf16>
    %1 = arith.extf %0 : vector<8x64xbf16> to vector<8x64xf32>
    %c0_1 = arith.constant 0 : index
    %c0_2 = arith.constant 0 : index
    %2 = vector.load %arg2[%c0_1, %c0_2] : memref<1x64xf32, #tpu.memory_space<vmem>>, vector<1x64xf32>
    %cst = arith.constant 1.250000e-01 : f32
    %3 = vector.broadcast %cst : f32 to vector<1x64xf32>
    %4 = arith.mulf %2, %3 : vector<1x64xf32>
    %c0_3 = arith.constant 0 : index
    %c0_4 = arith.constant 0 : index
    %5 = vector.load %arg3[%c0_3, %c0_4] : memref<1x64xf32, #tpu.memory_space<vmem>>, vector<1x64xf32>
    %cst_5 = arith.constant 1.250000e-01 : f32
    %6 = vector.broadcast %cst_5 : f32 to vector<1x64xf32>
    %7 = arith.mulf %5, %6 : vector<1x64xf32>
    %8 = arith.mulf %4, %4 : vector<1x64xf32>
    %9 = arith.subf %7, %8 : vector<1x64xf32>
    %cst_6 = arith.constant 0.000000e+00 : f32
    %10 = vector.broadcast %cst_6 : f32 to vector<1x64xf32>
    %11 = arith.maximumf %9, %10 : vector<1x64xf32>
    %c0_7 = arith.constant 0 : index
    %c0_8 = arith.constant 0 : index
    %12 = vector.load %arg4[%c0_7, %c0_8] : memref<1x64xf32, #tpu.memory_space<vmem>>, vector<1x64xf32>
    %cst_9 = arith.constant 9.99999974E-6 : f32
    %13 = vector.broadcast %cst_9 : f32 to vector<1x64xf32>
    %14 = arith.addf %11, %13 : vector<1x64xf32>
    %15 = math.rsqrt %14 : vector<1x64xf32>
    %16 = arith.mulf %12, %15 : vector<1x64xf32>
    %c0_10 = arith.constant 0 : index
    %c0_11 = arith.constant 0 : index
    %17 = vector.load %arg5[%c0_10, %c0_11] : memref<1x64xf32, #tpu.memory_space<vmem>>, vector<1x64xf32>
    %18 = arith.mulf %4, %16 : vector<1x64xf32>
    %19 = arith.subf %17, %18 : vector<1x64xf32>
    %20 = vector.broadcast %16 : vector<1x64xf32> to vector<8x64xf32>
    %21 = arith.mulf %1, %20 : vector<8x64xf32>
    %22 = vector.broadcast %19 : vector<1x64xf32> to vector<8x64xf32>
    %23 = arith.addf %21, %22 : vector<8x64xf32>
    %cst_12 = arith.constant 0.000000e+00 : f32
    %24 = vector.broadcast %cst_12 : f32 to vector<8x64xf32>
    %25 = arith.maximumf %23, %24 : vector<8x64xf32>
    %26 = arith.truncf %25 : vector<8x64xf32> to vector<8x64xbf16>
    %c0_13 = arith.constant 0 : index
    %c0_14 = arith.constant 0 : index
    %27 = vector.load %arg6[%c0_13, %c0_14] : memref<8x64xbf16, #tpu.memory_space<vmem>>, vector<8x64xbf16>
    tpu.vector_store %arg6[%c0_13, %c0_14], %26 {strides = array<i32>} : memref<8x64xbf16, #tpu.memory_space<vmem>>, vector<8x64xbf16>,
    return
  }
  func.func @transform_0(%arg0: i32) -> (i32, i32) {
    %c0_i32 = arith.constant 0 : i32
    %c0_i32_0 = arith.constant 0 : i32
    return %arg0, %c0_i32 : i32, i32
  }
  func.func @transform_1(%arg0: i32) -> (i32, i32) {
    %c0_i32 = arith.constant 0 : i32
    %c0_i32_0 = arith.constant 0 : i32
    %c0_i32_1 = arith.constant 0 : i32
    return %c0_i32, %c0_i32_0 : i32, i32
  }
  func.func @transform_2(%arg0: i32) -> (i32, i32) {
    %c0_i32 = arith.constant 0 : i32
    %c0_i32_0 = arith.constant 0 : i32
    %c0_i32_1 = arith.constant 0 : i32
    return %c0_i32, %c0_i32_0 : i32, i32
  }
  func.func @transform_3(%arg0: i32) -> (i32, i32) {
    %c0_i32 = arith.constant 0 : i32
    %c0_i32_0 = arith.constant 0 : i32
    %c0_i32_1 = arith.constant 0 : i32
    return %c0_i32, %c0_i32_0 : i32, i32
  }
  func.func @transform_4(%arg0: i32) -> (i32, i32) {
    %c0_i32 = arith.constant 0 : i32
    %c0_i32_0 = arith.constant 0 : i32
    %c0_i32_1 = arith.constant 0 : i32
    return %c0_i32, %c0_i32_0 : i32, i32
  }
  func.func @transform_5(%arg0: i32) -> (i32, i32) {
    %c0_i32 = arith.constant 0 : i32
    %c0_i32_0 = arith.constant 0 : i32
    return %arg0, %c0_i32 : i32, i32
  }
}

module attributes {stable_mosaic.version = 11 : i64} {
  func.func @_bn_stats_kernel(%arg0: i32, %arg1: memref<8x64xbf16, #tpu.memory_space<vmem>>, %arg2: memref<1x64xf32, #tpu.memory_space<vmem>>, %arg3: memref<1x64xf32, #tpu.memory_space<vmem>>) attributes {dimension_semantics = [#tpu.dimension_semantics<arbitrary>], iteration_bounds = array<i64: 1>, scalar_prefetch = 0 : i64, scratch_operands = 0 : i64, tpu.core_type = #tpu.core_type<tc>, window_params = [{transform_indices = @transform_0, window_bounds = array<i64: 8, 64>}, {pipeline_mode = #tpu.pipeline_mode<synchronous>, transform_indices = @transform_1, window_bounds = array<i64: 1, 64>}, {pipeline_mode = #tpu.pipeline_mode<synchronous>, transform_indices = @transform_2, window_bounds = array<i64: 1, 64>}]} {
    %c0_i32 = arith.constant 0 : i32
    %0 = arith.cmpi eq, %arg0, %c0_i32 : i32
    %1 = arith.extui %0 : i1 to i32
    %c0_i32_0 = arith.constant 0 : i32
    %2 = arith.cmpi ne, %1, %c0_i32_0 : i32
    scf.if %2 {
      %cst_11 = arith.constant 0.000000e+00 : f32
      %16 = vector.broadcast %cst_11 : f32 to vector<1x64xf32>
      %c0_12 = arith.constant 0 : index
      %c0_13 = arith.constant 0 : index
      %17 = vector.load %arg2[%c0_12, %c0_13] : memref<1x64xf32, #tpu.memory_space<vmem>>, vector<1x64xf32>
      tpu.vector_store %arg2[%c0_12, %c0_13], %16 {strides = array<i32>} : memref<1x64xf32, #tpu.memory_space<vmem>>, vector<1x64xf32>,
      %cst_14 = arith.constant 0.000000e+00 : f32
      %18 = vector.broadcast %cst_14 : f32 to vector<1x64xf32>
      %c0_15 = arith.constant 0 : index
      %c0_16 = arith.constant 0 : index
      %19 = vector.load %arg3[%c0_15, %c0_16] : memref<1x64xf32, #tpu.memory_space<vmem>>, vector<1x64xf32>
      tpu.vector_store %arg3[%c0_15, %c0_16], %18 {strides = array<i32>} : memref<1x64xf32, #tpu.memory_space<vmem>>, vector<1x64xf32>,
    } else {
    }
    %c0 = arith.constant 0 : index
    %c0_1 = arith.constant 0 : index
    %3 = vector.load %arg1[%c0, %c0_1] : memref<8x64xbf16, #tpu.memory_space<vmem>>, vector<8x64xbf16>
    %4 = arith.extf %3 : vector<8x64xbf16> to vector<8x64xf32>
    %c0_2 = arith.constant 0 : index
    %c0_3 = arith.constant 0 : index
    %5 = vector.load %arg2[%c0_2, %c0_3] : memref<1x64xf32, #tpu.memory_space<vmem>>, vector<1x64xf32>
    %cst = arith.constant dense<0.000000e+00> : vector<64xf32>
    %6 = vector.multi_reduction <add>, %4, %cst [0] : vector<8x64xf32> to vector<64xf32>
    %7 = vector.shape_cast %6 : vector<64xf32> to vector<1x64xf32>
    %8 = arith.addf %5, %7 : vector<1x64xf32>
    %c0_4 = arith.constant 0 : index
    %c0_5 = arith.constant 0 : index
    %9 = vector.load %arg2[%c0_4, %c0_5] : memref<1x64xf32, #tpu.memory_space<vmem>>, vector<1x64xf32>
    tpu.vector_store %arg2[%c0_4, %c0_5], %8 {strides = array<i32>} : memref<1x64xf32, #tpu.memory_space<vmem>>, vector<1x64xf32>,
    %c0_6 = arith.constant 0 : index
    %c0_7 = arith.constant 0 : index
    %10 = vector.load %arg3[%c0_6, %c0_7] : memref<1x64xf32, #tpu.memory_space<vmem>>, vector<1x64xf32>
    %11 = arith.mulf %4, %4 : vector<8x64xf32>
    %cst_8 = arith.constant dense<0.000000e+00> : vector<64xf32>
    %12 = vector.multi_reduction <add>, %11, %cst_8 [0] : vector<8x64xf32> to vector<64xf32>
    %13 = vector.shape_cast %12 : vector<64xf32> to vector<1x64xf32>
    %14 = arith.addf %10, %13 : vector<1x64xf32>
    %c0_9 = arith.constant 0 : index
    %c0_10 = arith.constant 0 : index
    %15 = vector.load %arg3[%c0_9, %c0_10] : memref<1x64xf32, #tpu.memory_space<vmem>>, vector<1x64xf32>
    tpu.vector_store %arg3[%c0_9, %c0_10], %14 {strides = array<i32>} : memref<1x64xf32, #tpu.memory_space<vmem>>, vector<1x64xf32>,
    return
  }
  func.func @transform_0(%arg0: i32) -> (i32, i32) {
    %c0_i32 = arith.constant 0 : i32
    %c0_i32_0 = arith.constant 0 : i32
    return %arg0, %c0_i32 : i32, i32
  }
  func.func @transform_1(%arg0: i32) -> (i32, i32) {
    %c0_i32 = arith.constant 0 : i32
    %c0_i32_0 = arith.constant 0 : i32
    %c0_i32_1 = arith.constant 0 : i32
    return %c0_i32, %c0_i32_0 : i32, i32
  }
  func.func @transform_2(%arg0: i32) -> (i32, i32) {
    %c0_i32 = arith.constant 0 : i32
    %c0_i32_0 = arith.constant 0 : i32
    %c0_i32_1 = arith.constant 0 : i32
    return %c0_i32, %c0_i32_0 : i32, i32
  }
}

module attributes {stable_mosaic.version = 11 : i64} {
  func.func @_matmul_kernel(%arg0: i32, %arg1: i32, %arg2: i32, %arg3: memref<24x256xbf16, #tpu.memory_space<vmem>>, %arg4: memref<256x128xbf16, #tpu.memory_space<vmem>>, %arg5: memref<24x128xbf16, #tpu.memory_space<vmem>>, %arg6: memref<24x128xf32, #tpu.memory_space<vmem>>) attributes {dimension_semantics = [#tpu.dimension_semantics<parallel>, #tpu.dimension_semantics<parallel>, #tpu.dimension_semantics<arbitrary>], iteration_bounds = array<i64: 1, 1, 1>, scalar_prefetch = 0 : i64, scratch_operands = 1 : i64, tpu.core_type = #tpu.core_type<tc>, window_params = [{transform_indices = @transform_0, window_bounds = array<i64: 24, 256>}, {transform_indices = @transform_1, window_bounds = array<i64: 256, 128>}, {transform_indices = @transform_2, window_bounds = array<i64: 24, 128>}]} {
    %c0_i32 = arith.constant 0 : i32
    %0 = arith.cmpi eq, %arg2, %c0_i32 : i32
    %1 = arith.extui %0 : i1 to i32
    %c0_i32_0 = arith.constant 0 : i32
    %2 = arith.cmpi ne, %1, %c0_i32_0 : i32
    scf.if %2 {
      %cst_10 = arith.constant 0.000000e+00 : f32
      %12 = vector.broadcast %cst_10 : f32 to vector<24x128xf32>
      %c0_11 = arith.constant 0 : index
      %c0_12 = arith.constant 0 : index
      %13 = vector.load %arg6[%c0_11, %c0_12] : memref<24x128xf32, #tpu.memory_space<vmem>>, vector<24x128xf32>
      tpu.vector_store %arg6[%c0_11, %c0_12], %12 {strides = array<i32>} : memref<24x128xf32, #tpu.memory_space<vmem>>, vector<24x128xf32>,
    } else {
    }
    %c0 = arith.constant 0 : index
    %c0_1 = arith.constant 0 : index
    %3 = vector.load %arg6[%c0, %c0_1] : memref<24x128xf32, #tpu.memory_space<vmem>>, vector<24x128xf32>
    %c0_2 = arith.constant 0 : index
    %c0_3 = arith.constant 0 : index
    %4 = vector.load %arg3[%c0_2, %c0_3] : memref<24x256xbf16, #tpu.memory_space<vmem>>, vector<24x256xbf16>
    %c0_4 = arith.constant 0 : index
    %c0_5 = arith.constant 0 : index
    %5 = vector.load %arg4[%c0_4, %c0_5] : memref<256x128xbf16, #tpu.memory_space<vmem>>, vector<256x128xbf16>
    %cst = arith.constant dense<0.000000e+00> : vector<24x128xf32>
    %6 = tpu.matmul %4, %5, %cst {dimension_numbers = #tpu.dot_dimension_numbers<[1], [0], [0], [1], [0, 0, 1, 1], [], []>} : vector<24x256xbf16>, vector<256x128xbf16>, vector<24x128xf32> -> vector<24x128xf32>
    %7 = arith.addf %3, %6 : vector<24x128xf32>
    %c0_6 = arith.constant 0 : index
    %c0_7 = arith.constant 0 : index
    %8 = vector.load %arg6[%c0_6, %c0_7] : memref<24x128xf32, #tpu.memory_space<vmem>>, vector<24x128xf32>
    tpu.vector_store %arg6[%c0_6, %c0_7], %7 {strides = array<i32>} : memref<24x128xf32, #tpu.memory_space<vmem>>, vector<24x128xf32>,
    %c0_i32_8 = arith.constant 0 : i32
    %9 = arith.cmpi eq, %arg2, %c0_i32_8 : i32
    %10 = arith.extui %9 : i1 to i32
    %c0_i32_9 = arith.constant 0 : i32
    %11 = arith.cmpi ne, %10, %c0_i32_9 : i32
    scf.if %11 {
      %c0_10 = arith.constant 0 : index
      %c0_11 = arith.constant 0 : index
      %12 = vector.load %arg6[%c0_10, %c0_11] : memref<24x128xf32, #tpu.memory_space<vmem>>, vector<24x128xf32>
      %13 = arith.truncf %12 : vector<24x128xf32> to vector<24x128xbf16>
      %c0_12 = arith.constant 0 : index
      %c0_13 = arith.constant 0 : index
      %14 = vector.load %arg5[%c0_12, %c0_13] : memref<24x128xbf16, #tpu.memory_space<vmem>>, vector<24x128xbf16>
      tpu.vector_store %arg5[%c0_12, %c0_13], %13 {strides = array<i32>} : memref<24x128xbf16, #tpu.memory_space<vmem>>, vector<24x128xbf16>,
    } else {
    }
    return
  }
  func.func @transform_0(%arg0: i32, %arg1: i32, %arg2: i32) -> (i32, i32) {
    %c0_i32 = arith.constant 0 : i32
    return %arg0, %arg2 : i32, i32
  }
  func.func @transform_1(%arg0: i32, %arg1: i32, %arg2: i32) -> (i32, i32) {
    %c0_i32 = arith.constant 0 : i32
    return %arg2, %arg1 : i32, i32
  }
  func.func @transform_2(%arg0: i32, %arg1: i32, %arg2: i32) -> (i32, i32) {
    %c0_i32 = arith.constant 0 : i32
    return %arg0, %arg1 : i32, i32
  }
}

module attributes {stable_mosaic.version = 11 : i64} {
  func.func @_bn_apply_kernel(%arg0: i32, %arg1: memref<32x32xbf16, #tpu.memory_space<vmem>>, %arg2: memref<1x32xf32, #tpu.memory_space<vmem>>, %arg3: memref<1x32xf32, #tpu.memory_space<vmem>>, %arg4: memref<1x32xf32, #tpu.memory_space<vmem>>, %arg5: memref<1x32xf32, #tpu.memory_space<vmem>>, %arg6: memref<32x32xbf16, #tpu.memory_space<vmem>>) attributes {dimension_semantics = [#tpu.dimension_semantics<parallel>], iteration_bounds = array<i64: 1>, scalar_prefetch = 0 : i64, scratch_operands = 0 : i64, tpu.core_type = #tpu.core_type<tc>, window_params = [{transform_indices = @transform_0, window_bounds = array<i64: 32, 32>}, {pipeline_mode = #tpu.pipeline_mode<synchronous>, transform_indices = @transform_1, window_bounds = array<i64: 1, 32>}, {pipeline_mode = #tpu.pipeline_mode<synchronous>, transform_indices = @transform_2, window_bounds = array<i64: 1, 32>}, {pipeline_mode = #tpu.pipeline_mode<synchronous>, transform_indices = @transform_3, window_bounds = array<i64: 1, 32>}, {pipeline_mode = #tpu.pipeline_mode<synchronous>, transform_indices = @transform_4, window_bounds = array<i64: 1, 32>}, {transform_indices = @transform_5, window_bounds = array<i64: 32, 32>}]} {
    %c0 = arith.constant 0 : index
    %c0_0 = arith.constant 0 : index
    %0 = vector.load %arg1[%c0, %c0_0] : memref<32x32xbf16, #tpu.memory_space<vmem>>, vector<32x32xbf16>
    %1 = arith.extf %0 : vector<32x32xbf16> to vector<32x32xf32>
    %c0_1 = arith.constant 0 : index
    %c0_2 = arith.constant 0 : index
    %2 = vector.load %arg2[%c0_1, %c0_2] : memref<1x32xf32, #tpu.memory_space<vmem>>, vector<1x32xf32>
    %cst = arith.constant 3.125000e-02 : f32
    %3 = vector.broadcast %cst : f32 to vector<1x32xf32>
    %4 = arith.mulf %2, %3 : vector<1x32xf32>
    %c0_3 = arith.constant 0 : index
    %c0_4 = arith.constant 0 : index
    %5 = vector.load %arg3[%c0_3, %c0_4] : memref<1x32xf32, #tpu.memory_space<vmem>>, vector<1x32xf32>
    %cst_5 = arith.constant 3.125000e-02 : f32
    %6 = vector.broadcast %cst_5 : f32 to vector<1x32xf32>
    %7 = arith.mulf %5, %6 : vector<1x32xf32>
    %8 = arith.mulf %4, %4 : vector<1x32xf32>
    %9 = arith.subf %7, %8 : vector<1x32xf32>
    %cst_6 = arith.constant 0.000000e+00 : f32
    %10 = vector.broadcast %cst_6 : f32 to vector<1x32xf32>
    %11 = arith.maximumf %9, %10 : vector<1x32xf32>
    %c0_7 = arith.constant 0 : index
    %c0_8 = arith.constant 0 : index
    %12 = vector.load %arg4[%c0_7, %c0_8] : memref<1x32xf32, #tpu.memory_space<vmem>>, vector<1x32xf32>
    %cst_9 = arith.constant 9.99999974E-6 : f32
    %13 = vector.broadcast %cst_9 : f32 to vector<1x32xf32>
    %14 = arith.addf %11, %13 : vector<1x32xf32>
    %15 = math.rsqrt %14 : vector<1x32xf32>
    %16 = arith.mulf %12, %15 : vector<1x32xf32>
    %c0_10 = arith.constant 0 : index
    %c0_11 = arith.constant 0 : index
    %17 = vector.load %arg5[%c0_10, %c0_11] : memref<1x32xf32, #tpu.memory_space<vmem>>, vector<1x32xf32>
    %18 = arith.mulf %4, %16 : vector<1x32xf32>
    %19 = arith.subf %17, %18 : vector<1x32xf32>
    %20 = vector.broadcast %16 : vector<1x32xf32> to vector<32x32xf32>
    %21 = arith.mulf %1, %20 : vector<32x32xf32>
    %22 = vector.broadcast %19 : vector<1x32xf32> to vector<32x32xf32>
    %23 = arith.addf %21, %22 : vector<32x32xf32>
    %cst_12 = arith.constant 0.000000e+00 : f32
    %24 = vector.broadcast %cst_12 : f32 to vector<32x32xf32>
    %25 = arith.maximumf %23, %24 : vector<32x32xf32>
    %26 = arith.truncf %25 : vector<32x32xf32> to vector<32x32xbf16>
    %c0_13 = arith.constant 0 : index
    %c0_14 = arith.constant 0 : index
    %27 = vector.load %arg6[%c0_13, %c0_14] : memref<32x32xbf16, #tpu.memory_space<vmem>>, vector<32x32xbf16>
    tpu.vector_store %arg6[%c0_13, %c0_14], %26 {strides = array<i32>} : memref<32x32xbf16, #tpu.memory_space<vmem>>, vector<32x32xbf16>,
    return
  }
  func.func @transform_0(%arg0: i32) -> (i32, i32) {
    %c0_i32 = arith.constant 0 : i32
    %c0_i32_0 = arith.constant 0 : i32
    return %arg0, %c0_i32 : i32, i32
  }
  func.func @transform_1(%arg0: i32) -> (i32, i32) {
    %c0_i32 = arith.constant 0 : i32
    %c0_i32_0 = arith.constant 0 : i32
    %c0_i32_1 = arith.constant 0 : i32
    return %c0_i32, %c0_i32_0 : i32, i32
  }
  func.func @transform_2(%arg0: i32) -> (i32, i32) {
    %c0_i32 = arith.constant 0 : i32
    %c0_i32_0 = arith.constant 0 : i32
    %c0_i32_1 = arith.constant 0 : i32
    return %c0_i32, %c0_i32_0 : i32, i32
  }
  func.func @transform_3(%arg0: i32) -> (i32, i32) {
    %c0_i32 = arith.constant 0 : i32
    %c0_i32_0 = arith.constant 0 : i32
    %c0_i32_1 = arith.constant 0 : i32
    return %c0_i32, %c0_i32_0 : i32, i32
  }
  func.func @transform_4(%arg0: i32) -> (i32, i32) {
    %c0_i32 = arith.constant 0 : i32
    %c0_i32_0 = arith.constant 0 : i32
    %c0_i32_1 = arith.constant 0 : i32
    return %c0_i32, %c0_i32_0 : i32, i32
  }
  func.func @transform_5(%arg0: i32) -> (i32, i32) {
    %c0_i32 = arith.constant 0 : i32
    %c0_i32_0 = arith.constant 0 : i32
    return %arg0, %c0_i32 : i32, i32
  }
}

module attributes {stable_mosaic.version = 11 : i64} {
  func.func @_bn_stats_kernel(%arg0: i32, %arg1: memref<32x32xbf16, #tpu.memory_space<vmem>>, %arg2: memref<1x32xf32, #tpu.memory_space<vmem>>, %arg3: memref<1x32xf32, #tpu.memory_space<vmem>>) attributes {dimension_semantics = [#tpu.dimension_semantics<arbitrary>], iteration_bounds = array<i64: 1>, scalar_prefetch = 0 : i64, scratch_operands = 0 : i64, tpu.core_type = #tpu.core_type<tc>, window_params = [{transform_indices = @transform_0, window_bounds = array<i64: 32, 32>}, {pipeline_mode = #tpu.pipeline_mode<synchronous>, transform_indices = @transform_1, window_bounds = array<i64: 1, 32>}, {pipeline_mode = #tpu.pipeline_mode<synchronous>, transform_indices = @transform_2, window_bounds = array<i64: 1, 32>}]} {
    %c0_i32 = arith.constant 0 : i32
    %0 = arith.cmpi eq, %arg0, %c0_i32 : i32
    %1 = arith.extui %0 : i1 to i32
    %c0_i32_0 = arith.constant 0 : i32
    %2 = arith.cmpi ne, %1, %c0_i32_0 : i32
    scf.if %2 {
      %cst_11 = arith.constant 0.000000e+00 : f32
      %16 = vector.broadcast %cst_11 : f32 to vector<1x32xf32>
      %c0_12 = arith.constant 0 : index
      %c0_13 = arith.constant 0 : index
      %17 = vector.load %arg2[%c0_12, %c0_13] : memref<1x32xf32, #tpu.memory_space<vmem>>, vector<1x32xf32>
      tpu.vector_store %arg2[%c0_12, %c0_13], %16 {strides = array<i32>} : memref<1x32xf32, #tpu.memory_space<vmem>>, vector<1x32xf32>,
      %cst_14 = arith.constant 0.000000e+00 : f32
      %18 = vector.broadcast %cst_14 : f32 to vector<1x32xf32>
      %c0_15 = arith.constant 0 : index
      %c0_16 = arith.constant 0 : index
      %19 = vector.load %arg3[%c0_15, %c0_16] : memref<1x32xf32, #tpu.memory_space<vmem>>, vector<1x32xf32>
      tpu.vector_store %arg3[%c0_15, %c0_16], %18 {strides = array<i32>} : memref<1x32xf32, #tpu.memory_space<vmem>>, vector<1x32xf32>,
    } else {
    }
    %c0 = arith.constant 0 : index
    %c0_1 = arith.constant 0 : index
    %3 = vector.load %arg1[%c0, %c0_1] : memref<32x32xbf16, #tpu.memory_space<vmem>>, vector<32x32xbf16>
    %4 = arith.extf %3 : vector<32x32xbf16> to vector<32x32xf32>
    %c0_2 = arith.constant 0 : index
    %c0_3 = arith.constant 0 : index
    %5 = vector.load %arg2[%c0_2, %c0_3] : memref<1x32xf32, #tpu.memory_space<vmem>>, vector<1x32xf32>
    %cst = arith.constant dense<0.000000e+00> : vector<32xf32>
    %6 = vector.multi_reduction <add>, %4, %cst [0] : vector<32x32xf32> to vector<32xf32>
    %7 = vector.shape_cast %6 : vector<32xf32> to vector<1x32xf32>
    %8 = arith.addf %5, %7 : vector<1x32xf32>
    %c0_4 = arith.constant 0 : index
    %c0_5 = arith.constant 0 : index
    %9 = vector.load %arg2[%c0_4, %c0_5] : memref<1x32xf32, #tpu.memory_space<vmem>>, vector<1x32xf32>
    tpu.vector_store %arg2[%c0_4, %c0_5], %8 {strides = array<i32>} : memref<1x32xf32, #tpu.memory_space<vmem>>, vector<1x32xf32>,
    %c0_6 = arith.constant 0 : index
    %c0_7 = arith.constant 0 : index
    %10 = vector.load %arg3[%c0_6, %c0_7] : memref<1x32xf32, #tpu.memory_space<vmem>>, vector<1x32xf32>
    %11 = arith.mulf %4, %4 : vector<32x32xf32>
    %cst_8 = arith.constant dense<0.000000e+00> : vector<32xf32>
    %12 = vector.multi_reduction <add>, %11, %cst_8 [0] : vector<32x32xf32> to vector<32xf32>
    %13 = vector.shape_cast %12 : vector<32xf32> to vector<1x32xf32>
    %14 = arith.addf %10, %13 : vector<1x32xf32>
    %c0_9 = arith.constant 0 : index
    %c0_10 = arith.constant 0 : index
    %15 = vector.load %arg3[%c0_9, %c0_10] : memref<1x32xf32, #tpu.memory_space<vmem>>, vector<1x32xf32>
    tpu.vector_store %arg3[%c0_9, %c0_10], %14 {strides = array<i32>} : memref<1x32xf32, #tpu.memory_space<vmem>>, vector<1x32xf32>,
    return
  }
  func.func @transform_0(%arg0: i32) -> (i32, i32) {
    %c0_i32 = arith.constant 0 : i32
    %c0_i32_0 = arith.constant 0 : i32
    return %arg0, %c0_i32 : i32, i32
  }
  func.func @transform_1(%arg0: i32) -> (i32, i32) {
    %c0_i32 = arith.constant 0 : i32
    %c0_i32_0 = arith.constant 0 : i32
    %c0_i32_1 = arith.constant 0 : i32
    return %c0_i32, %c0_i32_0 : i32, i32
  }
  func.func @transform_2(%arg0: i32) -> (i32, i32) {
    %c0_i32 = arith.constant 0 : i32
    %c0_i32_0 = arith.constant 0 : i32
    %c0_i32_1 = arith.constant 0 : i32
    return %c0_i32, %c0_i32_0 : i32, i32
  }
}

module attributes {stable_mosaic.version = 11 : i64} {
  func.func @_matmul_kernel(%arg0: i32, %arg1: i32, %arg2: i32, %arg3: memref<56x128xbf16, #tpu.memory_space<vmem>>, %arg4: memref<128x64xbf16, #tpu.memory_space<vmem>>, %arg5: memref<56x64xbf16, #tpu.memory_space<vmem>>, %arg6: memref<56x64xf32, #tpu.memory_space<vmem>>) attributes {dimension_semantics = [#tpu.dimension_semantics<parallel>, #tpu.dimension_semantics<parallel>, #tpu.dimension_semantics<arbitrary>], iteration_bounds = array<i64: 1, 1, 1>, scalar_prefetch = 0 : i64, scratch_operands = 1 : i64, tpu.core_type = #tpu.core_type<tc>, window_params = [{transform_indices = @transform_0, window_bounds = array<i64: 56, 128>}, {transform_indices = @transform_1, window_bounds = array<i64: 128, 64>}, {transform_indices = @transform_2, window_bounds = array<i64: 56, 64>}]} {
    %c0_i32 = arith.constant 0 : i32
    %0 = arith.cmpi eq, %arg2, %c0_i32 : i32
    %1 = arith.extui %0 : i1 to i32
    %c0_i32_0 = arith.constant 0 : i32
    %2 = arith.cmpi ne, %1, %c0_i32_0 : i32
    scf.if %2 {
      %cst_10 = arith.constant 0.000000e+00 : f32
      %12 = vector.broadcast %cst_10 : f32 to vector<56x64xf32>
      %c0_11 = arith.constant 0 : index
      %c0_12 = arith.constant 0 : index
      %13 = vector.load %arg6[%c0_11, %c0_12] : memref<56x64xf32, #tpu.memory_space<vmem>>, vector<56x64xf32>
      tpu.vector_store %arg6[%c0_11, %c0_12], %12 {strides = array<i32>} : memref<56x64xf32, #tpu.memory_space<vmem>>, vector<56x64xf32>,
    } else {
    }
    %c0 = arith.constant 0 : index
    %c0_1 = arith.constant 0 : index
    %3 = vector.load %arg6[%c0, %c0_1] : memref<56x64xf32, #tpu.memory_space<vmem>>, vector<56x64xf32>
    %c0_2 = arith.constant 0 : index
    %c0_3 = arith.constant 0 : index
    %4 = vector.load %arg3[%c0_2, %c0_3] : memref<56x128xbf16, #tpu.memory_space<vmem>>, vector<56x128xbf16>
    %c0_4 = arith.constant 0 : index
    %c0_5 = arith.constant 0 : index
    %5 = vector.load %arg4[%c0_4, %c0_5] : memref<128x64xbf16, #tpu.memory_space<vmem>>, vector<128x64xbf16>
    %cst = arith.constant dense<0.000000e+00> : vector<56x64xf32>
    %6 = tpu.matmul %4, %5, %cst {dimension_numbers = #tpu.dot_dimension_numbers<[1], [0], [0], [1], [0, 0, 1, 1], [], []>} : vector<56x128xbf16>, vector<128x64xbf16>, vector<56x64xf32> -> vector<56x64xf32>
    %7 = arith.addf %3, %6 : vector<56x64xf32>
    %c0_6 = arith.constant 0 : index
    %c0_7 = arith.constant 0 : index
    %8 = vector.load %arg6[%c0_6, %c0_7] : memref<56x64xf32, #tpu.memory_space<vmem>>, vector<56x64xf32>
    tpu.vector_store %arg6[%c0_6, %c0_7], %7 {strides = array<i32>} : memref<56x64xf32, #tpu.memory_space<vmem>>, vector<56x64xf32>,
    %c0_i32_8 = arith.constant 0 : i32
    %9 = arith.cmpi eq, %arg2, %c0_i32_8 : i32
    %10 = arith.extui %9 : i1 to i32
    %c0_i32_9 = arith.constant 0 : i32
    %11 = arith.cmpi ne, %10, %c0_i32_9 : i32
    scf.if %11 {
      %c0_10 = arith.constant 0 : index
      %c0_11 = arith.constant 0 : index
      %12 = vector.load %arg6[%c0_10, %c0_11] : memref<56x64xf32, #tpu.memory_space<vmem>>, vector<56x64xf32>
      %13 = arith.truncf %12 : vector<56x64xf32> to vector<56x64xbf16>
      %c0_12 = arith.constant 0 : index
      %c0_13 = arith.constant 0 : index
      %14 = vector.load %arg5[%c0_12, %c0_13] : memref<56x64xbf16, #tpu.memory_space<vmem>>, vector<56x64xbf16>
      tpu.vector_store %arg5[%c0_12, %c0_13], %13 {strides = array<i32>} : memref<56x64xbf16, #tpu.memory_space<vmem>>, vector<56x64xbf16>,
    } else {
    }
    return
  }
  func.func @transform_0(%arg0: i32, %arg1: i32, %arg2: i32) -> (i32, i32) {
    %c0_i32 = arith.constant 0 : i32
    return %arg0, %arg2 : i32, i32
  }
  func.func @transform_1(%arg0: i32, %arg1: i32, %arg2: i32) -> (i32, i32) {
    %c0_i32 = arith.constant 0 : i32
    return %arg2, %arg1 : i32, i32
  }
  func.func @transform_2(%arg0: i32, %arg1: i32, %arg2: i32) -> (i32, i32) {
    %c0_i32 = arith.constant 0 : i32
    return %arg0, %arg1 : i32, i32
  }
}

module attributes {stable_mosaic.version = 11 : i64} {
  func.func @_bn_stats_kernel(%arg0: i32, %arg1: memref<128x16xbf16, #tpu.memory_space<vmem>>, %arg2: memref<1x16xf32, #tpu.memory_space<vmem>>, %arg3: memref<1x16xf32, #tpu.memory_space<vmem>>) attributes {dimension_semantics = [#tpu.dimension_semantics<arbitrary>], iteration_bounds = array<i64: 1>, scalar_prefetch = 0 : i64, scratch_operands = 0 : i64, tpu.core_type = #tpu.core_type<tc>, window_params = [{transform_indices = @transform_0, window_bounds = array<i64: 128, 16>}, {pipeline_mode = #tpu.pipeline_mode<synchronous>, transform_indices = @transform_1, window_bounds = array<i64: 1, 16>}, {pipeline_mode = #tpu.pipeline_mode<synchronous>, transform_indices = @transform_2, window_bounds = array<i64: 1, 16>}]} {
    %c0_i32 = arith.constant 0 : i32
    %0 = arith.cmpi eq, %arg0, %c0_i32 : i32
    %1 = arith.extui %0 : i1 to i32
    %c0_i32_0 = arith.constant 0 : i32
    %2 = arith.cmpi ne, %1, %c0_i32_0 : i32
    scf.if %2 {
      %cst_11 = arith.constant 0.000000e+00 : f32
      %16 = vector.broadcast %cst_11 : f32 to vector<1x16xf32>
      %c0_12 = arith.constant 0 : index
      %c0_13 = arith.constant 0 : index
      %17 = vector.load %arg2[%c0_12, %c0_13] : memref<1x16xf32, #tpu.memory_space<vmem>>, vector<1x16xf32>
      tpu.vector_store %arg2[%c0_12, %c0_13], %16 {strides = array<i32>} : memref<1x16xf32, #tpu.memory_space<vmem>>, vector<1x16xf32>,
      %cst_14 = arith.constant 0.000000e+00 : f32
      %18 = vector.broadcast %cst_14 : f32 to vector<1x16xf32>
      %c0_15 = arith.constant 0 : index
      %c0_16 = arith.constant 0 : index
      %19 = vector.load %arg3[%c0_15, %c0_16] : memref<1x16xf32, #tpu.memory_space<vmem>>, vector<1x16xf32>
      tpu.vector_store %arg3[%c0_15, %c0_16], %18 {strides = array<i32>} : memref<1x16xf32, #tpu.memory_space<vmem>>, vector<1x16xf32>,
    } else {
    }
    %c0 = arith.constant 0 : index
    %c0_1 = arith.constant 0 : index
    %3 = vector.load %arg1[%c0, %c0_1] : memref<128x16xbf16, #tpu.memory_space<vmem>>, vector<128x16xbf16>
    %4 = arith.extf %3 : vector<128x16xbf16> to vector<128x16xf32>
    %c0_2 = arith.constant 0 : index
    %c0_3 = arith.constant 0 : index
    %5 = vector.load %arg2[%c0_2, %c0_3] : memref<1x16xf32, #tpu.memory_space<vmem>>, vector<1x16xf32>
    %cst = arith.constant dense<0.000000e+00> : vector<16xf32>
    %6 = vector.multi_reduction <add>, %4, %cst [0] : vector<128x16xf32> to vector<16xf32>
    %7 = vector.shape_cast %6 : vector<16xf32> to vector<1x16xf32>
    %8 = arith.addf %5, %7 : vector<1x16xf32>
    %c0_4 = arith.constant 0 : index
    %c0_5 = arith.constant 0 : index
    %9 = vector.load %arg2[%c0_4, %c0_5] : memref<1x16xf32, #tpu.memory_space<vmem>>, vector<1x16xf32>
    tpu.vector_store %arg2[%c0_4, %c0_5], %8 {strides = array<i32>} : memref<1x16xf32, #tpu.memory_space<vmem>>, vector<1x16xf32>,
    %c0_6 = arith.constant 0 : index
    %c0_7 = arith.constant 0 : index
    %10 = vector.load %arg3[%c0_6, %c0_7] : memref<1x16xf32, #tpu.memory_space<vmem>>, vector<1x16xf32>
    %11 = arith.mulf %4, %4 : vector<128x16xf32>
    %cst_8 = arith.constant dense<0.000000e+00> : vector<16xf32>
    %12 = vector.multi_reduction <add>, %11, %cst_8 [0] : vector<128x16xf32> to vector<16xf32>
    %13 = vector.shape_cast %12 : vector<16xf32> to vector<1x16xf32>
    %14 = arith.addf %10, %13 : vector<1x16xf32>
    %c0_9 = arith.constant 0 : index
    %c0_10 = arith.constant 0 : index
    %15 = vector.load %arg3[%c0_9, %c0_10] : memref<1x16xf32, #tpu.memory_space<vmem>>, vector<1x16xf32>
    tpu.vector_store %arg3[%c0_9, %c0_10], %14 {strides = array<i32>} : memref<1x16xf32, #tpu.memory_space<vmem>>, vector<1x16xf32>,
    return
  }
  func.func @transform_0(%arg0: i32) -> (i32, i32) {
    %c0_i32 = arith.constant 0 : i32
    %c0_i32_0 = arith.constant 0 : i32
    return %arg0, %c0_i32 : i32, i32
  }
  func.func @transform_1(%arg0: i32) -> (i32, i32) {
    %c0_i32 = arith.constant 0 : i32
    %c0_i32_0 = arith.constant 0 : i32
    %c0_i32_1 = arith.constant 0 : i32
    return %c0_i32, %c0_i32_0 : i32, i32
  }
  func.func @transform_2(%arg0: i32) -> (i32, i32) {
    %c0_i32 = arith.constant 0 : i32
    %c0_i32_0 = arith.constant 0 : i32
    %c0_i32_1 = arith.constant 0 : i32
    return %c0_i32, %c0_i32_0 : i32, i32
  }
}

module attributes {stable_mosaic.version = 11 : i64} {
  func.func @_bn_apply_kernel(%arg0: i32, %arg1: memref<128x16xbf16, #tpu.memory_space<vmem>>, %arg2: memref<1x16xf32, #tpu.memory_space<vmem>>, %arg3: memref<1x16xf32, #tpu.memory_space<vmem>>, %arg4: memref<1x16xf32, #tpu.memory_space<vmem>>, %arg5: memref<1x16xf32, #tpu.memory_space<vmem>>, %arg6: memref<128x16xbf16, #tpu.memory_space<vmem>>) attributes {dimension_semantics = [#tpu.dimension_semantics<parallel>], iteration_bounds = array<i64: 1>, scalar_prefetch = 0 : i64, scratch_operands = 0 : i64, tpu.core_type = #tpu.core_type<tc>, window_params = [{transform_indices = @transform_0, window_bounds = array<i64: 128, 16>}, {pipeline_mode = #tpu.pipeline_mode<synchronous>, transform_indices = @transform_1, window_bounds = array<i64: 1, 16>}, {pipeline_mode = #tpu.pipeline_mode<synchronous>, transform_indices = @transform_2, window_bounds = array<i64: 1, 16>}, {pipeline_mode = #tpu.pipeline_mode<synchronous>, transform_indices = @transform_3, window_bounds = array<i64: 1, 16>}, {pipeline_mode = #tpu.pipeline_mode<synchronous>, transform_indices = @transform_4, window_bounds = array<i64: 1, 16>}, {transform_indices = @transform_5, window_bounds = array<i64: 128, 16>}]} {
    %c0 = arith.constant 0 : index
    %c0_0 = arith.constant 0 : index
    %0 = vector.load %arg1[%c0, %c0_0] : memref<128x16xbf16, #tpu.memory_space<vmem>>, vector<128x16xbf16>
    %1 = arith.extf %0 : vector<128x16xbf16> to vector<128x16xf32>
    %c0_1 = arith.constant 0 : index
    %c0_2 = arith.constant 0 : index
    %2 = vector.load %arg2[%c0_1, %c0_2] : memref<1x16xf32, #tpu.memory_space<vmem>>, vector<1x16xf32>
    %cst = arith.constant 7.812500e-03 : f32
    %3 = vector.broadcast %cst : f32 to vector<1x16xf32>
    %4 = arith.mulf %2, %3 : vector<1x16xf32>
    %c0_3 = arith.constant 0 : index
    %c0_4 = arith.constant 0 : index
    %5 = vector.load %arg3[%c0_3, %c0_4] : memref<1x16xf32, #tpu.memory_space<vmem>>, vector<1x16xf32>
    %cst_5 = arith.constant 7.812500e-03 : f32
    %6 = vector.broadcast %cst_5 : f32 to vector<1x16xf32>
    %7 = arith.mulf %5, %6 : vector<1x16xf32>
    %8 = arith.mulf %4, %4 : vector<1x16xf32>
    %9 = arith.subf %7, %8 : vector<1x16xf32>
    %cst_6 = arith.constant 0.000000e+00 : f32
    %10 = vector.broadcast %cst_6 : f32 to vector<1x16xf32>
    %11 = arith.maximumf %9, %10 : vector<1x16xf32>
    %c0_7 = arith.constant 0 : index
    %c0_8 = arith.constant 0 : index
    %12 = vector.load %arg4[%c0_7, %c0_8] : memref<1x16xf32, #tpu.memory_space<vmem>>, vector<1x16xf32>
    %cst_9 = arith.constant 9.99999974E-6 : f32
    %13 = vector.broadcast %cst_9 : f32 to vector<1x16xf32>
    %14 = arith.addf %11, %13 : vector<1x16xf32>
    %15 = math.rsqrt %14 : vector<1x16xf32>
    %16 = arith.mulf %12, %15 : vector<1x16xf32>
    %c0_10 = arith.constant 0 : index
    %c0_11 = arith.constant 0 : index
    %17 = vector.load %arg5[%c0_10, %c0_11] : memref<1x16xf32, #tpu.memory_space<vmem>>, vector<1x16xf32>
    %18 = arith.mulf %4, %16 : vector<1x16xf32>
    %19 = arith.subf %17, %18 : vector<1x16xf32>
    %20 = vector.broadcast %16 : vector<1x16xf32> to vector<128x16xf32>
    %21 = arith.mulf %1, %20 : vector<128x16xf32>
    %22 = vector.broadcast %19 : vector<1x16xf32> to vector<128x16xf32>
    %23 = arith.addf %21, %22 : vector<128x16xf32>
    %cst_12 = arith.constant 0.000000e+00 : f32
    %24 = vector.broadcast %cst_12 : f32 to vector<128x16xf32>
    %25 = arith.maximumf %23, %24 : vector<128x16xf32>
    %26 = arith.truncf %25 : vector<128x16xf32> to vector<128x16xbf16>
    %c0_13 = arith.constant 0 : index
    %c0_14 = arith.constant 0 : index
    %27 = vector.load %arg6[%c0_13, %c0_14] : memref<128x16xbf16, #tpu.memory_space<vmem>>, vector<128x16xbf16>
    tpu.vector_store %arg6[%c0_13, %c0_14], %26 {strides = array<i32>} : memref<128x16xbf16, #tpu.memory_space<vmem>>, vector<128x16xbf16>,
    return
  }
  func.func @transform_0(%arg0: i32) -> (i32, i32) {
    %c0_i32 = arith.constant 0 : i32
    %c0_i32_0 = arith.constant 0 : i32
    return %arg0, %c0_i32 : i32, i32
  }
  func.func @transform_1(%arg0: i32) -> (i32, i32) {
    %c0_i32 = arith.constant 0 : i32
    %c0_i32_0 = arith.constant 0 : i32
    %c0_i32_1 = arith.constant 0 : i32
    return %c0_i32, %c0_i32_0 : i32, i32
  }
  func.func @transform_2(%arg0: i32) -> (i32, i32) {
    %c0_i32 = arith.constant 0 : i32
    %c0_i32_0 = arith.constant 0 : i32
    %c0_i32_1 = arith.constant 0 : i32
    return %c0_i32, %c0_i32_0 : i32, i32
  }
  func.func @transform_3(%arg0: i32) -> (i32, i32) {
    %c0_i32 = arith.constant 0 : i32
    %c0_i32_0 = arith.constant 0 : i32
    %c0_i32_1 = arith.constant 0 : i32
    return %c0_i32, %c0_i32_0 : i32, i32
  }
  func.func @transform_4(%arg0: i32) -> (i32, i32) {
    %c0_i32 = arith.constant 0 : i32
    %c0_i32_0 = arith.constant 0 : i32
    %c0_i32_1 = arith.constant 0 : i32
    return %c0_i32, %c0_i32_0 : i32, i32
  }
  func.func @transform_5(%arg0: i32) -> (i32, i32) {
    %c0_i32 = arith.constant 0 : i32
    %c0_i32_0 = arith.constant 0 : i32
    return %arg0, %c0_i32 : i32, i32
  }
}

module attributes {stable_mosaic.version = 11 : i64} {
  func.func @_matmul_kernel(%arg0: i32, %arg1: i32, %arg2: i32, %arg3: memref<168x64xbf16, #tpu.memory_space<vmem>>, %arg4: memref<64x32xbf16, #tpu.memory_space<vmem>>, %arg5: memref<168x32xbf16, #tpu.memory_space<vmem>>, %arg6: memref<168x32xf32, #tpu.memory_space<vmem>>) attributes {dimension_semantics = [#tpu.dimension_semantics<parallel>, #tpu.dimension_semantics<parallel>, #tpu.dimension_semantics<arbitrary>], iteration_bounds = array<i64: 1, 1, 1>, scalar_prefetch = 0 : i64, scratch_operands = 1 : i64, tpu.core_type = #tpu.core_type<tc>, window_params = [{transform_indices = @transform_0, window_bounds = array<i64: 168, 64>}, {transform_indices = @transform_1, window_bounds = array<i64: 64, 32>}, {transform_indices = @transform_2, window_bounds = array<i64: 168, 32>}]} {
    %c0_i32 = arith.constant 0 : i32
    %0 = arith.cmpi eq, %arg2, %c0_i32 : i32
    %1 = arith.extui %0 : i1 to i32
    %c0_i32_0 = arith.constant 0 : i32
    %2 = arith.cmpi ne, %1, %c0_i32_0 : i32
    scf.if %2 {
      %cst_10 = arith.constant 0.000000e+00 : f32
      %12 = vector.broadcast %cst_10 : f32 to vector<168x32xf32>
      %c0_11 = arith.constant 0 : index
      %c0_12 = arith.constant 0 : index
      %13 = vector.load %arg6[%c0_11, %c0_12] : memref<168x32xf32, #tpu.memory_space<vmem>>, vector<168x32xf32>
      tpu.vector_store %arg6[%c0_11, %c0_12], %12 {strides = array<i32>} : memref<168x32xf32, #tpu.memory_space<vmem>>, vector<168x32xf32>,
    } else {
    }
    %c0 = arith.constant 0 : index
    %c0_1 = arith.constant 0 : index
    %3 = vector.load %arg6[%c0, %c0_1] : memref<168x32xf32, #tpu.memory_space<vmem>>, vector<168x32xf32>
    %c0_2 = arith.constant 0 : index
    %c0_3 = arith.constant 0 : index
    %4 = vector.load %arg3[%c0_2, %c0_3] : memref<168x64xbf16, #tpu.memory_space<vmem>>, vector<168x64xbf16>
    %c0_4 = arith.constant 0 : index
    %c0_5 = arith.constant 0 : index
    %5 = vector.load %arg4[%c0_4, %c0_5] : memref<64x32xbf16, #tpu.memory_space<vmem>>, vector<64x32xbf16>
    %cst = arith.constant dense<0.000000e+00> : vector<168x32xf32>
    %6 = tpu.matmul %4, %5, %cst {dimension_numbers = #tpu.dot_dimension_numbers<[1], [0], [0], [1], [0, 0, 1, 1], [], []>} : vector<168x64xbf16>, vector<64x32xbf16>, vector<168x32xf32> -> vector<168x32xf32>
    %7 = arith.addf %3, %6 : vector<168x32xf32>
    %c0_6 = arith.constant 0 : index
    %c0_7 = arith.constant 0 : index
    %8 = vector.load %arg6[%c0_6, %c0_7] : memref<168x32xf32, #tpu.memory_space<vmem>>, vector<168x32xf32>
    tpu.vector_store %arg6[%c0_6, %c0_7], %7 {strides = array<i32>} : memref<168x32xf32, #tpu.memory_space<vmem>>, vector<168x32xf32>,
    %c0_i32_8 = arith.constant 0 : i32
    %9 = arith.cmpi eq, %arg2, %c0_i32_8 : i32
    %10 = arith.extui %9 : i1 to i32
    %c0_i32_9 = arith.constant 0 : i32
    %11 = arith.cmpi ne, %10, %c0_i32_9 : i32
    scf.if %11 {
      %c0_10 = arith.constant 0 : index
      %c0_11 = arith.constant 0 : index
      %12 = vector.load %arg6[%c0_10, %c0_11] : memref<168x32xf32, #tpu.memory_space<vmem>>, vector<168x32xf32>
      %13 = arith.truncf %12 : vector<168x32xf32> to vector<168x32xbf16>
      %c0_12 = arith.constant 0 : index
      %c0_13 = arith.constant 0 : index
      %14 = vector.load %arg5[%c0_12, %c0_13] : memref<168x32xbf16, #tpu.memory_space<vmem>>, vector<168x32xbf16>
      tpu.vector_store %arg5[%c0_12, %c0_13], %13 {strides = array<i32>} : memref<168x32xbf16, #tpu.memory_space<vmem>>, vector<168x32xbf16>,
    } else {
    }
    return
  }
  func.func @transform_0(%arg0: i32, %arg1: i32, %arg2: i32) -> (i32, i32) {
    %c0_i32 = arith.constant 0 : i32
    return %arg0, %arg2 : i32, i32
  }
  func.func @transform_1(%arg0: i32, %arg1: i32, %arg2: i32) -> (i32, i32) {
    %c0_i32 = arith.constant 0 : i32
    return %arg2, %arg1 : i32, i32
  }
  func.func @transform_2(%arg0: i32, %arg1: i32, %arg2: i32) -> (i32, i32) {
    %c0_i32 = arith.constant 0 : i32
    return %arg0, %arg1 : i32, i32
  }
}

module attributes {stable_mosaic.version = 11 : i64} {
  func.func @_bn_stats_kernel(%arg0: i32, %arg1: memref<512x8xbf16, #tpu.memory_space<vmem>>, %arg2: memref<1x8xf32, #tpu.memory_space<vmem>>, %arg3: memref<1x8xf32, #tpu.memory_space<vmem>>) attributes {dimension_semantics = [#tpu.dimension_semantics<arbitrary>], iteration_bounds = array<i64: 1>, scalar_prefetch = 0 : i64, scratch_operands = 0 : i64, tpu.core_type = #tpu.core_type<tc>, window_params = [{transform_indices = @transform_0, window_bounds = array<i64: 512, 8>}, {pipeline_mode = #tpu.pipeline_mode<synchronous>, transform_indices = @transform_1, window_bounds = array<i64: 1, 8>}, {pipeline_mode = #tpu.pipeline_mode<synchronous>, transform_indices = @transform_2, window_bounds = array<i64: 1, 8>}]} {
    %c0_i32 = arith.constant 0 : i32
    %0 = arith.cmpi eq, %arg0, %c0_i32 : i32
    %1 = arith.extui %0 : i1 to i32
    %c0_i32_0 = arith.constant 0 : i32
    %2 = arith.cmpi ne, %1, %c0_i32_0 : i32
    scf.if %2 {
      %cst_11 = arith.constant 0.000000e+00 : f32
      %16 = vector.broadcast %cst_11 : f32 to vector<1x8xf32>
      %c0_12 = arith.constant 0 : index
      %c0_13 = arith.constant 0 : index
      %17 = vector.load %arg2[%c0_12, %c0_13] : memref<1x8xf32, #tpu.memory_space<vmem>>, vector<1x8xf32>
      tpu.vector_store %arg2[%c0_12, %c0_13], %16 {strides = array<i32>} : memref<1x8xf32, #tpu.memory_space<vmem>>, vector<1x8xf32>,
      %cst_14 = arith.constant 0.000000e+00 : f32
      %18 = vector.broadcast %cst_14 : f32 to vector<1x8xf32>
      %c0_15 = arith.constant 0 : index
      %c0_16 = arith.constant 0 : index
      %19 = vector.load %arg3[%c0_15, %c0_16] : memref<1x8xf32, #tpu.memory_space<vmem>>, vector<1x8xf32>
      tpu.vector_store %arg3[%c0_15, %c0_16], %18 {strides = array<i32>} : memref<1x8xf32, #tpu.memory_space<vmem>>, vector<1x8xf32>,
    } else {
    }
    %c0 = arith.constant 0 : index
    %c0_1 = arith.constant 0 : index
    %3 = vector.load %arg1[%c0, %c0_1] : memref<512x8xbf16, #tpu.memory_space<vmem>>, vector<512x8xbf16>
    %4 = arith.extf %3 : vector<512x8xbf16> to vector<512x8xf32>
    %c0_2 = arith.constant 0 : index
    %c0_3 = arith.constant 0 : index
    %5 = vector.load %arg2[%c0_2, %c0_3] : memref<1x8xf32, #tpu.memory_space<vmem>>, vector<1x8xf32>
    %cst = arith.constant dense<0.000000e+00> : vector<8xf32>
    %6 = vector.multi_reduction <add>, %4, %cst [0] : vector<512x8xf32> to vector<8xf32>
    %7 = vector.shape_cast %6 : vector<8xf32> to vector<1x8xf32>
    %8 = arith.addf %5, %7 : vector<1x8xf32>
    %c0_4 = arith.constant 0 : index
    %c0_5 = arith.constant 0 : index
    %9 = vector.load %arg2[%c0_4, %c0_5] : memref<1x8xf32, #tpu.memory_space<vmem>>, vector<1x8xf32>
    tpu.vector_store %arg2[%c0_4, %c0_5], %8 {strides = array<i32>} : memref<1x8xf32, #tpu.memory_space<vmem>>, vector<1x8xf32>,
    %c0_6 = arith.constant 0 : index
    %c0_7 = arith.constant 0 : index
    %10 = vector.load %arg3[%c0_6, %c0_7] : memref<1x8xf32, #tpu.memory_space<vmem>>, vector<1x8xf32>
    %11 = arith.mulf %4, %4 : vector<512x8xf32>
    %cst_8 = arith.constant dense<0.000000e+00> : vector<8xf32>
    %12 = vector.multi_reduction <add>, %11, %cst_8 [0] : vector<512x8xf32> to vector<8xf32>
    %13 = vector.shape_cast %12 : vector<8xf32> to vector<1x8xf32>
    %14 = arith.addf %10, %13 : vector<1x8xf32>
    %c0_9 = arith.constant 0 : index
    %c0_10 = arith.constant 0 : index
    %15 = vector.load %arg3[%c0_9, %c0_10] : memref<1x8xf32, #tpu.memory_space<vmem>>, vector<1x8xf32>
    tpu.vector_store %arg3[%c0_9, %c0_10], %14 {strides = array<i32>} : memref<1x8xf32, #tpu.memory_space<vmem>>, vector<1x8xf32>,
    return
  }
  func.func @transform_0(%arg0: i32) -> (i32, i32) {
    %c0_i32 = arith.constant 0 : i32
    %c0_i32_0 = arith.constant 0 : i32
    return %arg0, %c0_i32 : i32, i32
  }
  func.func @transform_1(%arg0: i32) -> (i32, i32) {
    %c0_i32 = arith.constant 0 : i32
    %c0_i32_0 = arith.constant 0 : i32
    %c0_i32_1 = arith.constant 0 : i32
    return %c0_i32, %c0_i32_0 : i32, i32
  }
  func.func @transform_2(%arg0: i32) -> (i32, i32) {
    %c0_i32 = arith.constant 0 : i32
    %c0_i32_0 = arith.constant 0 : i32
    %c0_i32_1 = arith.constant 0 : i32
    return %c0_i32, %c0_i32_0 : i32, i32
  }
}

module attributes {stable_mosaic.version = 11 : i64} {
  func.func @_bn_apply_kernel(%arg0: i32, %arg1: memref<512x8xbf16, #tpu.memory_space<vmem>>, %arg2: memref<1x8xf32, #tpu.memory_space<vmem>>, %arg3: memref<1x8xf32, #tpu.memory_space<vmem>>, %arg4: memref<1x8xf32, #tpu.memory_space<vmem>>, %arg5: memref<1x8xf32, #tpu.memory_space<vmem>>, %arg6: memref<512x8xbf16, #tpu.memory_space<vmem>>) attributes {dimension_semantics = [#tpu.dimension_semantics<parallel>], iteration_bounds = array<i64: 1>, scalar_prefetch = 0 : i64, scratch_operands = 0 : i64, tpu.core_type = #tpu.core_type<tc>, window_params = [{transform_indices = @transform_0, window_bounds = array<i64: 512, 8>}, {pipeline_mode = #tpu.pipeline_mode<synchronous>, transform_indices = @transform_1, window_bounds = array<i64: 1, 8>}, {pipeline_mode = #tpu.pipeline_mode<synchronous>, transform_indices = @transform_2, window_bounds = array<i64: 1, 8>}, {pipeline_mode = #tpu.pipeline_mode<synchronous>, transform_indices = @transform_3, window_bounds = array<i64: 1, 8>}, {pipeline_mode = #tpu.pipeline_mode<synchronous>, transform_indices = @transform_4, window_bounds = array<i64: 1, 8>}, {transform_indices = @transform_5, window_bounds = array<i64: 512, 8>}]} {
    %c0 = arith.constant 0 : index
    %c0_0 = arith.constant 0 : index
    %0 = vector.load %arg1[%c0, %c0_0] : memref<512x8xbf16, #tpu.memory_space<vmem>>, vector<512x8xbf16>
    %1 = arith.extf %0 : vector<512x8xbf16> to vector<512x8xf32>
    %c0_1 = arith.constant 0 : index
    %c0_2 = arith.constant 0 : index
    %2 = vector.load %arg2[%c0_1, %c0_2] : memref<1x8xf32, #tpu.memory_space<vmem>>, vector<1x8xf32>
    %cst = arith.constant 0.001953125 : f32
    %3 = vector.broadcast %cst : f32 to vector<1x8xf32>
    %4 = arith.mulf %2, %3 : vector<1x8xf32>
    %c0_3 = arith.constant 0 : index
    %c0_4 = arith.constant 0 : index
    %5 = vector.load %arg3[%c0_3, %c0_4] : memref<1x8xf32, #tpu.memory_space<vmem>>, vector<1x8xf32>
    %cst_5 = arith.constant 0.001953125 : f32
    %6 = vector.broadcast %cst_5 : f32 to vector<1x8xf32>
    %7 = arith.mulf %5, %6 : vector<1x8xf32>
    %8 = arith.mulf %4, %4 : vector<1x8xf32>
    %9 = arith.subf %7, %8 : vector<1x8xf32>
    %cst_6 = arith.constant 0.000000e+00 : f32
    %10 = vector.broadcast %cst_6 : f32 to vector<1x8xf32>
    %11 = arith.maximumf %9, %10 : vector<1x8xf32>
    %c0_7 = arith.constant 0 : index
    %c0_8 = arith.constant 0 : index
    %12 = vector.load %arg4[%c0_7, %c0_8] : memref<1x8xf32, #tpu.memory_space<vmem>>, vector<1x8xf32>
    %cst_9 = arith.constant 9.99999974E-6 : f32
    %13 = vector.broadcast %cst_9 : f32 to vector<1x8xf32>
    %14 = arith.addf %11, %13 : vector<1x8xf32>
    %15 = math.rsqrt %14 : vector<1x8xf32>
    %16 = arith.mulf %12, %15 : vector<1x8xf32>
    %c0_10 = arith.constant 0 : index
    %c0_11 = arith.constant 0 : index
    %17 = vector.load %arg5[%c0_10, %c0_11] : memref<1x8xf32, #tpu.memory_space<vmem>>, vector<1x8xf32>
    %18 = arith.mulf %4, %16 : vector<1x8xf32>
    %19 = arith.subf %17, %18 : vector<1x8xf32>
    %20 = vector.broadcast %16 : vector<1x8xf32> to vector<512x8xf32>
    %21 = arith.mulf %1, %20 : vector<512x8xf32>
    %22 = vector.broadcast %19 : vector<1x8xf32> to vector<512x8xf32>
    %23 = arith.addf %21, %22 : vector<512x8xf32>
    %cst_12 = arith.constant 0.000000e+00 : f32
    %24 = vector.broadcast %cst_12 : f32 to vector<512x8xf32>
    %25 = arith.maximumf %23, %24 : vector<512x8xf32>
    %26 = arith.truncf %25 : vector<512x8xf32> to vector<512x8xbf16>
    %c0_13 = arith.constant 0 : index
    %c0_14 = arith.constant 0 : index
    %27 = vector.load %arg6[%c0_13, %c0_14] : memref<512x8xbf16, #tpu.memory_space<vmem>>, vector<512x8xbf16>
    tpu.vector_store %arg6[%c0_13, %c0_14], %26 {strides = array<i32>} : memref<512x8xbf16, #tpu.memory_space<vmem>>, vector<512x8xbf16>,
    return
  }
  func.func @transform_0(%arg0: i32) -> (i32, i32) {
    %c0_i32 = arith.constant 0 : i32
    %c0_i32_0 = arith.constant 0 : i32
    return %arg0, %c0_i32 : i32, i32
  }
  func.func @transform_1(%arg0: i32) -> (i32, i32) {
    %c0_i32 = arith.constant 0 : i32
    %c0_i32_0 = arith.constant 0 : i32
    %c0_i32_1 = arith.constant 0 : i32
    return %c0_i32, %c0_i32_0 : i32, i32
  }
  func.func @transform_2(%arg0: i32) -> (i32, i32) {
    %c0_i32 = arith.constant 0 : i32
    %c0_i32_0 = arith.constant 0 : i32
    %c0_i32_1 = arith.constant 0 : i32
    return %c0_i32, %c0_i32_0 : i32, i32
  }
  func.func @transform_3(%arg0: i32) -> (i32, i32) {
    %c0_i32 = arith.constant 0 : i32
    %c0_i32_0 = arith.constant 0 : i32
    %c0_i32_1 = arith.constant 0 : i32
    return %c0_i32, %c0_i32_0 : i32, i32
  }
  func.func @transform_4(%arg0: i32) -> (i32, i32) {
    %c0_i32 = arith.constant 0 : i32
    %c0_i32_0 = arith.constant 0 : i32
    %c0_i32_1 = arith.constant 0 : i32
    return %c0_i32, %c0_i32_0 : i32, i32
  }
  func.func @transform_5(%arg0: i32) -> (i32, i32) {
    %c0_i32 = arith.constant 0 : i32
    %c0_i32_0 = arith.constant 0 : i32
    return %arg0, %c0_i32 : i32, i32
  }
}

module attributes {stable_mosaic.version = 11 : i64} {
  func.func @_matmul_kernel(%arg0: i32, %arg1: i32, %arg2: i32, %arg3: memref<512x32xbf16, #tpu.memory_space<vmem>>, %arg4: memref<32x12xbf16, #tpu.memory_space<vmem>>, %arg5: memref<1x12xf32, #tpu.memory_space<vmem>>, %arg6: memref<512x12xf32, #tpu.memory_space<vmem>>, %arg7: memref<512x12xf32, #tpu.memory_space<vmem>>) attributes {dimension_semantics = [#tpu.dimension_semantics<parallel>, #tpu.dimension_semantics<parallel>, #tpu.dimension_semantics<arbitrary>], iteration_bounds = array<i64: 2, 1, 1>, scalar_prefetch = 0 : i64, scratch_operands = 1 : i64, tpu.core_type = #tpu.core_type<tc>, window_params = [{transform_indices = @transform_0, window_bounds = array<i64: 512, 32>}, {transform_indices = @transform_1, window_bounds = array<i64: 32, 12>}, {transform_indices = @transform_2, window_bounds = array<i64: 1, 12>}, {transform_indices = @transform_3, window_bounds = array<i64: 512, 12>}]} {
    %c0_i32 = arith.constant 0 : i32
    %0 = arith.cmpi eq, %arg2, %c0_i32 : i32
    %1 = arith.extui %0 : i1 to i32
    %c0_i32_0 = arith.constant 0 : i32
    %2 = arith.cmpi ne, %1, %c0_i32_0 : i32
    scf.if %2 {
      %cst_10 = arith.constant 0.000000e+00 : f32
      %12 = vector.broadcast %cst_10 : f32 to vector<512x12xf32>
      %c0_11 = arith.constant 0 : index
      %c0_12 = arith.constant 0 : index
      %13 = vector.load %arg7[%c0_11, %c0_12] : memref<512x12xf32, #tpu.memory_space<vmem>>, vector<512x12xf32>
      tpu.vector_store %arg7[%c0_11, %c0_12], %12 {strides = array<i32>} : memref<512x12xf32, #tpu.memory_space<vmem>>, vector<512x12xf32>,
    } else {
    }
    %c0 = arith.constant 0 : index
    %c0_1 = arith.constant 0 : index
    %3 = vector.load %arg7[%c0, %c0_1] : memref<512x12xf32, #tpu.memory_space<vmem>>, vector<512x12xf32>
    %c0_2 = arith.constant 0 : index
    %c0_3 = arith.constant 0 : index
    %4 = vector.load %arg3[%c0_2, %c0_3] : memref<512x32xbf16, #tpu.memory_space<vmem>>, vector<512x32xbf16>
    %c0_4 = arith.constant 0 : index
    %c0_5 = arith.constant 0 : index
    %5 = vector.load %arg4[%c0_4, %c0_5] : memref<32x12xbf16, #tpu.memory_space<vmem>>, vector<32x12xbf16>
    %cst = arith.constant dense<0.000000e+00> : vector<512x12xf32>
    %6 = tpu.matmul %4, %5, %cst {dimension_numbers = #tpu.dot_dimension_numbers<[1], [0], [0], [1], [0, 0, 1, 1], [], []>} : vector<512x32xbf16>, vector<32x12xbf16>, vector<512x12xf32> -> vector<512x12xf32>
    %7 = arith.addf %3, %6 : vector<512x12xf32>
    %c0_6 = arith.constant 0 : index
    %c0_7 = arith.constant 0 : index
    %8 = vector.load %arg7[%c0_6, %c0_7] : memref<512x12xf32, #tpu.memory_space<vmem>>, vector<512x12xf32>
    tpu.vector_store %arg7[%c0_6, %c0_7], %7 {strides = array<i32>} : memref<512x12xf32, #tpu.memory_space<vmem>>, vector<512x12xf32>,
    %c0_i32_8 = arith.constant 0 : i32
    %9 = arith.cmpi eq, %arg2, %c0_i32_8 : i32
    %10 = arith.extui %9 : i1 to i32
    %c0_i32_9 = arith.constant 0 : i32
    %11 = arith.cmpi ne, %10, %c0_i32_9 : i32
    scf.if %11 {
      %c0_10 = arith.constant 0 : index
      %c0_11 = arith.constant 0 : index
      %12 = vector.load %arg7[%c0_10, %c0_11] : memref<512x12xf32, #tpu.memory_space<vmem>>, vector<512x12xf32>
      %c0_12 = arith.constant 0 : index
      %c0_13 = arith.constant 0 : index
      %13 = vector.load %arg5[%c0_12, %c0_13] : memref<1x12xf32, #tpu.memory_space<vmem>>, vector<1x12xf32>
      %14 = vector.broadcast %13 : vector<1x12xf32> to vector<512x12xf32>
      %15 = arith.addf %12, %14 : vector<512x12xf32>
      %16 = math.tanh %15 : vector<512x12xf32>
      %c0_14 = arith.constant 0 : index
      %c0_15 = arith.constant 0 : index
      %17 = vector.load %arg6[%c0_14, %c0_15] : memref<512x12xf32, #tpu.memory_space<vmem>>, vector<512x12xf32>
      tpu.vector_store %arg6[%c0_14, %c0_15], %16 {strides = array<i32>} : memref<512x12xf32, #tpu.memory_space<vmem>>, vector<512x12xf32>,
    } else {
    }
    return
  }
  func.func @transform_0(%arg0: i32, %arg1: i32, %arg2: i32) -> (i32, i32) {
    %c0_i32 = arith.constant 0 : i32
    return %arg0, %arg2 : i32, i32
  }
  func.func @transform_1(%arg0: i32, %arg1: i32, %arg2: i32) -> (i32, i32) {
    %c0_i32 = arith.constant 0 : i32
    return %arg2, %arg1 : i32, i32
  }
  func.func @transform_2(%arg0: i32, %arg1: i32, %arg2: i32) -> (i32, i32) {
    %c0_i32 = arith.constant 0 : i32
    %c0_i32_0 = arith.constant 0 : i32
    return %c0_i32, %arg1 : i32, i32
  }
  func.func @transform_3(%arg0: i32, %arg1: i32, %arg2: i32) -> (i32, i32) {
    %c0_i32 = arith.constant 0 : i32
    return %arg0, %arg1 : i32, i32
  }
}

</mosaic_0001>

<llo_original>
// kernel: tile.8
$region0: #{tile.8}
  #allocation2 [shape = 's32[1]{0}', space=sflag, size = 0x4, scoped, tag = 'scoped memory for tile.8']
  %s0 = inlined_call_operand.hbm [shape: f32[3], index: 0, kind: input, shape index: {}]
  %s1 = inlined_call_operand.vmem [shape: f32[4,3], index: 1, kind: output, shape index: {}]
  $region1: #{tile.8} parent=0
    #allocation0 [shape = 'u8[512]{0}', space=vmem, size = 0x400, scoped, tag = 'operand span for operand 0']
    #allocation1 [shape = 's32[1]{0}', space=sflag, size = 0x4, scoped, tag = 'scoped memory for tile.8']
    %2 = vsyncpa [#allocation1], 0
    // Predicated region
    $region2: #{tile.8} parent=1 // pred_check
      _
    $region3: #{tile.8} parent=1 // pred_check_branch
      %4 = sbr.rel (0) target = $region5
    $region4: #{tile.8} parent=1 // pred_region
      %6 = vsyncadd [#allocation1], 0
      %s8 = sshll.u32 %s0, 4
      %s9 = int_to_ptr.hbm [resolvable:$true] %s8
      %s10 = sshll.u32 [#allocation0], 4
      %s11 = int_to_ptr.vmem [resolvable:$true] %s10
      %13 = dma.hbm_to_vmem [thread:$0]  %s9, 16, %s11, [#allocation1]
    $region5: #{tile.8} parent=1 // pred_fallthru
      _
    // Predicated region
    $region6: #{tile.8} parent=1 // pred_check
      _
    $region7: #{tile.8} parent=1 // pred_check_branch
      %15 = sbr.rel (0) target = $region9
    $region8: #{tile.8} parent=1 // pred_region
      %17 = dma.done [#allocation1], 16
    $region9: #{tile.8} parent=1 // pred_fallthru
      _
    %v18 = vld [vmem:[#allocation0] ss:$0 sm:$0xff]
    %19 = vst [vmem:[%s1] sm:$0xf] %v18
    %20 = vsyncpa [#allocation1], 1

// kernel: tile.9
$region0: #{tile.9}
  %s0 = inlined_call_operand.vmem [shape: f32[4,3], index: 0, kind: input, shape index: {}]
  %s1 = inlined_call_operand.vmem [shape: f32[1,12], index: 1, kind: output, shape index: {}]
  $region1: #{tile.9} parent=0
    #allocation0 [shape = 'u8[4096]{0}', space=vmem, size = 0x1000, scoped, tag = 'scoped mem for output reshape']
    #allocation1 [shape = 'u8[4096]{0}', space=vmem, size = 0x1000, scoped, tag = 'scoped mem for input reshape']
    %s3 = ssub.s32 16, 1
    %v4 = vld [vmem:[%s0] sm:%s3]
    %5 = vst [vmem:[#allocation1] sm:%s3] %v4
    %v6 = vld [vmem:[#allocation1] sm:$0x1]
    %vm7 = vcmask 23552
    %8 = vst.msk [vmem:[#allocation0] sm:$0x1] %vm7, %v6
    %s9 = scalar_lea.vmem [#allocation1], 3
    %v10 = vld [vmem:[%s9] sm:$0x1]
    %11 = vrot.lane.b32.xlu0 %v10, 9
    %v12 = vpop.permute.xlu0 %11
    %vm13 = vcmask 97352
    %14 = vst.msk [vmem:[#allocation0] sm:$0x1] %vm13, %v12
    %s15 = scalar_lea.vmem [#allocation1], 2
    %v16 = vld [vmem:[%s15] sm:$0x1]
    %17 = vrot.lane.b32.xlu0 %v16, 6
    %v18 = vpop.permute.xlu0 %17
    %vm19 = vcmask 72752
    %20 = vst.msk [vmem:[#allocation0] sm:$0x1] %vm19, %v18
    %s21 = scalar_lea.vmem [#allocation1], 1
    %v22 = vld [vmem:[%s21] sm:$0x1]
    %23 = vrot.lane.b32.xlu0 %v22, 3
    %v24 = vpop.permute.xlu0 %23
    %vm25 = vcmask 48152
    %26 = vst.msk [vmem:[#allocation0] sm:$0x1] %vm25, %v24
    %s28 = ssub.s32 2, 1
    %v29 = vld [vmem:[#allocation0] sm:%s28]
    %s31 = ssub.s32 2, 1
    %32 = vst [vmem:[%s1] sm:%s31] %v29

// kernel: generator_forward.15
$region0: #{generator_forward.15}
  #allocation0 [shape = 'u32[]', space=smem, size = 0x4, offset = 0x4, fixed_abs, tag = 'smem constant byte address 0x4 - core index']
  #allocation1 [shape = 'u32[72,128]{1,0:T(1,128)}', space=vmem, size = 0x9000, scoped, tag = 'internal scratch']
  %s0 = inlined_call_operand.vmem [shape: bf16[8,64], index: 0, kind: input, shape index: {}]
  %s1 = inlined_call_operand.vmem [shape: f32[1,64], index: 1, kind: input, shape index: {}]
  %s2 = inlined_call_operand.vmem [shape: f32[1,64], index: 2, kind: input, shape index: {}]
  %s3 = inlined_call_operand.hbm [shape: f32[1,64], index: 3, kind: input, shape index: {}]
  %s4 = inlined_call_operand.hbm [shape: f32[1,64], index: 4, kind: input, shape index: {}]
  %s5 = inlined_call_operand.vmem [shape: bf16[8,64], index: 5, kind: output, shape index: {}]
  %s6 = sld [smem:[#allocation0]]
  $region38: #{generator_forward.15} parent=0
    _
  %s8 = ssub.s32 1, %s6
  %s9 = scalar_select 0, %s8, %s6
  $region1: #{generator_forward.15} parent=0
    #allocation2 [shape = 'u8[512]{0}', space=vmem, size = 0x400, scoped, tag = 'input window, operand 3, single buffered']
    #allocation3 [shape = 's32[1]{0}', space=sflag, size = 0x4, scoped, tag = 'scoped memory for generator_forward.15']
    #allocation4 [shape = 'u8[512]{0}', space=vmem, size = 0x400, scoped, tag = 'input window, operand 4, single buffered']
    #allocation5 [shape = 's32[1]{0}', space=sflag, size = 0x4, scoped, tag = 'scoped memory for generator_forward.15']
    %10 = vsyncpa [#allocation3], 0
    %11 = vsyncpa [#allocation5], 0
    // Predicated region
    $region2: #{generator_forward.15} parent=1 // pred_check
      _
    $region3: #{generator_forward.15} parent=1 // pred_check_branch
      %13 = sbr.rel (0) target = $region5
    $region4: #{generator_forward.15} parent=1 // pred_region
      _
    $region5: #{generator_forward.15} parent=1 // pred_fallthru
      _
    // Predicated region
    $region6: #{generator_forward.15} parent=1 // pred_check
      _
    $region7: #{generator_forward.15} parent=1 // pred_check_branch
      %15 = sbr.rel (0) target = $region9
    $region8: #{generator_forward.15} parent=1 // pred_region
      _
    $region9: #{generator_forward.15} parent=1 // pred_fallthru
      _
    // Predicated region
    $region10: #{generator_forward.15} parent=1 // pred_check
      _
    $region11: #{generator_forward.15} parent=1 // pred_check_branch
      %17 = sbr.rel (0) target = $region13
    $region12: #{generator_forward.15} parent=1 // pred_region
      _
    $region13: #{generator_forward.15} parent=1 // pred_fallthru
      _
    // Predicated region
    $region14: #{generator_forward.15} parent=1 // pred_check
      _
    $region15: #{generator_forward.15} parent=1 // pred_check_branch
      %19 = sbr.rel (0) target = $region17
    $region16: #{generator_forward.15} parent=1 // pred_region
      %21 = vsyncadd [#allocation3], 0
      %s23 = sshll.u32 %s3, 4
      %s24 = int_to_ptr.hbm [resolvable:$true] %s23
      %s25 = sshll.u32 [#allocation2], 4
      %s26 = int_to_ptr.vmem [resolvable:$true] %s25
      %28 = dma.hbm_to_vmem [thread:$0]  %s24, 16, %s26, [#allocation3]
    $region17: #{generator_forward.15} parent=1 // pred_fallthru
      _
    // Predicated region
    $region18: #{generator_forward.15} parent=1 // pred_check
      _
    $region19: #{generator_forward.15} parent=1 // pred_check_branch
      %30 = sbr.rel (0) target = $region21
    $region20: #{generator_forward.15} parent=1 // pred_region
      %32 = vsyncadd [#allocation5], 0
      %s34 = sshll.u32 %s4, 4
      %s35 = int_to_ptr.hbm [resolvable:$true] %s34
      %s36 = sshll.u32 [#allocation4], 4
      %s37 = int_to_ptr.vmem [resolvable:$true] %s36
      %39 = dma.hbm_to_vmem [thread:$0]  %s35, 16, %s37, [#allocation5]
    $region21: #{generator_forward.15} parent=1 // pred_fallthru
      _
    // Predicated region
    $region22: #{generator_forward.15} parent=1 // pred_check
      _
    $region23: #{generator_forward.15} parent=1 // pred_check_branch
      %41 = sbr.rel (0) target = $region25
    $region24: #{generator_forward.15} parent=1 // pred_region
      %43 = dma.done [#allocation3], 16
    $region25: #{generator_forward.15} parent=1 // pred_fallthru
      _
    // Predicated region
    $region26: #{generator_forward.15} parent=1 // pred_check
      _
    $region27: #{generator_forward.15} parent=1 // pred_check_branch
      %45 = sbr.rel (0) target = $region29
    $region28: #{generator_forward.15} parent=1 // pred_region
      %47 = dma.done [#allocation5], 16
    $region29: #{generator_forward.15} parent=1 // pred_fallthru
      _
    %v48 = vld [vmem:[%s0] sm:$0xf]
    %v49 = vunpack.c.l.bf16 %v48
    %v50 = vld [vmem:[%s1] sm:$0x1]
    %v51 = vmul.f32 %v50, 0.125
    %v52 = vld [vmem:[%s2] sm:$0x1]
    %v53 = vmul.f32 %v52, 0.125
    %v54 = vmul.f32 %v51, %v51
    %v55 = vsub.f32 %v53, %v54
    %v56 = vmax.f32 %v55, 0.0
    %v57 = vld [vmem:[#allocation2] sm:$0x1]
    %v58 = vadd.f32 %v56, 1e-05
    %v59 = vrsqrt.pop %v58
    %v60 = vmul.f32 %v59, %v58
    %v61 = vmul.f32 %v60, %v59
    %v62 = vmul.f32 0.5, %v61
    %v63 = vsub.f32 1.5, %v62
    %v64 = vmul.f32 %v59, %v63
    %vm65 = vweird.f32 %v58
    %vm66 = vweird.f32 %v59
    %vm67 = vmor %vm65, %vm66
    %v68 = vsel %vm67, %v59, %v64
    %v69 = vmul.f32 %v57, %v68
    %v70 = vld [vmem:[#allocation4] sm:$0x1]
    %v71 = vmul.f32 %v51, %v69
    %v72 = vsub.f32 %v70, %v71
    %v74 = vperm.slane %v69, 0
    %v76 = vmul.f32 %v49, %v74
    %v78 = vperm.slane %v72, 0
    %v80 = vadd.f32 %v76, %v78
    %v81 = vmax.f32 %v80, 0.0
    %v82 = vpack.c.bf16 %v81, %v81
    %vm83 = vcmask 519168
    %84 = vst.msk [vmem:[%s5] sm:$0xf] %vm83, %v82
    // Predicated region
    $region30: #{generator_forward.15} parent=1 // pred_check
      _
    $region31: #{generator_forward.15} parent=1 // pred_check_branch
      %86 = sbr.rel (0) target = $region33
    $region32: #{generator_forward.15} parent=1 // pred_region
      _
    $region33: #{generator_forward.15} parent=1 // pred_fallthru
      _
    // Predicated region
    $region34: #{generator_forward.15} parent=1 // pred_check
      _
    $region35: #{generator_forward.15} parent=1 // pred_check_branch
      %88 = sbr.rel (0) target = $region37
    $region36: #{generator_forward.15} parent=1 // pred_region
      _
    $region37: #{generator_forward.15} parent=1 // pred_fallthru
      _
    %89 = vsyncpa [#allocation3], 1
    %90 = vsyncpa [#allocation5], 1

// kernel: generator_forward.13
$region0: #{generator_forward.13}
  #allocation0 [shape = 'u32[]', space=smem, size = 0x4, offset = 0x4, fixed_abs, tag = 'smem constant byte address 0x4 - core index']
  #allocation1 [shape = 'u32[72,128]{1,0:T(1,128)}', space=vmem, size = 0x9000, scoped, tag = 'internal scratch']
  #allocation2 [shape = 'f32[8,256]{1,0:T(8,128)}', space=vmem, size = 0x2000, scoped, tag = 'scratch operand']
  %s0 = inlined_call_operand.vmem [shape: bf16[8,16], index: 0, kind: input, shape index: {}]
  %s1 = inlined_call_operand.vmem [shape: bf16[16,256], index: 1, kind: input, shape index: {}]
  %s2 = inlined_call_operand.vmem [shape: bf16[8,256], index: 2, kind: output, shape index: {}]
  %s3 = sld [smem:[#allocation0]]
  $region26: #{generator_forward.13} parent=0
    _
  %s5 = ssub.s32 1, %s3
  %s6 = scalar_select 0, %s5, %s3
  // Predicated region
  $region2: #{generator_forward.13} parent=0 // pred_check
    _
  $region3: #{generator_forward.13} parent=0 // pred_check_branch
    %8 = sbr.rel (0) target = $region5
  $region4: #{generator_forward.13} parent=0 // pred_region
    _
  $region5: #{generator_forward.13} parent=0 // pred_fallthru
    _
  // Predicated region
  $region6: #{generator_forward.13} parent=0 // pred_check
    _
  $region7: #{generator_forward.13} parent=0 // pred_check_branch
    %10 = sbr.rel (0) target = $region9
  $region8: #{generator_forward.13} parent=0 // pred_region
    _
  $region9: #{generator_forward.13} parent=0 // pred_fallthru
    _
  %p12 = scmp.eq.s32.totalorder 0, 0
  // Predicated region
  $region10: #{generator_forward.13} parent=0 // pred_check
    %p13 = pneg %p12
  $region11: #{generator_forward.13} parent=0 // pred_check_branch
    %15 = sbr.rel (%p13) target = $region13
  $region12: #{generator_forward.13} parent=0 // pred_region
    %16 = vst [vmem:[#allocation2] sm:$0xff] 0.0
    %17 = vst [vmem:[#allocation2 + $0x8] sm:$0xff] 0.0
  $region13: #{generator_forward.13} parent=0 // pred_fallthru
    _
  %v18 = vld [vmem:[#allocation2] sm:$0xff]
  %v19 = vld [vmem:[#allocation2 + $0x8] sm:$0xff]
  %v20 = vld [vmem:[%s0] sm:$0xf]
  %v21 = vld [vmem:[%s1] sm:$0xff]
  %v22 = vld [vmem:[%s1 + $0x8] sm:$0xff]
  %v25 = vunpack.c.l.b16 %v21
  %v26 = vunpack.c.h.b16 %v21
  %v27 = vunpack.c.l.b16 %v22
  %v28 = vunpack.c.h.b16 %v22
  %v29 = vpack.c.b16 %v27, %v25
  %v30 = vpack.c.b16 %v28, %v26
  %vm33 = vcmask 130048
  %v35 = vsel %vm33, %v20, 0
  %37 = vmatpush.bf16.msra.mxu0 0
  %38 = vmatpush.bf16.msra.mxu0 0
  %39 = vmatpush.bf16.msra.mxu0 0
  %40 = vmatpush.bf16.msra.mxu0 0
  %41 = vmatpush.bf16.msra.mxu0 0
  %42 = vmatpush.bf16.msra.mxu0 0
  %43 = vmatpush.bf16.msra.mxu0 0
  %44 = vmatpush.bf16.msra.mxu0 %v29
  %45 = vmatmul.bf16.gmra.mxu0 %v35
  %v46 = vpop.f32.mrf.mxu0
  %v47 = vadd.f32 0.0, %v46
  %v48 = vpop.f32.mrf.mxu0
  %49 = vdwg.mxu0
  %50 = vmatpush.bf16.msra.mxu0 0
  %51 = vmatpush.bf16.msra.mxu0 0
  %52 = vmatpush.bf16.msra.mxu0 0
  %53 = vmatpush.bf16.msra.mxu0 0
  %54 = vmatpush.bf16.msra.mxu0 0
  %55 = vmatpush.bf16.msra.mxu0 0
  %56 = vmatpush.bf16.msra.mxu0 0
  %57 = vmatpush.bf16.msra.mxu0 %v30
  %58 = vmatmul.bf16.gmra.mxu0 %v35
  %v59 = vpop.f32.mrf.mxu0
  %v60 = vadd.f32 0.0, %v59
  %v61 = vpop.f32.mrf.mxu0
  %62 = vdwg.mxu0
  %v63 = vadd.f32 %v18, %v47
  %v64 = vadd.f32 %v19, %v60
  %65 = vst [vmem:[#allocation2] sm:$0xff] %v63
  %66 = vst [vmem:[#allocation2 + $0x8] sm:$0xff] %v64
  // Predicated region
  $region14: #{generator_forward.13} parent=0 // pred_check
    %p67 = pneg %p12
  $region15: #{generator_forward.13} parent=0 // pred_check_branch
    %69 = sbr.rel (%p67) target = $region17
  $region16: #{generator_forward.13} parent=0 // pred_region
    %v70 = vld [vmem:[#allocation2] sm:$0xff]
    %v71 = vld [vmem:[#allocation2 + $0x8] sm:$0xff]
    %v72 = vpack.c.bf16 %v71, %v70
    %73 = vst [vmem:[%s2] sm:$0xff] %v72
  $region17: #{generator_forward.13} parent=0 // pred_fallthru
    _
  // Predicated region
  $region18: #{generator_forward.13} parent=0 // pred_check
    _
  $region19: #{generator_forward.13} parent=0 // pred_check_branch
    %75 = sbr.rel (0) target = $region21
  $region20: #{generator_forward.13} parent=0 // pred_region
    _
  $region21: #{generator_forward.13} parent=0 // pred_fallthru
    _
  // Predicated region
  $region22: #{generator_forward.13} parent=0 // pred_check
    _
  $region23: #{generator_forward.13} parent=0 // pred_check_branch
    %77 = sbr.rel (0) target = $region25
  $region24: #{generator_forward.13} parent=0 // pred_region
    _
  $region25: #{generator_forward.13} parent=0 // pred_fallthru
    _

// kernel: generator_forward.14
$region0: #{generator_forward.14}
  #allocation0 [shape = 'u32[]', space=smem, size = 0x4, offset = 0x4, fixed_abs, tag = 'smem constant byte address 0x4 - core index']
  #allocation1 [shape = 'u32[72,128]{1,0:T(1,128)}', space=vmem, size = 0x9000, scoped, tag = 'internal scratch']
  %s0 = inlined_call_operand.vmem [shape: bf16[8,64], index: 0, kind: input, shape index: {}]
  %s1 = inlined_call_operand.vmem [shape: f32[1,64], index: 1, kind: output, shape index: {0}]
  %s2 = inlined_call_operand.vmem [shape: f32[1,64], index: 2, kind: output, shape index: {1}]
  %3 = xla_tuple %s1, %s2
  %s4 = sld [smem:[#allocation0]]
  $region26: #{generator_forward.14} parent=0
    _
  %s6 = ssub.s32 1, %s4
  %s7 = scalar_select 0, %s6, %s4
  // Predicated region
  $region2: #{generator_forward.14} parent=0 // pred_check
    _
  $region3: #{generator_forward.14} parent=0 // pred_check_branch
    %9 = sbr.rel (0) target = $region5
  $region4: #{generator_forward.14} parent=0 // pred_region
    _
  $region5: #{generator_forward.14} parent=0 // pred_fallthru
    _
  %p10 = scmp.eq.s32.totalorder 0, 0
  // Predicated region
  $region6: #{generator_forward.14} parent=0 // pred_check
    %p11 = pneg %p10
  $region7: #{generator_forward.14} parent=0 // pred_check_branch
    %13 = sbr.rel (%p11) target = $region9
  $region8: #{generator_forward.14} parent=0 // pred_region
    %vm14 = vcmask 516096
    %15 = vst.msk [vmem:[%s1] sm:$0x1] %vm14, 0.0
    %16 = vst.msk [vmem:[%s2] sm:$0x1] %vm14, 0.0
  $region9: #{generator_forward.14} parent=0 // pred_fallthru
    _
  %v17 = vld [vmem:[%s0] sm:$0xf]
  %v18 = vunpack.c.l.bf16 %v17
  %v19 = vld [vmem:[%s1] sm:$0x1]
  %vm20 = vcmask 523264
  %v21 = vsel %vm20, %v18, 0.0
  %v22 = vrot.slane %v21, 4
  %v23 = vadd.f32 %v21, %v22
  %v24 = vrot.slane %v23, 2
  %v25 = vadd.f32 %v23, %v24
  %v26 = vrot.slane %v25, 1
  %v27 = vadd.f32 %v25, %v26
  %v28 = vadd.f32 %v19, %v27
  %vm29 = vcmask 516096
  %30 = vst.msk [vmem:[%s1] sm:$0x1] %vm29, %v28
  %v31 = vld [vmem:[%s2] sm:$0x1]
  %v32 = vmul.f32 %v18, %v18
  %v33 = vsel %vm20, %v32, 0.0
  %v34 = vrot.slane %v33, 4
  %v35 = vadd.f32 %v33, %v34
  %v36 = vrot.slane %v35, 2
  %v37 = vadd.f32 %v35, %v36
  %v38 = vrot.slane %v37, 1
  %v39 = vadd.f32 %v37, %v38
  %v40 = vadd.f32 %v31, %v39
  %41 = vst.msk [vmem:[%s2] sm:$0x1] %vm29, %v40
  // Predicated region
  $region10: #{generator_forward.14} parent=0 // pred_check
    _
  $region11: #{generator_forward.14} parent=0 // pred_check_branch
    %43 = sbr.rel (0) target = $region13
  $region12: #{generator_forward.14} parent=0 // pred_region
    _
  $region13: #{generator_forward.14} parent=0 // pred_fallthru
    _
  // Predicated region
  $region14: #{generator_forward.14} parent=0 // pred_check
    _
  $region15: #{generator_forward.14} parent=0 // pred_check_branch
    %45 = sbr.rel (0) target = $region17
  $region16: #{generator_forward.14} parent=0 // pred_region
    _
  $region17: #{generator_forward.14} parent=0 // pred_fallthru
    _
  // Predicated region
  $region18: #{generator_forward.14} parent=0 // pred_check
    _
  $region19: #{generator_forward.14} parent=0 // pred_check_branch
    %47 = sbr.rel (0) target = $region21
  $region20: #{generator_forward.14} parent=0 // pred_region
    _
  $region21: #{generator_forward.14} parent=0 // pred_fallthru
    _
  // Predicated region
  $region22: #{generator_forward.14} parent=0 // pred_check
    _
  $region23: #{generator_forward.14} parent=0 // pred_check_branch
    %49 = sbr.rel (0) target = $region25
  $region24: #{generator_forward.14} parent=0 // pred_region
    _
  $region25: #{generator_forward.14} parent=0 // pred_fallthru
    _

// kernel: generator_forward.16
$region0: #{generator_forward.16}
  #allocation0 [shape = 'u32[]', space=smem, size = 0x4, offset = 0x4, fixed_abs, tag = 'smem constant byte address 0x4 - core index']
  #allocation1 [shape = 'u32[72,128]{1,0:T(1,128)}', space=vmem, size = 0x9000, scoped, tag = 'internal scratch']
  #allocation2 [shape = 'f32[24,128]{1,0:T(8,128)}', space=vmem, size = 0x3000, scoped, tag = 'scratch operand']
  %s0 = inlined_call_operand.vmem [shape: bf16[24,256], index: 0, kind: input, shape index: {}]
  %s1 = inlined_call_operand.vmem [shape: bf16[256,128], index: 1, kind: input, shape index: {}]
  %s2 = inlined_call_operand.vmem [shape: bf16[24,128], index: 2, kind: output, shape index: {}]
  %s3 = sld [smem:[#allocation0]]
  $region26: #{generator_forward.16} parent=0
    _
  %s5 = ssub.s32 1, %s3
  %s6 = scalar_select 0, %s5, %s3
  // Predicated region
  $region2: #{generator_forward.16} parent=0 // pred_check
    _
  $region3: #{generator_forward.16} parent=0 // pred_check_branch
    %8 = sbr.rel (0) target = $region5
  $region4: #{generator_forward.16} parent=0 // pred_region
    _
  $region5: #{generator_forward.16} parent=0 // pred_fallthru
    _
  // Predicated region
  $region6: #{generator_forward.16} parent=0 // pred_check
    _
  $region7: #{generator_forward.16} parent=0 // pred_check_branch
    %10 = sbr.rel (0) target = $region9
  $region8: #{generator_forward.16} parent=0 // pred_region
    _
  $region9: #{generator_forward.16} parent=0 // pred_fallthru
    _
  %p11 = scmp.eq.s32.totalorder 0, 0
  // Predicated region
  $region10: #{generator_forward.16} parent=0 // pred_check
    %p12 = pneg %p11
  $region11: #{generator_forward.16} parent=0 // pred_check_branch
    %14 = sbr.rel (%p12) target = $region13
  $region12: #{generator_forward.16} parent=0 // pred_region
    %15 = vst [vmem:[#allocation2] sm:$0xff] 0.0
    %16 = vst [vmem:[#allocation2 + $0x8] sm:$0xff] 0.0
    %17 = vst [vmem:[#allocation2 + $0x10] sm:$0xff] 0.0
  $region13: #{generator_forward.16} parent=0 // pred_fallthru
    _
  %v18 = vld [vmem:[#allocation2] sm:$0xff]
  %v19 = vld [vmem:[#allocation2 + $0x8] sm:$0xff]
  %v20 = vld [vmem:[#allocation2 + $0x10] sm:$0xff]
  %v21 = vld [vmem:[%s0] sm:$0xff]
  %v22 = vld [vmem:[%s0 + $0x8] sm:$0xff]
  %v23 = vld [vmem:[%s0 + $0x10] sm:$0xff]
  %v24 = vld [vmem:[%s1] sm:$0xf]
  %v25 = vld [vmem:[%s1 + $0x4] sm:$0xf]
  %v26 = vld [vmem:[%s1 + $0x8] sm:$0xf]
  %v27 = vld [vmem:[%s1 + $0xc] sm:$0xf]
  %v28 = vld [vmem:[%s1 + $0x10] sm:$0xf]
  %v29 = vld [vmem:[%s1 + $0x14] sm:$0xf]
  %v30 = vld [vmem:[%s1 + $0x18] sm:$0xf]
  %v31 = vld [vmem:[%s1 + $0x1c] sm:$0xf]
  %v32 = vld [vmem:[%s1 + $0x20] sm:$0xf]
  %v33 = vld [vmem:[%s1 + $0x24] sm:$0xf]
  %v34 = vld [vmem:[%s1 + $0x28] sm:$0xf]
  %v35 = vld [vmem:[%s1 + $0x2c] sm:$0xf]
  %v36 = vld [vmem:[%s1 + $0x30] sm:$0xf]
  %v37 = vld [vmem:[%s1 + $0x34] sm:$0xf]
  %v38 = vld [vmem:[%s1 + $0x38] sm:$0xf]
  %v39 = vld [vmem:[%s1 + $0x3c] sm:$0xf]
  %v40 = vld [vmem:[%s1 + $0x40] sm:$0xf]
  %v41 = vld [vmem:[%s1 + $0x44] sm:$0xf]
  %v42 = vld [vmem:[%s1 + $0x48] sm:$0xf]
  %v43 = vld [vmem:[%s1 + $0x4c] sm:$0xf]
  %v44 = vld [vmem:[%s1 + $0x50] sm:$0xf]
  %v45 = vld [vmem:[%s1 + $0x54] sm:$0xf]
  %v46 = vld [vmem:[%s1 + $0x58] sm:$0xf]
  %v47 = vld [vmem:[%s1 + $0x5c] sm:$0xf]
  %v48 = vld [vmem:[%s1 + $0x60] sm:$0xf]
  %v49 = vld [vmem:[%s1 + $0x64] sm:$0xf]
  %v50 = vld [vmem:[%s1 + $0x68] sm:$0xf]
  %v51 = vld [vmem:[%s1 + $0x6c] sm:$0xf]
  %v52 = vld [vmem:[%s1 + $0x70] sm:$0xf]
  %v53 = vld [vmem:[%s1 + $0x74] sm:$0xf]
  %v54 = vld [vmem:[%s1 + $0x78] sm:$0xf]
  %v55 = vld [vmem:[%s1 + $0x7c] sm:$0xf]
  %v59 = vunpack.c.l.b16 %v21
  %v60 = vunpack.c.h.b16 %v21
  %v61 = vunpack.c.l.b16 %v22
  %v62 = vunpack.c.h.b16 %v22
  %v63 = vunpack.c.l.b16 %v23
  %v64 = vunpack.c.h.b16 %v23
  %v65 = vpack.c.b16 %v61, %v59
  %v66 = vpack.c.b16 %v62, %v60
  %v67 = vpack.c.b16 %v63, %v63
  %v68 = vpack.c.b16 %v64, %v64
  %v105 = vunpack.c.l.b16 %v24
  %v106 = vunpack.c.l.b16 %v25
  %v107 = vunpack.c.l.b16 %v26
  %v108 = vunpack.c.l.b16 %v27
  %v109 = vunpack.c.l.b16 %v28
  %v110 = vunpack.c.l.b16 %v29
  %v111 = vunpack.c.l.b16 %v30
  %v112 = vunpack.c.l.b16 %v31
  %v113 = vunpack.c.l.b16 %v32
  %v114 = vunpack.c.l.b16 %v33
  %v115 = vunpack.c.l.b16 %v34
  %v116 = vunpack.c.l.b16 %v35
  %v117 = vunpack.c.l.b16 %v36
  %v118 = vunpack.c.l.b16 %v37
  %v119 = vunpack.c.l.b16 %v38
  %v120 = vunpack.c.l.b16 %v39
  %v121 = vunpack.c.l.b16 %v40
  %v122 = vunpack.c.l.b16 %v41
  %v123 = vunpack.c.l.b16 %v42
  %v124 = vunpack.c.l.b16 %v43
  %v125 = vunpack.c.l.b16 %v44
  %v126 = vunpack.c.l.b16 %v45
  %v127 = vunpack.c.l.b16 %v46
  %v128 = vunpack.c.l.b16 %v47
  %v129 = vunpack.c.l.b16 %v48
  %v130 = vunpack.c.l.b16 %v49
  %v131 = vunpack.c.l.b16 %v50
  %v132 = vunpack.c.l.b16 %v51
  %v133 = vunpack.c.l.b16 %v52
  %v134 = vunpack.c.l.b16 %v53
  %v135 = vunpack.c.l.b16 %v54
  %v136 = vunpack.c.l.b16 %v55
  %v137 = vpack.c.b16 %v106, %v105
  %v138 = vpack.c.b16 %v108, %v107
  %v139 = vpack.c.b16 %v110, %v109
  %v140 = vpack.c.b16 %v112, %v111
  %v141 = vpack.c.b16 %v114, %v113
  %v142 = vpack.c.b16 %v116, %v115
  %v143 = vpack.c.b16 %v118, %v117
  %v144 = vpack.c.b16 %v120, %v119
  %v145 = vpack.c.b16 %v122, %v121
  %v146 = vpack.c.b16 %v124, %v123
  %v147 = vpack.c.b16 %v126, %v125
  %v148 = vpack.c.b16 %v128, %v127
  %v149 = vpack.c.b16 %v130, %v129
  %v150 = vpack.c.b16 %v132, %v131
  %v151 = vpack.c.b16 %v134, %v133
  %v152 = vpack.c.b16 %v136, %v135
  %169 = vmatpush.bf16.msra.mxu0 %v144
  %170 = vmatpush.bf16.msra.mxu0 %v143
  %171 = vmatpush.bf16.msra.mxu0 %v142
  %172 = vmatpush.bf16.msra.mxu0 %v141
  %173 = vmatpush.bf16.msra.mxu0 %v140
  %174 = vmatpush.bf16.msra.mxu0 %v139
  %175 = vmatpush.bf16.msra.mxu0 %v138
  %176 = vmatpush.bf16.msra.mxu0 %v137
  %177 = vmatmul.bf16.gmra.mxu0 %v65
  %v178 = vpop.f32.mrf.mxu0
  %v179 = vadd.f32 0.0, %v178
  %v180 = vpop.f32.mrf.mxu0
  %v181 = vadd.f32 0.0, %v180
  %182 = vmatmul.bf16.gmra.mxu0 %v67
  %v183 = vpop.f32.mrf.mxu0
  %v184 = vadd.f32 0.0, %v183
  %v185 = vpop.f32.mrf.mxu0
  %186 = vdwg.mxu0
  %187 = vmatpush.bf16.msra.mxu0 %v152
  %188 = vmatpush.bf16.msra.mxu0 %v151
  %189 = vmatpush.bf16.msra.mxu0 %v150
  %190 = vmatpush.bf16.msra.mxu0 %v149
  %191 = vmatpush.bf16.msra.mxu0 %v148
  %192 = vmatpush.bf16.msra.mxu0 %v147
  %193 = vmatpush.bf16.msra.mxu0 %v146
  %194 = vmatpush.bf16.msra.mxu0 %v145
  %195 = vmatmul.bf16.gmra.mxu0 %v66
  %v196 = vpop.f32.mrf.mxu0
  %v197 = vadd.f32 %v179, %v196
  %v198 = vpop.f32.mrf.mxu0
  %v199 = vadd.f32 %v181, %v198
  %200 = vmatmul.bf16.gmra.mxu0 %v68
  %v201 = vpop.f32.mrf.mxu0
  %v202 = vadd.f32 %v184, %v201
  %v203 = vpop.f32.mrf.mxu0
  %204 = vdwg.mxu0
  %v205 = vadd.f32 %v18, %v197
  %v206 = vadd.f32 %v19, %v199
  %v207 = vadd.f32 %v20, %v202
  %208 = vst [vmem:[#allocation2] sm:$0xff] %v205
  %209 = vst [vmem:[#allocation2 + $0x8] sm:$0xff] %v206
  %210 = vst [vmem:[#allocation2 + $0x10] sm:$0xff] %v207
  // Predicated region
  $region14: #{generator_forward.16} parent=0 // pred_check
    %p211 = pneg %p11
  $region15: #{generator_forward.16} parent=0 // pred_check_branch
    %213 = sbr.rel (%p211) target = $region17
  $region16: #{generator_forward.16} parent=0 // pred_region
    %v214 = vld [vmem:[#allocation2] sm:$0xff]
    %v215 = vld [vmem:[#allocation2 + $0x8] sm:$0xff]
    %v216 = vld [vmem:[#allocation2 + $0x10] sm:$0xff]
    %v217 = vpack.c.bf16 %v214, %v214
    %v218 = vpack.c.bf16 %v215, %v215
    %v219 = vpack.c.bf16 %v216, %v216
    %220 = vst [vmem:[%s2] sm:$0xf] %v217
    %221 = vst [vmem:[%s2 + $0x4] sm:$0xf] %v218
    %222 = vst [vmem:[%s2 + $0x8] sm:$0xf] %v219
  $region17: #{generator_forward.16} parent=0 // pred_fallthru
    _
  // Predicated region
  $region18: #{generator_forward.16} parent=0 // pred_check
    _
  $region19: #{generator_forward.16} parent=0 // pred_check_branch
    %224 = sbr.rel (0) target = $region21
  $region20: #{generator_forward.16} parent=0 // pred_region
    _
  $region21: #{generator_forward.16} parent=0 // pred_fallthru
    _
  // Predicated region
  $region22: #{generator_forward.16} parent=0 // pred_check
    _
  $region23: #{generator_forward.16} parent=0 // pred_check_branch
    %226 = sbr.rel (0) target = $region25
  $region24: #{generator_forward.16} parent=0 // pred_region
    _
  $region25: #{generator_forward.16} parent=0 // pred_fallthru
    _

// kernel: generator_forward.18
$region0: #{generator_forward.18}
  #allocation0 [shape = 'u32[]', space=smem, size = 0x4, offset = 0x4, fixed_abs, tag = 'smem constant byte address 0x4 - core index']
  #allocation1 [shape = 'u32[72,128]{1,0:T(1,128)}', space=vmem, size = 0x9000, scoped, tag = 'internal scratch']
  %s0 = inlined_call_operand.vmem [shape: bf16[32,32], index: 0, kind: input, shape index: {}]
  %s1 = inlined_call_operand.vmem [shape: f32[1,32], index: 1, kind: input, shape index: {}]
  %s2 = inlined_call_operand.vmem [shape: f32[1,32], index: 2, kind: input, shape index: {}]
  %s3 = inlined_call_operand.vmem [shape: f32[1,32], index: 3, kind: input, shape index: {}]
  %s4 = inlined_call_operand.vmem [shape: f32[1,32], index: 4, kind: input, shape index: {}]
  %s5 = inlined_call_operand.vmem [shape: bf16[32,32], index: 5, kind: output, shape index: {}]
  %s6 = sld [smem:[#allocation0]]
  $region30: #{generator_forward.18} parent=0
    _
  %s8 = ssub.s32 1, %s6
  %s9 = scalar_select 0, %s8, %s6
  // Predicated region
  $region2: #{generator_forward.18} parent=0 // pred_check
    _
  $region3: #{generator_forward.18} parent=0 // pred_check_branch
    %11 = sbr.rel (0) target = $region5
  $region4: #{generator_forward.18} parent=0 // pred_region
    _
  $region5: #{generator_forward.18} parent=0 // pred_fallthru
    _
  // Predicated region
  $region6: #{generator_forward.18} parent=0 // pred_check
    _
  $region7: #{generator_forward.18} parent=0 // pred_check_branch
    %13 = sbr.rel (0) target = $region9
  $region8: #{generator_forward.18} parent=0 // pred_region
    _
  $region9: #{generator_forward.18} parent=0 // pred_fallthru
    _
  // Predicated region
  $region10: #{generator_forward.18} parent=0 // pred_check
    _
  $region11: #{generator_forward.18} parent=0 // pred_check_branch
    %15 = sbr.rel (0) target = $region13
  $region12: #{generator_forward.18} parent=0 // pred_region
    _
  $region13: #{generator_forward.18} parent=0 // pred_fallthru
    _
  // Predicated region
  $region14: #{generator_forward.18} parent=0 // pred_check
    _
  $region15: #{generator_forward.18} parent=0 // pred_check_branch
    %17 = sbr.rel (0) target = $region17
  $region16: #{generator_forward.18} parent=0 // pred_region
    _
  $region17: #{generator_forward.18} parent=0 // pred_fallthru
    _
  // Predicated region
  $region18: #{generator_forward.18} parent=0 // pred_check
    _
  $region19: #{generator_forward.18} parent=0 // pred_check_branch
    %19 = sbr.rel (0) target = $region21
  $region20: #{generator_forward.18} parent=0 // pred_region
    _
  $region21: #{generator_forward.18} parent=0 // pred_fallthru
    _
  %v20 = vld [vmem:[%s0] sm:$0xf]
  %v21 = vld [vmem:[%s0 + $0x4] sm:$0xf]
  %v22 = vld [vmem:[%s0 + $0x8] sm:$0xf]
  %v23 = vld [vmem:[%s0 + $0xc] sm:$0xf]
  %v24 = vunpack.c.l.bf16 %v20
  %v25 = vunpack.c.l.bf16 %v21
  %v26 = vunpack.c.l.bf16 %v22
  %v27 = vunpack.c.l.bf16 %v23
  %v28 = vld [vmem:[%s1] sm:$0x1]
  %v29 = vmul.f32 %v28, 0.03125
  %v30 = vld [vmem:[%s2] sm:$0x1]
  %v31 = vmul.f32 %v30, 0.03125
  %v32 = vmul.f32 %v29, %v29
  %v33 = vsub.f32 %v31, %v32
  %v34 = vmax.f32 %v33, 0.0
  %v35 = vld [vmem:[%s3] sm:$0x1]
  %v36 = vadd.f32 %v34, 1e-05
  %v37 = vrsqrt.pop %v36
  %v38 = vmul.f32 %v37, %v36
  %v39 = vmul.f32 %v38, %v37
  %v40 = vmul.f32 0.5, %v39
  %v41 = vsub.f32 1.5, %v40
  %v42 = vmul.f32 %v37, %v41
  %vm43 = vweird.f32 %v36
  %vm44 = vweird.f32 %v37
  %vm45 = vmor %vm43, %vm44
  %v46 = vsel %vm45, %v37, %v42
  %v47 = vmul.f32 %v35, %v46
  %v48 = vld [vmem:[%s4] sm:$0x1]
  %v49 = vmul.f32 %v29, %v47
  %v50 = vsub.f32 %v48, %v49
  %v52 = vperm.slane %v47, 0
  %v54 = vmul.f32 %v24, %v52
  %v55 = vmul.f32 %v25, %v52
  %v56 = vmul.f32 %v26, %v52
  %v57 = vmul.f32 %v27, %v52
  %v59 = vperm.slane %v50, 0
  %v61 = vadd.f32 %v54, %v59
  %v62 = vadd.f32 %v55, %v59
  %v63 = vadd.f32 %v56, %v59
  %v64 = vadd.f32 %v57, %v59
  %v65 = vmax.f32 %v61, 0.0
  %v66 = vmax.f32 %v62, 0.0
  %v67 = vmax.f32 %v63, 0.0
  %v68 = vmax.f32 %v64, 0.0
  %v69 = vpack.c.bf16 %v65, %v65
  %v70 = vpack.c.bf16 %v66, %v66
  %v71 = vpack.c.bf16 %v67, %v67
  %v72 = vpack.c.bf16 %v68, %v68
  %vm73 = vcmask 257024
  %74 = vst.msk [vmem:[%s5] sm:$0xf] %vm73, %v69
  %75 = vst.msk [vmem:[%s5 + $0x4] sm:$0xf] %vm73, %v70
  %76 = vst.msk [vmem:[%s5 + $0x8] sm:$0xf] %vm73, %v71
  %77 = vst.msk [vmem:[%s5 + $0xc] sm:$0xf] %vm73, %v72
  // Predicated region
  $region22: #{generator_forward.18} parent=0 // pred_check
    _
  $region23: #{generator_forward.18} parent=0 // pred_check_branch
    %79 = sbr.rel (0) target = $region25
  $region24: #{generator_forward.18} parent=0 // pred_region
    _
  $region25: #{generator_forward.18} parent=0 // pred_fallthru
    _
  // Predicated region
  $region26: #{generator_forward.18} parent=0 // pred_check
    _
  $region27: #{generator_forward.18} parent=0 // pred_check_branch
    %81 = sbr.rel (0) target = $region29
  $region28: #{generator_forward.18} parent=0 // pred_region
    _
  $region29: #{generator_forward.18} parent=0 // pred_fallthru
    _

// kernel: generator_forward.17
$region0: #{generator_forward.17}
  #allocation0 [shape = 'u32[]', space=smem, size = 0x4, offset = 0x4, fixed_abs, tag = 'smem constant byte address 0x4 - core index']
  #allocation1 [shape = 'u32[72,128]{1,0:T(1,128)}', space=vmem, size = 0x9000, scoped, tag = 'internal scratch']
  %s0 = inlined_call_operand.vmem [shape: bf16[32,32], index: 0, kind: input, shape index: {}]
  %s1 = inlined_call_operand.vmem [shape: f32[1,32], index: 1, kind: output, shape index: {0}]
  %s2 = inlined_call_operand.vmem [shape: f32[1,32], index: 2, kind: output, shape index: {1}]
  %3 = xla_tuple %s1, %s2
  %s4 = sld [smem:[#allocation0]]
  $region26: #{generator_forward.17} parent=0
    _
  %s6 = ssub.s32 1, %s4
  %s7 = scalar_select 0, %s6, %s4
  // Predicated region
  $region2: #{generator_forward.17} parent=0 // pred_check
    _
  $region3: #{generator_forward.17} parent=0 // pred_check_branch
    %9 = sbr.rel (0) target = $region5
  $region4: #{generator_forward.17} parent=0 // pred_region
    _
  $region5: #{generator_forward.17} parent=0 // pred_fallthru
    _
  %p10 = scmp.eq.s32.totalorder 0, 0
  // Predicated region
  $region6: #{generator_forward.17} parent=0 // pred_check
    %p11 = pneg %p10
  $region7: #{generator_forward.17} parent=0 // pred_check_branch
    %13 = sbr.rel (%p11) target = $region9
  $region8: #{generator_forward.17} parent=0 // pred_region
    %vm14 = vcmask 253952
    %15 = vst.msk [vmem:[%s1] sm:$0x1] %vm14, 0.0
    %16 = vst.msk [vmem:[%s2] sm:$0x1] %vm14, 0.0
  $region9: #{generator_forward.17} parent=0 // pred_fallthru
    _
  %v17 = vld [vmem:[%s0] sm:$0xf]
  %v18 = vld [vmem:[%s0 + $0x4] sm:$0xf]
  %v19 = vld [vmem:[%s0 + $0x8] sm:$0xf]
  %v20 = vld [vmem:[%s0 + $0xc] sm:$0xf]
  %v21 = vunpack.c.l.bf16 %v17
  %v22 = vunpack.c.l.bf16 %v18
  %v23 = vunpack.c.l.bf16 %v19
  %v24 = vunpack.c.l.bf16 %v20
  %v25 = vld [vmem:[%s1] sm:$0x1]
  %vm26 = vcmask 261120
  %v27 = vsel %vm26, %v21, 0.0
  %v28 = vsel %vm26, %v22, 0.0
  %v29 = vadd.f32 %v27, %v28
  %v30 = vsel %vm26, %v23, 0.0
  %v31 = vadd.f32 %v29, %v30
  %v32 = vsel %vm26, %v24, 0.0
  %v33 = vadd.f32 %v31, %v32
  %v34 = vrot.slane %v33, 4
  %v35 = vadd.f32 %v33, %v34
  %v36 = vrot.slane %v35, 2
  %v37 = vadd.f32 %v35, %v36
  %v38 = vrot.slane %v37, 1
  %v39 = vadd.f32 %v37, %v38
  %v40 = vadd.f32 %v25, %v39
  %vm41 = vcmask 253952
  %42 = vst.msk [vmem:[%s1] sm:$0x1] %vm41, %v40
  %v43 = vld [vmem:[%s2] sm:$0x1]
  %v44 = vmul.f32 %v21, %v21
  %v45 = vmul.f32 %v22, %v22
  %v46 = vmul.f32 %v23, %v23
  %v47 = vmul.f32 %v24, %v24
  %v48 = vsel %vm26, %v44, 0.0
  %v49 = vsel %vm26, %v45, 0.0
  %v50 = vadd.f32 %v48, %v49
  %v51 = vsel %vm26, %v46, 0.0
  %v52 = vadd.f32 %v50, %v51
  %v53 = vsel %vm26, %v47, 0.0
  %v54 = vadd.f32 %v52, %v53
  %v55 = vrot.slane %v54, 4
  %v56 = vadd.f32 %v54, %v55
  %v57 = vrot.slane %v56, 2
  %v58 = vadd.f32 %v56, %v57
  %v59 = vrot.slane %v58, 1
  %v60 = vadd.f32 %v58, %v59
  %v61 = vadd.f32 %v43, %v60
  %62 = vst.msk [vmem:[%s2] sm:$0x1] %vm41, %v61
  // Predicated region
  $region10: #{generator_forward.17} parent=0 // pred_check
    _
  $region11: #{generator_forward.17} parent=0 // pred_check_branch
    %64 = sbr.rel (0) target = $region13
  $region12: #{generator_forward.17} parent=0 // pred_region
    _
  $region13: #{generator_forward.17} parent=0 // pred_fallthru
    _
  // Predicated region
  $region14: #{generator_forward.17} parent=0 // pred_check
    _
  $region15: #{generator_forward.17} parent=0 // pred_check_branch
    %66 = sbr.rel (0) target = $region17
  $region16: #{generator_forward.17} parent=0 // pred_region
    _
  $region17: #{generator_forward.17} parent=0 // pred_fallthru
    _
  // Predicated region
  $region18: #{generator_forward.17} parent=0 // pred_check
    _
  $region19: #{generator_forward.17} parent=0 // pred_check_branch
    %68 = sbr.rel (0) target = $region21
  $region20: #{generator_forward.17} parent=0 // pred_region
    _
  $region21: #{generator_forward.17} parent=0 // pred_fallthru
    _
  // Predicated region
  $region22: #{generator_forward.17} parent=0 // pred_check
    _
  $region23: #{generator_forward.17} parent=0 // pred_check_branch
    %70 = sbr.rel (0) target = $region25
  $region24: #{generator_forward.17} parent=0 // pred_region
    _
  $region25: #{generator_forward.17} parent=0 // pred_fallthru
    _

// kernel: generator_forward.19
$region0: #{generator_forward.19}
  #allocation0 [shape = 'u32[]', space=smem, size = 0x4, offset = 0x4, fixed_abs, tag = 'smem constant byte address 0x4 - core index']
  #allocation1 [shape = 'u32[72,128]{1,0:T(1,128)}', space=vmem, size = 0x9000, scoped, tag = 'internal scratch']
  #allocation2 [shape = 'f32[56,64]{1,0:T(8,128)}', space=vmem, size = 0x7000, scoped, tag = 'scratch operand']
  %s0 = inlined_call_operand.vmem [shape: bf16[56,128], index: 0, kind: input, shape index: {}]
  %s1 = inlined_call_operand.vmem [shape: bf16[128,64], index: 1, kind: input, shape index: {}]
  %s2 = inlined_call_operand.vmem [shape: bf16[56,64], index: 2, kind: output, shape index: {}]
  %s3 = sld [smem:[#allocation0]]
  $region26: #{generator_forward.19} parent=0
    _
  %s5 = ssub.s32 1, %s3
  %s6 = scalar_select 0, %s5, %s3
  // Predicated region
  $region2: #{generator_forward.19} parent=0 // pred_check
    _
  $region3: #{generator_forward.19} parent=0 // pred_check_branch
    %8 = sbr.rel (0) target = $region5
  $region4: #{generator_forward.19} parent=0 // pred_region
    _
  $region5: #{generator_forward.19} parent=0 // pred_fallthru
    _
  // Predicated region
  $region6: #{generator_forward.19} parent=0 // pred_check
    _
  $region7: #{generator_forward.19} parent=0 // pred_check_branch
    %10 = sbr.rel (0) target = $region9
  $region8: #{generator_forward.19} parent=0 // pred_region
    _
  $region9: #{generator_forward.19} parent=0 // pred_fallthru
    _
  %p11 = scmp.eq.s32.totalorder 0, 0
  // Predicated region
  $region10: #{generator_forward.19} parent=0 // pred_check
    %p12 = pneg %p11
  $region11: #{generator_forward.19} parent=0 // pred_check_branch
    %14 = sbr.rel (%p12) target = $region13
  $region12: #{generator_forward.19} parent=0 // pred_region
    %vm15 = vcmask 523264
    %16 = vst.msk [vmem:[#allocation2] sm:$0xff] %vm15, 0.0
    %17 = vst.msk [vmem:[#allocation2 + $0x8] sm:$0xff] %vm15, 0.0
    %18 = vst.msk [vmem:[#allocation2 + $0x10] sm:$0xff] %vm15, 0.0
    %19 = vst.msk [vmem:[#allocation2 + $0x18] sm:$0xff] %vm15, 0.0
    %20 = vst.msk [vmem:[#allocation2 + $0x20] sm:$0xff] %vm15, 0.0
    %21 = vst.msk [vmem:[#allocation2 + $0x28] sm:$0xff] %vm15, 0.0
    %22 = vst.msk [vmem:[#allocation2 + $0x30] sm:$0xff] %vm15, 0.0
  $region13: #{generator_forward.19} parent=0 // pred_fallthru
    _
  %v23 = vld [vmem:[#allocation2] sm:$0xff]
  %v24 = vld [vmem:[#allocation2 + $0x8] sm:$0xff]
  %v25 = vld [vmem:[#allocation2 + $0x10] sm:$0xff]
  %v26 = vld [vmem:[#allocation2 + $0x18] sm:$0xff]
  %v27 = vld [vmem:[#allocation2 + $0x20] sm:$0xff]
  %v28 = vld [vmem:[#allocation2 + $0x28] sm:$0xff]
  %v29 = vld [vmem:[#allocation2 + $0x30] sm:$0xff]
  %v30 = vld [vmem:[%s0] sm:$0xf]
  %v31 = vld [vmem:[%s0 + $0x4] sm:$0xf]
  %v32 = vld [vmem:[%s0 + $0x8] sm:$0xf]
  %v33 = vld [vmem:[%s0 + $0xc] sm:$0xf]
  %v34 = vld [vmem:[%s0 + $0x10] sm:$0xf]
  %v35 = vld [vmem:[%s0 + $0x14] sm:$0xf]
  %v36 = vld [vmem:[%s0 + $0x18] sm:$0xf]
  %v37 = vld [vmem:[%s1] sm:$0xf]
  %v38 = vld [vmem:[%s1 + $0x4] sm:$0xf]
  %v39 = vld [vmem:[%s1 + $0x8] sm:$0xf]
  %v40 = vld [vmem:[%s1 + $0xc] sm:$0xf]
  %v41 = vld [vmem:[%s1 + $0x10] sm:$0xf]
  %v42 = vld [vmem:[%s1 + $0x14] sm:$0xf]
  %v43 = vld [vmem:[%s1 + $0x18] sm:$0xf]
  %v44 = vld [vmem:[%s1 + $0x1c] sm:$0xf]
  %v45 = vld [vmem:[%s1 + $0x20] sm:$0xf]
  %v46 = vld [vmem:[%s1 + $0x24] sm:$0xf]
  %v47 = vld [vmem:[%s1 + $0x28] sm:$0xf]
  %v48 = vld [vmem:[%s1 + $0x2c] sm:$0xf]
  %v49 = vld [vmem:[%s1 + $0x30] sm:$0xf]
  %v50 = vld [vmem:[%s1 + $0x34] sm:$0xf]
  %v51 = vld [vmem:[%s1 + $0x38] sm:$0xf]
  %v52 = vld [vmem:[%s1 + $0x3c] sm:$0xf]
  %v60 = vunpack.c.l.b16 %v30
  %v61 = vunpack.c.l.b16 %v31
  %v62 = vunpack.c.l.b16 %v32
  %v63 = vunpack.c.l.b16 %v33
  %v64 = vunpack.c.l.b16 %v34
  %v65 = vunpack.c.l.b16 %v35
  %v66 = vunpack.c.l.b16 %v36
  %v67 = vpack.c.b16 %v61, %v60
  %v68 = vpack.c.b16 %v63, %v62
  %v69 = vpack.c.b16 %v65, %v64
  %v70 = vpack.c.b16 %v66, %v66
  %v91 = vunpack.c.l.b16 %v37
  %v92 = vunpack.c.l.b16 %v38
  %v93 = vunpack.c.l.b16 %v39
  %v94 = vunpack.c.l.b16 %v40
  %v95 = vunpack.c.l.b16 %v41
  %v96 = vunpack.c.l.b16 %v42
  %v97 = vunpack.c.l.b16 %v43
  %v98 = vunpack.c.l.b16 %v44
  %v99 = vunpack.c.l.b16 %v45
  %v100 = vunpack.c.l.b16 %v46
  %v101 = vunpack.c.l.b16 %v47
  %v102 = vunpack.c.l.b16 %v48
  %v103 = vunpack.c.l.b16 %v49
  %v104 = vunpack.c.l.b16 %v50
  %v105 = vunpack.c.l.b16 %v51
  %v106 = vunpack.c.l.b16 %v52
  %v107 = vpack.c.b16 %v92, %v91
  %v108 = vpack.c.b16 %v94, %v93
  %v109 = vpack.c.b16 %v96, %v95
  %v110 = vpack.c.b16 %v98, %v97
  %v111 = vpack.c.b16 %v100, %v99
  %v112 = vpack.c.b16 %v102, %v101
  %v113 = vpack.c.b16 %v104, %v103
  %v114 = vpack.c.b16 %v106, %v105
  %123 = vmatpush.bf16.msra.mxu0 %v114
  %124 = vmatpush.bf16.msra.mxu0 %v113
  %125 = vmatpush.bf16.msra.mxu0 %v112
  %126 = vmatpush.bf16.msra.mxu0 %v111
  %127 = vmatpush.bf16.msra.mxu0 %v110
  %128 = vmatpush.bf16.msra.mxu0 %v109
  %129 = vmatpush.bf16.msra.mxu0 %v108
  %130 = vmatpush.bf16.msra.mxu0 %v107
  %131 = vmatmul.bf16.gmra.mxu0 %v67
  %v132 = vpop.f32.mrf.mxu0
  %v133 = vadd.f32 0.0, %v132
  %v134 = vpop.f32.mrf.mxu0
  %v135 = vadd.f32 0.0, %v134
  %136 = vmatmul.bf16.gmra.mxu0 %v68
  %v137 = vpop.f32.mrf.mxu0
  %v138 = vadd.f32 0.0, %v137
  %v139 = vpop.f32.mrf.mxu0
  %v140 = vadd.f32 0.0, %v139
  %141 = vmatmul.bf16.gmra.mxu0 %v69
  %v142 = vpop.f32.mrf.mxu0
  %v143 = vadd.f32 0.0, %v142
  %v144 = vpop.f32.mrf.mxu0
  %v145 = vadd.f32 0.0, %v144
  %146 = vmatmul.bf16.gmra.mxu0 %v70
  %v147 = vpop.f32.mrf.mxu0
  %v148 = vadd.f32 0.0, %v147
  %v149 = vpop.f32.mrf.mxu0
  %150 = vdwg.mxu0
  %v151 = vadd.f32 %v23, %v133
  %v152 = vadd.f32 %v24, %v135
  %v153 = vadd.f32 %v25, %v138
  %v154 = vadd.f32 %v26, %v140
  %v155 = vadd.f32 %v27, %v143
  %v156 = vadd.f32 %v28, %v145
  %v157 = vadd.f32 %v29, %v148
  %vm158 = vcmask 523264
  %159 = vst.msk [vmem:[#allocation2] sm:$0xff] %vm158, %v151
  %160 = vst.msk [vmem:[#allocation2 + $0x8] sm:$0xff] %vm158, %v152
  %161 = vst.msk [vmem:[#allocation2 + $0x10] sm:$0xff] %vm158, %v153
  %162 = vst.msk [vmem:[#allocation2 + $0x18] sm:$0xff] %vm158, %v154
  %163 = vst.msk [vmem:[#allocation2 + $0x20] sm:$0xff] %vm158, %v155
  %164 = vst.msk [vmem:[#allocation2 + $0x28] sm:$0xff] %vm158, %v156
  %165 = vst.msk [vmem:[#allocation2 + $0x30] sm:$0xff] %vm158, %v157
  // Predicated region
  $region14: #{generator_forward.19} parent=0 // pred_check
    %p166 = pneg %p11
  $region15: #{generator_forward.19} parent=0 // pred_check_branch
    %168 = sbr.rel (%p166) target = $region17
  $region16: #{generator_forward.19} parent=0 // pred_region
    %v169 = vld [vmem:[#allocation2] sm:$0xff]
    %v170 = vld [vmem:[#allocation2 + $0x8] sm:$0xff]
    %v171 = vld [vmem:[#allocation2 + $0x10] sm:$0xff]
    %v172 = vld [vmem:[#allocation2 + $0x18] sm:$0xff]
    %v173 = vld [vmem:[#allocation2 + $0x20] sm:$0xff]
    %v174 = vld [vmem:[#allocation2 + $0x28] sm:$0xff]
    %v175 = vld [vmem:[#allocation2 + $0x30] sm:$0xff]
    %v176 = vpack.c.bf16 %v169, %v169
    %v177 = vpack.c.bf16 %v170, %v170
    %v178 = vpack.c.bf16 %v171, %v171
    %v179 = vpack.c.bf16 %v172, %v172
    %v180 = vpack.c.bf16 %v173, %v173
    %v181 = vpack.c.bf16 %v174, %v174
    %v182 = vpack.c.bf16 %v175, %v175
    %vm183 = vcmask 519168
    %184 = vst.msk [vmem:[%s2] sm:$0xf] %vm183, %v176
    %185 = vst.msk [vmem:[%s2 + $0x4] sm:$0xf] %vm183, %v177
    %186 = vst.msk [vmem:[%s2 + $0x8] sm:$0xf] %vm183, %v178
    %187 = vst.msk [vmem:[%s2 + $0xc] sm:$0xf] %vm183, %v179
    %188 = vst.msk [vmem:[%s2 + $0x10] sm:$0xf] %vm183, %v180
    %189 = vst.msk [vmem:[%s2 + $0x14] sm:$0xf] %vm183, %v181
    %190 = vst.msk [vmem:[%s2 + $0x18] sm:$0xf] %vm183, %v182
  $region17: #{generator_forward.19} parent=0 // pred_fallthru
    _
  // Predicated region
  $region18: #{generator_forward.19} parent=0 // pred_check
    _
  $region19: #{generator_forward.19} parent=0 // pred_check_branch
    %192 = sbr.rel (0) target = $region21
  $region20: #{generator_forward.19} parent=0 // pred_region
    _
  $region21: #{generator_forward.19} parent=0 // pred_fallthru
    _
  // Predicated region
  $region22: #{generator_forward.19} parent=0 // pred_check
    _
  $region23: #{generator_forward.19} parent=0 // pred_check_branch
    %194 = sbr.rel (0) target = $region25
  $region24: #{generator_forward.19} parent=0 // pred_region
    _
  $region25: #{generator_forward.19} parent=0 // pred_fallthru
    _

// kernel: generator_forward.20
$region0: #{generator_forward.20}
  #allocation0 [shape = 'u32[]', space=smem, size = 0x4, offset = 0x4, fixed_abs, tag = 'smem constant byte address 0x4 - core index']
  #allocation1 [shape = 'u32[72,128]{1,0:T(1,128)}', space=vmem, size = 0x9000, scoped, tag = 'internal scratch']
  %s0 = inlined_call_operand.vmem [shape: bf16[128,16], index: 0, kind: input, shape index: {}]
  %s1 = inlined_call_operand.vmem [shape: f32[1,16], index: 1, kind: output, shape index: {0}]
  %s2 = inlined_call_operand.vmem [shape: f32[1,16], index: 2, kind: output, shape index: {1}]
  %3 = xla_tuple %s1, %s2
  %s4 = sld [smem:[#allocation0]]
  $region26: #{generator_forward.20} parent=0
    _
  %s6 = ssub.s32 1, %s4
  %s7 = scalar_select 0, %s6, %s4
  // Predicated region
  $region2: #{generator_forward.20} parent=0 // pred_check
    _
  $region3: #{generator_forward.20} parent=0 // pred_check_branch
    %9 = sbr.rel (0) target = $region5
  $region4: #{generator_forward.20} parent=0 // pred_region
    _
  $region5: #{generator_forward.20} parent=0 // pred_fallthru
    _
  %p10 = scmp.eq.s32.totalorder 0, 0
  // Predicated region
  $region6: #{generator_forward.20} parent=0 // pred_check
    %p11 = pneg %p10
  $region7: #{generator_forward.20} parent=0 // pred_check_branch
    %13 = sbr.rel (%p11) target = $region9
  $region8: #{generator_forward.20} parent=0 // pred_region
    %vm14 = vcmask 122880
    %15 = vst.msk [vmem:[%s1] sm:$0x1] %vm14, 0.0
    %16 = vst.msk [vmem:[%s2] sm:$0x1] %vm14, 0.0
  $region9: #{generator_forward.20} parent=0 // pred_fallthru
    _
  %v17 = vld [vmem:[%s0] sm:$0xf]
  %v18 = vld [vmem:[%s0 + $0x4] sm:$0xf]
  %v19 = vld [vmem:[%s0 + $0x8] sm:$0xf]
  %v20 = vld [vmem:[%s0 + $0xc] sm:$0xf]
  %v21 = vld [vmem:[%s0 + $0x10] sm:$0xf]
  %v22 = vld [vmem:[%s0 + $0x14] sm:$0xf]
  %v23 = vld [vmem:[%s0 + $0x18] sm:$0xf]
  %v24 = vld [vmem:[%s0 + $0x1c] sm:$0xf]
  %v25 = vld [vmem:[%s0 + $0x20] sm:$0xf]
  %v26 = vld [vmem:[%s0 + $0x24] sm:$0xf]
  %v27 = vld [vmem:[%s0 + $0x28] sm:$0xf]
  %v28 = vld [vmem:[%s0 + $0x2c] sm:$0xf]
  %v29 = vld [vmem:[%s0 + $0x30] sm:$0xf]
  %v30 = vld [vmem:[%s0 + $0x34] sm:$0xf]
  %v31 = vld [vmem:[%s0 + $0x38] sm:$0xf]
  %v32 = vld [vmem:[%s0 + $0x3c] sm:$0xf]
  %v33 = vunpack.c.l.bf16 %v17
  %v34 = vunpack.c.l.bf16 %v18
  %v35 = vunpack.c.l.bf16 %v19
  %v36 = vunpack.c.l.bf16 %v20
  %v37 = vunpack.c.l.bf16 %v21
  %v38 = vunpack.c.l.bf16 %v22
  %v39 = vunpack.c.l.bf16 %v23
  %v40 = vunpack.c.l.bf16 %v24
  %v41 = vunpack.c.l.bf16 %v25
  %v42 = vunpack.c.l.bf16 %v26
  %v43 = vunpack.c.l.bf16 %v27
  %v44 = vunpack.c.l.bf16 %v28
  %v45 = vunpack.c.l.bf16 %v29
  %v46 = vunpack.c.l.bf16 %v30
  %v47 = vunpack.c.l.bf16 %v31
  %v48 = vunpack.c.l.bf16 %v32
  %v49 = vld [vmem:[%s1] sm:$0x1]
  %vm50 = vcmask 130048
  %v51 = vsel %vm50, %v33, 0.0
  %v52 = vsel %vm50, %v34, 0.0
  %v53 = vadd.f32 %v51, %v52
  %v54 = vsel %vm50, %v35, 0.0
  %v55 = vadd.f32 %v53, %v54
  %v56 = vsel %vm50, %v36, 0.0
  %v57 = vadd.f32 %v55, %v56
  %v58 = vsel %vm50, %v37, 0.0
  %v59 = vadd.f32 %v57, %v58
  %v60 = vsel %vm50, %v38, 0.0
  %v61 = vadd.f32 %v59, %v60
  %v62 = vsel %vm50, %v39, 0.0
  %v63 = vadd.f32 %v61, %v62
  %v64 = vsel %vm50, %v40, 0.0
  %v65 = vadd.f32 %v63, %v64
  %v66 = vsel %vm50, %v41, 0.0
  %v67 = vadd.f32 %v65, %v66
  %v68 = vsel %vm50, %v42, 0.0
  %v69 = vadd.f32 %v67, %v68
  %v70 = vsel %vm50, %v43, 0.0
  %v71 = vadd.f32 %v69, %v70
  %v72 = vsel %vm50, %v44, 0.0
  %v73 = vadd.f32 %v71, %v72
  %v74 = vsel %vm50, %v45, 0.0
  %v75 = vadd.f32 %v73, %v74
  %v76 = vsel %vm50, %v46, 0.0
  %v77 = vadd.f32 %v75, %v76
  %v78 = vsel %vm50, %v47, 0.0
  %v79 = vadd.f32 %v77, %v78
  %v80 = vsel %vm50, %v48, 0.0
  %v81 = vadd.f32 %v79, %v80
  %v82 = vrot.slane %v81, 4
  %v83 = vadd.f32 %v81, %v82
  %v84 = vrot.slane %v83, 2
  %v85 = vadd.f32 %v83, %v84
  %v86 = vrot.slane %v85, 1
  %v87 = vadd.f32 %v85, %v86
  %v88 = vadd.f32 %v49, %v87
  %vm89 = vcmask 122880
  %90 = vst.msk [vmem:[%s1] sm:$0x1] %vm89, %v88
  %v91 = vld [vmem:[%s2] sm:$0x1]
  %v92 = vmul.f32 %v33, %v33
  %v93 = vmul.f32 %v34, %v34
  %v94 = vmul.f32 %v35, %v35
  %v95 = vmul.f32 %v36, %v36
  %v96 = vmul.f32 %v37, %v37
  %v97 = vmul.f32 %v38, %v38
  %v98 = vmul.f32 %v39, %v39
  %v99 = vmul.f32 %v40, %v40
  %v100 = vmul.f32 %v41, %v41
  %v101 = vmul.f32 %v42, %v42
  %v102 = vmul.f32 %v43, %v43
  %v103 = vmul.f32 %v44, %v44
  %v104 = vmul.f32 %v45, %v45
  %v105 = vmul.f32 %v46, %v46
  %v106 = vmul.f32 %v47, %v47
  %v107 = vmul.f32 %v48, %v48
  %v108 = vsel %vm50, %v92, 0.0
  %v109 = vsel %vm50, %v93, 0.0
  %v110 = vadd.f32 %v108, %v109
  %v111 = vsel %vm50, %v94, 0.0
  %v112 = vadd.f32 %v110, %v111
  %v113 = vsel %vm50, %v95, 0.0
  %v114 = vadd.f32 %v112, %v113
  %v115 = vsel %vm50, %v96, 0.0
  %v116 = vadd.f32 %v114, %v115
  %v117 = vsel %vm50, %v97, 0.0
  %v118 = vadd.f32 %v116, %v117
  %v119 = vsel %vm50, %v98, 0.0
  %v120 = vadd.f32 %v118, %v119
  %v121 = vsel %vm50, %v99, 0.0
  %v122 = vadd.f32 %v120, %v121
  %v123 = vsel %vm50, %v100, 0.0
  %v124 = vadd.f32 %v122, %v123
  %v125 = vsel %vm50, %v101, 0.0
  %v126 = vadd.f32 %v124, %v125
  %v127 = vsel %vm50, %v102, 0.0
  %v128 = vadd.f32 %v126, %v127
  %v129 = vsel %vm50, %v103, 0.0
  %v130 = vadd.f32 %v128, %v129
  %v131 = vsel %vm50, %v104, 0.0
  %v132 = vadd.f32 %v130, %v131
  %v133 = vsel %vm50, %v105, 0.0
  %v134 = vadd.f32 %v132, %v133
  %v135 = vsel %vm50, %v106, 0.0
  %v136 = vadd.f32 %v134, %v135
  %v137 = vsel %vm50, %v107, 0.0
  %v138 = vadd.f32 %v136, %v137
  %v139 = vrot.slane %v138, 4
  %v140 = vadd.f32 %v138, %v139
  %v141 = vrot.slane %v140, 2
  %v142 = vadd.f32 %v140, %v141
  %v143 = vrot.slane %v142, 1
  %v144 = vadd.f32 %v142, %v143
  %v145 = vadd.f32 %v91, %v144
  %146 = vst.msk [vmem:[%s2] sm:$0x1] %vm89, %v145
  // Predicated region
  $region10: #{generator_forward.20} parent=0 // pred_check
    _
  $region11: #{generator_forward.20} parent=0 // pred_check_branch
    %148 = sbr.rel (0) target = $region13
  $region12: #{generator_forward.20} parent=0 // pred_region
    _
  $region13: #{generator_forward.20} parent=0 // pred_fallthru
    _
  // Predicated region
  $region14: #{generator_forward.20} parent=0 // pred_check
    _
  $region15: #{generator_forward.20} parent=0 // pred_check_branch
    %150 = sbr.rel (0) target = $region17
  $region16: #{generator_forward.20} parent=0 // pred_region
    _
  $region17: #{generator_forward.20} parent=0 // pred_fallthru
    _
  // Predicated region
  $region18: #{generator_forward.20} parent=0 // pred_check
    _
  $region19: #{generator_forward.20} parent=0 // pred_check_branch
    %152 = sbr.rel (0) target = $region21
  $region20: #{generator_forward.20} parent=0 // pred_region
    _
  $region21: #{generator_forward.20} parent=0 // pred_fallthru
    _
  // Predicated region
  $region22: #{generator_forward.20} parent=0 // pred_check
    _
  $region23: #{generator_forward.20} parent=0 // pred_check_branch
    %154 = sbr.rel (0) target = $region25
  $region24: #{generator_forward.20} parent=0 // pred_region
    _
  $region25: #{generator_forward.20} parent=0 // pred_fallthru
    _

// kernel: generator_forward.21
$region0: #{generator_forward.21}
  #allocation0 [shape = 'u32[]', space=smem, size = 0x4, offset = 0x4, fixed_abs, tag = 'smem constant byte address 0x4 - core index']
  #allocation1 [shape = 'u32[72,128]{1,0:T(1,128)}', space=vmem, size = 0x9000, scoped, tag = 'internal scratch']
  %s0 = inlined_call_operand.vmem [shape: bf16[128,16], index: 0, kind: input, shape index: {}]
  %s1 = inlined_call_operand.vmem [shape: f32[1,16], index: 1, kind: input, shape index: {}]
  %s2 = inlined_call_operand.vmem [shape: f32[1,16], index: 2, kind: input, shape index: {}]
  %s3 = inlined_call_operand.vmem [shape: f32[1,16], index: 3, kind: input, shape index: {}]
  %s4 = inlined_call_operand.vmem [shape: f32[1,16], index: 4, kind: input, shape index: {}]
  %s5 = inlined_call_operand.vmem [shape: bf16[128,16], index: 5, kind: output, shape index: {}]
  %s6 = sld [smem:[#allocation0]]
  $region30: #{generator_forward.21} parent=0
    _
  %s8 = ssub.s32 1, %s6
  %s9 = scalar_select 0, %s8, %s6
  // Predicated region
  $region2: #{generator_forward.21} parent=0 // pred_check
    _
  $region3: #{generator_forward.21} parent=0 // pred_check_branch
    %11 = sbr.rel (0) target = $region5
  $region4: #{generator_forward.21} parent=0 // pred_region
    _
  $region5: #{generator_forward.21} parent=0 // pred_fallthru
    _
  // Predicated region
  $region6: #{generator_forward.21} parent=0 // pred_check
    _
  $region7: #{generator_forward.21} parent=0 // pred_check_branch
    %13 = sbr.rel (0) target = $region9
  $region8: #{generator_forward.21} parent=0 // pred_region
    _
  $region9: #{generator_forward.21} parent=0 // pred_fallthru
    _
  // Predicated region
  $region10: #{generator_forward.21} parent=0 // pred_check
    _
  $region11: #{generator_forward.21} parent=0 // pred_check_branch
    %15 = sbr.rel (0) target = $region13
  $region12: #{generator_forward.21} parent=0 // pred_region
    _
  $region13: #{generator_forward.21} parent=0 // pred_fallthru
    _
  // Predicated region
  $region14: #{generator_forward.21} parent=0 // pred_check
    _
  $region15: #{generator_forward.21} parent=0 // pred_check_branch
    %17 = sbr.rel (0) target = $region17
  $region16: #{generator_forward.21} parent=0 // pred_region
    _
  $region17: #{generator_forward.21} parent=0 // pred_fallthru
    _
  // Predicated region
  $region18: #{generator_forward.21} parent=0 // pred_check
    _
  $region19: #{generator_forward.21} parent=0 // pred_check_branch
    %19 = sbr.rel (0) target = $region21
  $region20: #{generator_forward.21} parent=0 // pred_region
    _
  $region21: #{generator_forward.21} parent=0 // pred_fallthru
    _
  %v20 = vld [vmem:[%s0] sm:$0xf]
  %v21 = vld [vmem:[%s0 + $0x4] sm:$0xf]
  %v22 = vld [vmem:[%s0 + $0x8] sm:$0xf]
  %v23 = vld [vmem:[%s0 + $0xc] sm:$0xf]
  %v24 = vld [vmem:[%s0 + $0x10] sm:$0xf]
  %v25 = vld [vmem:[%s0 + $0x14] sm:$0xf]
  %v26 = vld [vmem:[%s0 + $0x18] sm:$0xf]
  %v27 = vld [vmem:[%s0 + $0x1c] sm:$0xf]
  %v28 = vld [vmem:[%s0 + $0x20] sm:$0xf]
  %v29 = vld [vmem:[%s0 + $0x24] sm:$0xf]
  %v30 = vld [vmem:[%s0 + $0x28] sm:$0xf]
  %v31 = vld [vmem:[%s0 + $0x2c] sm:$0xf]
  %v32 = vld [vmem:[%s0 + $0x30] sm:$0xf]
  %v33 = vld [vmem:[%s0 + $0x34] sm:$0xf]
  %v34 = vld [vmem:[%s0 + $0x38] sm:$0xf]
  %v35 = vld [vmem:[%s0 + $0x3c] sm:$0xf]
  %v36 = vunpack.c.l.bf16 %v20
  %v37 = vunpack.c.l.bf16 %v21
  %v38 = vunpack.c.l.bf16 %v22
  %v39 = vunpack.c.l.bf16 %v23
  %v40 = vunpack.c.l.bf16 %v24
  %v41 = vunpack.c.l.bf16 %v25
  %v42 = vunpack.c.l.bf16 %v26
  %v43 = vunpack.c.l.bf16 %v27
  %v44 = vunpack.c.l.bf16 %v28
  %v45 = vunpack.c.l.bf16 %v29
  %v46 = vunpack.c.l.bf16 %v30
  %v47 = vunpack.c.l.bf16 %v31
  %v48 = vunpack.c.l.bf16 %v32
  %v49 = vunpack.c.l.bf16 %v33
  %v50 = vunpack.c.l.bf16 %v34
  %v51 = vunpack.c.l.bf16 %v35
  %v52 = vld [vmem:[%s1] sm:$0x1]
  %v53 = vmul.f32 %v52, 0.0078125
  %v54 = vld [vmem:[%s2] sm:$0x1]
  %v55 = vmul.f32 %v54, 0.0078125
  %v56 = vmul.f32 %v53, %v53
  %v57 = vsub.f32 %v55, %v56
  %v58 = vmax.f32 %v57, 0.0
  %v59 = vld [vmem:[%s3] sm:$0x1]
  %v60 = vadd.f32 %v58, 1e-05
  %v61 = vrsqrt.pop %v60
  %v62 = vmul.f32 %v61, %v60
  %v63 = vmul.f32 %v62, %v61
  %v64 = vmul.f32 0.5, %v63
  %v65 = vsub.f32 1.5, %v64
  %v66 = vmul.f32 %v61, %v65
  %vm67 = vweird.f32 %v60
  %vm68 = vweird.f32 %v61
  %vm69 = vmor %vm67, %vm68
  %v70 = vsel %vm69, %v61, %v66
  %v71 = vmul.f32 %v59, %v70
  %v72 = vld [vmem:[%s4] sm:$0x1]
  %v73 = vmul.f32 %v53, %v71
  %v74 = vsub.f32 %v72, %v73
  %v76 = vperm.slane %v71, 0
  %v78 = vmul.f32 %v36, %v76
  %v79 = vmul.f32 %v37, %v76
  %v80 = vmul.f32 %v38, %v76
  %v81 = vmul.f32 %v39, %v76
  %v82 = vmul.f32 %v40, %v76
  %v83 = vmul.f32 %v41, %v76
  %v84 = vmul.f32 %v42, %v76
  %v85 = vmul.f32 %v43, %v76
  %v86 = vmul.f32 %v44, %v76
  %v87 = vmul.f32 %v45, %v76
  %v88 = vmul.f32 %v46, %v76
  %v89 = vmul.f32 %v47, %v76
  %v90 = vmul.f32 %v48, %v76
  %v91 = vmul.f32 %v49, %v76
  %v92 = vmul.f32 %v50, %v76
  %v93 = vmul.f32 %v51, %v76
  %v95 = vperm.slane %v74, 0
  %v97 = vadd.f32 %v78, %v95
  %v98 = vadd.f32 %v79, %v95
  %v99 = vadd.f32 %v80, %v95
  %v100 = vadd.f32 %v81, %v95
  %v101 = vadd.f32 %v82, %v95
  %v102 = vadd.f32 %v83, %v95
  %v103 = vadd.f32 %v84, %v95
  %v104 = vadd.f32 %v85, %v95
  %v105 = vadd.f32 %v86, %v95
  %v106 = vadd.f32 %v87, %v95
  %v107 = vadd.f32 %v88, %v95
  %v108 = vadd.f32 %v89, %v95
  %v109 = vadd.f32 %v90, %v95
  %v110 = vadd.f32 %v91, %v95
  %v111 = vadd.f32 %v92, %v95
  %v112 = vadd.f32 %v93, %v95
  %v113 = vmax.f32 %v97, 0.0
  %v114 = vmax.f32 %v98, 0.0
  %v115 = vmax.f32 %v99, 0.0
  %v116 = vmax.f32 %v100, 0.0
  %v117 = vmax.f32 %v101, 0.0
  %v118 = vmax.f32 %v102, 0.0
  %v119 = vmax.f32 %v103, 0.0
  %v120 = vmax.f32 %v104, 0.0
  %v121 = vmax.f32 %v105, 0.0
  %v122 = vmax.f32 %v106, 0.0
  %v123 = vmax.f32 %v107, 0.0
  %v124 = vmax.f32 %v108, 0.0
  %v125 = vmax.f32 %v109, 0.0
  %v126 = vmax.f32 %v110, 0.0
  %v127 = vmax.f32 %v111, 0.0
  %v128 = vmax.f32 %v112, 0.0
  %v129 = vpack.c.bf16 %v113, %v113
  %v130 = vpack.c.bf16 %v114, %v114
  %v131 = vpack.c.bf16 %v115, %v115
  %v132 = vpack.c.bf16 %v116, %v116
  %v133 = vpack.c.bf16 %v117, %v117
  %v134 = vpack.c.bf16 %v118, %v118
  %v135 = vpack.c.bf16 %v119, %v119
  %v136 = vpack.c.bf16 %v120, %v120
  %v137 = vpack.c.bf16 %v121, %v121
  %v138 = vpack.c.bf16 %v122, %v122
  %v139 = vpack.c.bf16 %v123, %v123
  %v140 = vpack.c.bf16 %v124, %v124
  %v141 = vpack.c.bf16 %v125, %v125
  %v142 = vpack.c.bf16 %v126, %v126
  %v143 = vpack.c.bf16 %v127, %v127
  %v144 = vpack.c.bf16 %v128, %v128
  %vm145 = vcmask 125952
  %146 = vst.msk [vmem:[%s5] sm:$0xf] %vm145, %v129
  %147 = vst.msk [vmem:[%s5 + $0x4] sm:$0xf] %vm145, %v130
  %148 = vst.msk [vmem:[%s5 + $0x8] sm:$0xf] %vm145, %v131
  %149 = vst.msk [vmem:[%s5 + $0xc] sm:$0xf] %vm145, %v132
  %150 = vst.msk [vmem:[%s5 + $0x10] sm:$0xf] %vm145, %v133
  %151 = vst.msk [vmem:[%s5 + $0x14] sm:$0xf] %vm145, %v134
  %152 = vst.msk [vmem:[%s5 + $0x18] sm:$0xf] %vm145, %v135
  %153 = vst.msk [vmem:[%s5 + $0x1c] sm:$0xf] %vm145, %v136
  %154 = vst.msk [vmem:[%s5 + $0x20] sm:$0xf] %vm145, %v137
  %155 = vst.msk [vmem:[%s5 + $0x24] sm:$0xf] %vm145, %v138
  %156 = vst.msk [vmem:[%s5 + $0x28] sm:$0xf] %vm145, %v139
  %157 = vst.msk [vmem:[%s5 + $0x2c] sm:$0xf] %vm145, %v140
  %158 = vst.msk [vmem:[%s5 + $0x30] sm:$0xf] %vm145, %v141
  %159 = vst.msk [vmem:[%s5 + $0x34] sm:$0xf] %vm145, %v142
  %160 = vst.msk [vmem:[%s5 + $0x38] sm:$0xf] %vm145, %v143
  %161 = vst.msk [vmem:[%s5 + $0x3c] sm:$0xf] %vm145, %v144
  // Predicated region
  $region22: #{generator_forward.21} parent=0 // pred_check
    _
  $region23: #{generator_forward.21} parent=0 // pred_check_branch
    %163 = sbr.rel (0) target = $region25
  $region24: #{generator_forward.21} parent=0 // pred_region
    _
  $region25: #{generator_forward.21} parent=0 // pred_fallthru
    _
  // Predicated region
  $region26: #{generator_forward.21} parent=0 // pred_check
    _
  $region27: #{generator_forward.21} parent=0 // pred_check_branch
    %165 = sbr.rel (0) target = $region29
  $region28: #{generator_forward.21} parent=0 // pred_region
    _
  $region29: #{generator_forward.21} parent=0 // pred_fallthru
    _

// kernel: generator_forward.22
$region0: #{generator_forward.22}
  #allocation0 [shape = 'u32[]', space=smem, size = 0x4, offset = 0x4, fixed_abs, tag = 'smem constant byte address 0x4 - core index']
  #allocation1 [shape = 'u32[72,128]{1,0:T(1,128)}', space=vmem, size = 0x9000, scoped, tag = 'internal scratch']
  #allocation2 [shape = 'f32[168,32]{1,0:T(8,128)}', space=vmem, size = 0x15000, scoped, tag = 'scratch operand']
  %s0 = inlined_call_operand.vmem [shape: bf16[168,64], index: 0, kind: input, shape index: {}]
  %s1 = inlined_call_operand.vmem [shape: bf16[64,32], index: 1, kind: input, shape index: {}]
  %s2 = inlined_call_operand.vmem [shape: bf16[168,32], index: 2, kind: output, shape index: {}]
  %s3 = sld [smem:[#allocation0]]
  $region26: #{generator_forward.22} parent=0
    _
  %s5 = ssub.s32 1, %s3
  %s6 = scalar_select 0, %s5, %s3
  // Predicated region
  $region2: #{generator_forward.22} parent=0 // pred_check
    _
  $region3: #{generator_forward.22} parent=0 // pred_check_branch
    %8 = sbr.rel (0) target = $region5
  $region4: #{generator_forward.22} parent=0 // pred_region
    _
  $region5: #{generator_forward.22} parent=0 // pred_fallthru
    _
  // Predicated region
  $region6: #{generator_forward.22} parent=0 // pred_check
    _
  $region7: #{generator_forward.22} parent=0 // pred_check_branch
    %10 = sbr.rel (0) target = $region9
  $region8: #{generator_forward.22} parent=0 // pred_region
    _
  $region9: #{generator_forward.22} parent=0 // pred_fallthru
    _
  %p12 = scmp.eq.s32.totalorder 0, 0
  // Predicated region
  $region10: #{generator_forward.22} parent=0 // pred_check
    %p13 = pneg %p12
  $region11: #{generator_forward.22} parent=0 // pred_check_branch
    %15 = sbr.rel (%p13) target = $region13
  $region12: #{generator_forward.22} parent=0 // pred_region
    %vm16 = vcmask 261120
    %17 = vst.msk [vmem:[#allocation2] sm:$0xff] %vm16, 0.0
    %18 = vst.msk [vmem:[#allocation2 + $0x8] sm:$0xff] %vm16, 0.0
    %19 = vst.msk [vmem:[#allocation2 + $0x10] sm:$0xff] %vm16, 0.0
    %20 = vst.msk [vmem:[#allocation2 + $0x18] sm:$0xff] %vm16, 0.0
    %21 = vst.msk [vmem:[#allocation2 + $0x20] sm:$0xff] %vm16, 0.0
    %22 = vst.msk [vmem:[#allocation2 + $0x28] sm:$0xff] %vm16, 0.0
    %23 = vst.msk [vmem:[#allocation2 + $0x30] sm:$0xff] %vm16, 0.0
    %24 = vst.msk [vmem:[#allocation2 + $0x38] sm:$0xff] %vm16, 0.0
    %25 = vst.msk [vmem:[#allocation2 + $0x40] sm:$0xff] %vm16, 0.0
    %26 = vst.msk [vmem:[#allocation2 + $0x48] sm:$0xff] %vm16, 0.0
    %27 = vst.msk [vmem:[#allocation2 + $0x50] sm:$0xff] %vm16, 0.0
    %28 = vst.msk [vmem:[#allocation2 + $0x58] sm:$0xff] %vm16, 0.0
    %29 = vst.msk [vmem:[#allocation2 + $0x60] sm:$0xff] %vm16, 0.0
    %30 = vst.msk [vmem:[#allocation2 + $0x68] sm:$0xff] %vm16, 0.0
    %31 = vst.msk [vmem:[#allocation2 + $0x70] sm:$0xff] %vm16, 0.0
    %32 = vst.msk [vmem:[#allocation2 + $0x78] sm:$0xff] %vm16, 0.0
    %33 = vst.msk [vmem:[#allocation2 + $0x80] sm:$0xff] %vm16, 0.0
    %34 = vst.msk [vmem:[#allocation2 + $0x88] sm:$0xff] %vm16, 0.0
    %35 = vst.msk [vmem:[#allocation2 + $0x90] sm:$0xff] %vm16, 0.0
    %36 = vst.msk [vmem:[#allocation2 + $0x98] sm:$0xff] %vm16, 0.0
    %37 = vst.msk [vmem:[#allocation2 + $0xa0] sm:$0xff] %vm16, 0.0
  $region13: #{generator_forward.22} parent=0 // pred_fallthru
    _
  %v38 = vld [vmem:[#allocation2] sm:$0xff]
  %v39 = vld [vmem:[#allocation2 + $0x8] sm:$0xff]
  %v40 = vld [vmem:[#allocation2 + $0x10] sm:$0xff]
  %v41 = vld [vmem:[#allocation2 + $0x18] sm:$0xff]
  %v42 = vld [vmem:[#allocation2 + $0x20] sm:$0xff]
  %v43 = vld [vmem:[#allocation2 + $0x28] sm:$0xff]
  %v44 = vld [vmem:[#allocation2 + $0x30] sm:$0xff]
  %v45 = vld [vmem:[#allocation2 + $0x38] sm:$0xff]
  %v46 = vld [vmem:[#allocation2 + $0x40] sm:$0xff]
  %v47 = vld [vmem:[#allocation2 + $0x48] sm:$0xff]
  %v48 = vld [vmem:[#allocation2 + $0x50] sm:$0xff]
  %v49 = vld [vmem:[#allocation2 + $0x58] sm:$0xff]
  %v50 = vld [vmem:[#allocation2 + $0x60] sm:$0xff]
  %v51 = vld [vmem:[#allocation2 + $0x68] sm:$0xff]
  %v52 = vld [vmem:[#allocation2 + $0x70] sm:$0xff]
  %v53 = vld [vmem:[#allocation2 + $0x78] sm:$0xff]
  %v54 = vld [vmem:[#allocation2 + $0x80] sm:$0xff]
  %v55 = vld [vmem:[#allocation2 + $0x88] sm:$0xff]
  %v56 = vld [vmem:[#allocation2 + $0x90] sm:$0xff]
  %v57 = vld [vmem:[#allocation2 + $0x98] sm:$0xff]
  %v58 = vld [vmem:[#allocation2 + $0xa0] sm:$0xff]
  %v59 = vld [vmem:[%s0] sm:$0xf]
  %v60 = vld [vmem:[%s0 + $0x4] sm:$0xf]
  %v61 = vld [vmem:[%s0 + $0x8] sm:$0xf]
  %v62 = vld [vmem:[%s0 + $0xc] sm:$0xf]
  %v63 = vld [vmem:[%s0 + $0x10] sm:$0xf]
  %v64 = vld [vmem:[%s0 + $0x14] sm:$0xf]
  %v65 = vld [vmem:[%s0 + $0x18] sm:$0xf]
  %v66 = vld [vmem:[%s0 + $0x1c] sm:$0xf]
  %v67 = vld [vmem:[%s0 + $0x20] sm:$0xf]
  %v68 = vld [vmem:[%s0 + $0x24] sm:$0xf]
  %v69 = vld [vmem:[%s0 + $0x28] sm:$0xf]
  %v70 = vld [vmem:[%s0 + $0x2c] sm:$0xf]
  %v71 = vld [vmem:[%s0 + $0x30] sm:$0xf]
  %v72 = vld [vmem:[%s0 + $0x34] sm:$0xf]
  %v73 = vld [vmem:[%s0 + $0x38] sm:$0xf]
  %v74 = vld [vmem:[%s0 + $0x3c] sm:$0xf]
  %v75 = vld [vmem:[%s0 + $0x40] sm:$0xf]
  %v76 = vld [vmem:[%s0 + $0x44] sm:$0xf]
  %v77 = vld [vmem:[%s0 + $0x48] sm:$0xf]
  %v78 = vld [vmem:[%s0 + $0x4c] sm:$0xf]
  %v79 = vld [vmem:[%s0 + $0x50] sm:$0xf]
  %v80 = vld [vmem:[%s1] sm:$0xf]
  %v81 = vld [vmem:[%s1 + $0x4] sm:$0xf]
  %v82 = vld [vmem:[%s1 + $0x8] sm:$0xf]
  %v83 = vld [vmem:[%s1 + $0xc] sm:$0xf]
  %v84 = vld [vmem:[%s1 + $0x10] sm:$0xf]
  %v85 = vld [vmem:[%s1 + $0x14] sm:$0xf]
  %v86 = vld [vmem:[%s1 + $0x18] sm:$0xf]
  %v87 = vld [vmem:[%s1 + $0x1c] sm:$0xf]
  %v109 = vunpack.c.l.b16 %v59
  %v110 = vunpack.c.l.b16 %v60
  %v111 = vunpack.c.l.b16 %v61
  %v112 = vunpack.c.l.b16 %v62
  %v113 = vunpack.c.l.b16 %v63
  %v114 = vunpack.c.l.b16 %v64
  %v115 = vunpack.c.l.b16 %v65
  %v116 = vunpack.c.l.b16 %v66
  %v117 = vunpack.c.l.b16 %v67
  %v118 = vunpack.c.l.b16 %v68
  %v119 = vunpack.c.l.b16 %v69
  %v120 = vunpack.c.l.b16 %v70
  %v121 = vunpack.c.l.b16 %v71
  %v122 = vunpack.c.l.b16 %v72
  %v123 = vunpack.c.l.b16 %v73
  %v124 = vunpack.c.l.b16 %v74
  %v125 = vunpack.c.l.b16 %v75
  %v126 = vunpack.c.l.b16 %v76
  %v127 = vunpack.c.l.b16 %v77
  %v128 = vunpack.c.l.b16 %v78
  %v129 = vunpack.c.l.b16 %v79
  %v130 = vpack.c.b16 %v110, %v109
  %v131 = vpack.c.b16 %v112, %v111
  %v132 = vpack.c.b16 %v114, %v113
  %v133 = vpack.c.b16 %v116, %v115
  %v134 = vpack.c.b16 %v118, %v117
  %v135 = vpack.c.b16 %v120, %v119
  %v136 = vpack.c.b16 %v122, %v121
  %v137 = vpack.c.b16 %v124, %v123
  %v138 = vpack.c.b16 %v126, %v125
  %v139 = vpack.c.b16 %v128, %v127
  %v140 = vpack.c.b16 %v129, %v129
  %v149 = vunpack.c.l.b16 %v80
  %v150 = vunpack.c.l.b16 %v81
  %v151 = vunpack.c.l.b16 %v82
  %v152 = vunpack.c.l.b16 %v83
  %v153 = vunpack.c.l.b16 %v84
  %v154 = vunpack.c.l.b16 %v85
  %v155 = vunpack.c.l.b16 %v86
  %v156 = vunpack.c.l.b16 %v87
  %v157 = vpack.c.b16 %v150, %v149
  %v158 = vpack.c.b16 %v152, %v151
  %v159 = vpack.c.b16 %v154, %v153
  %v160 = vpack.c.b16 %v156, %v155
  %vm165 = vcmask 523264
  %v167 = vsel %vm165, %v130, 0
  %v170 = vsel %vm165, %v131, 0
  %v173 = vsel %vm165, %v132, 0
  %v176 = vsel %vm165, %v133, 0
  %v179 = vsel %vm165, %v134, 0
  %v182 = vsel %vm165, %v135, 0
  %v185 = vsel %vm165, %v136, 0
  %v188 = vsel %vm165, %v137, 0
  %v191 = vsel %vm165, %v138, 0
  %v194 = vsel %vm165, %v139, 0
  %v197 = vsel %vm165, %v140, 0
  %199 = vmatpush.bf16.msra.mxu0 0
  %200 = vmatpush.bf16.msra.mxu0 0
  %201 = vmatpush.bf16.msra.mxu0 0
  %202 = vmatpush.bf16.msra.mxu0 0
  %203 = vmatpush.bf16.msra.mxu0 %v160
  %204 = vmatpush.bf16.msra.mxu0 %v159
  %205 = vmatpush.bf16.msra.mxu0 %v158
  %206 = vmatpush.bf16.msra.mxu0 %v157
  %207 = vmatmul.bf16.gmra.mxu0 %v167
  %v208 = vpop.f32.mrf.mxu0
  %v209 = vadd.f32 0.0, %v208
  %v210 = vpop.f32.mrf.mxu0
  %v211 = vadd.f32 0.0, %v210
  %212 = vmatmul.bf16.gmra.mxu0 %v170
  %v213 = vpop.f32.mrf.mxu0
  %v214 = vadd.f32 0.0, %v213
  %v215 = vpop.f32.mrf.mxu0
  %v216 = vadd.f32 0.0, %v215
  %217 = vmatmul.bf16.gmra.mxu0 %v173
  %v218 = vpop.f32.mrf.mxu0
  %v219 = vadd.f32 0.0, %v218
  %v220 = vpop.f32.mrf.mxu0
  %v221 = vadd.f32 0.0, %v220
  %222 = vmatmul.bf16.gmra.mxu0 %v176
  %v223 = vpop.f32.mrf.mxu0
  %v224 = vadd.f32 0.0, %v223
  %v225 = vpop.f32.mrf.mxu0
  %v226 = vadd.f32 0.0, %v225
  %227 = vmatmul.bf16.gmra.mxu0 %v179
  %v228 = vpop.f32.mrf.mxu0
  %v229 = vadd.f32 0.0, %v228
  %v230 = vpop.f32.mrf.mxu0
  %v231 = vadd.f32 0.0, %v230
  %232 = vmatmul.bf16.gmra.mxu0 %v182
  %v233 = vpop.f32.mrf.mxu0
  %v234 = vadd.f32 0.0, %v233
  %v235 = vpop.f32.mrf.mxu0
  %v236 = vadd.f32 0.0, %v235
  %237 = vmatmul.bf16.gmra.mxu0 %v185
  %v238 = vpop.f32.mrf.mxu0
  %v239 = vadd.f32 0.0, %v238
  %v240 = vpop.f32.mrf.mxu0
  %v241 = vadd.f32 0.0, %v240
  %242 = vmatmul.bf16.gmra.mxu0 %v188
  %v243 = vpop.f32.mrf.mxu0
  %v244 = vadd.f32 0.0, %v243
  %v245 = vpop.f32.mrf.mxu0
  %v246 = vadd.f32 0.0, %v245
  %247 = vmatmul.bf16.gmra.mxu0 %v191
  %v248 = vpop.f32.mrf.mxu0
  %v249 = vadd.f32 0.0, %v248
  %v250 = vpop.f32.mrf.mxu0
  %v251 = vadd.f32 0.0, %v250
  %252 = vmatmul.bf16.gmra.mxu0 %v194
  %v253 = vpop.f32.mrf.mxu0
  %v254 = vadd.f32 0.0, %v253
  %v255 = vpop.f32.mrf.mxu0
  %v256 = vadd.f32 0.0, %v255
  %257 = vmatmul.bf16.gmra.mxu0 %v197
  %v258 = vpop.f32.mrf.mxu0
  %v259 = vadd.f32 0.0, %v258
  %v260 = vpop.f32.mrf.mxu0
  %261 = vdwg.mxu0
  %v262 = vadd.f32 %v38, %v209
  %v263 = vadd.f32 %v39, %v211
  %v264 = vadd.f32 %v40, %v214
  %v265 = vadd.f32 %v41, %v216
  %v266 = vadd.f32 %v42, %v219
  %v267 = vadd.f32 %v43, %v221
  %v268 = vadd.f32 %v44, %v224
  %v269 = vadd.f32 %v45, %v226
  %v270 = vadd.f32 %v46, %v229
  %v271 = vadd.f32 %v47, %v231
  %v272 = vadd.f32 %v48, %v234
  %v273 = vadd.f32 %v49, %v236
  %v274 = vadd.f32 %v50, %v239
  %v275 = vadd.f32 %v51, %v241
  %v276 = vadd.f32 %v52, %v244
  %v277 = vadd.f32 %v53, %v246
  %v278 = vadd.f32 %v54, %v249
  %v279 = vadd.f32 %v55, %v251
  %v280 = vadd.f32 %v56, %v254
  %v281 = vadd.f32 %v57, %v256
  %v282 = vadd.f32 %v58, %v259
  %vm283 = vcmask 261120
  %284 = vst.msk [vmem:[#allocation2] sm:$0xff] %vm283, %v262
  %285 = vst.msk [vmem:[#allocation2 + $0x8] sm:$0xff] %vm283, %v263
  %286 = vst.msk [vmem:[#allocation2 + $0x10] sm:$0xff] %vm283, %v264
  %287 = vst.msk [vmem:[#allocation2 + $0x18] sm:$0xff] %vm283, %v265
  %288 = vst.msk [vmem:[#allocation2 + $0x20] sm:$0xff] %vm283, %v266
  %289 = vst.msk [vmem:[#allocation2 + $0x28] sm:$0xff] %vm283, %v267
  %290 = vst.msk [vmem:[#allocation2 + $0x30] sm:$0xff] %vm283, %v268
  %291 = vst.msk [vmem:[#allocation2 + $0x38] sm:$0xff] %vm283, %v269
  %292 = vst.msk [vmem:[#allocation2 + $0x40] sm:$0xff] %vm283, %v270
  %293 = vst.msk [vmem:[#allocation2 + $0x48] sm:$0xff] %vm283, %v271
  %294 = vst.msk [vmem:[#allocation2 + $0x50] sm:$0xff] %vm283, %v272
  %295 = vst.msk [vmem:[#allocation2 + $0x58] sm:$0xff] %vm283, %v273
  %296 = vst.msk [vmem:[#allocation2 + $0x60] sm:$0xff] %vm283, %v274
  %297 = vst.msk [vmem:[#allocation2 + $0x68] sm:$0xff] %vm283, %v275
  %298 = vst.msk [vmem:[#allocation2 + $0x70] sm:$0xff] %vm283, %v276
  %299 = vst.msk [vmem:[#allocation2 + $0x78] sm:$0xff] %vm283, %v277
  %300 = vst.msk [vmem:[#allocation2 + $0x80] sm:$0xff] %vm283, %v278
  %301 = vst.msk [vmem:[#allocation2 + $0x88] sm:$0xff] %vm283, %v279
  %302 = vst.msk [vmem:[#allocation2 + $0x90] sm:$0xff] %vm283, %v280
  %303 = vst.msk [vmem:[#allocation2 + $0x98] sm:$0xff] %vm283, %v281
  %304 = vst.msk [vmem:[#allocation2 + $0xa0] sm:$0xff] %vm283, %v282
  // Predicated region
  $region14: #{generator_forward.22} parent=0 // pred_check
    %p305 = pneg %p12
  $region15: #{generator_forward.22} parent=0 // pred_check_branch
    %307 = sbr.rel (%p305) target = $region17
  $region16: #{generator_forward.22} parent=0 // pred_region
    %v308 = vld [vmem:[#allocation2] sm:$0xff]
    %v309 = vld [vmem:[#allocation2 + $0x8] sm:$0xff]
    %v310 = vld [vmem:[#allocation2 + $0x10] sm:$0xff]
    %v311 = vld [vmem:[#allocation2 + $0x18] sm:$0xff]
    %v312 = vld [vmem:[#allocation2 + $0x20] sm:$0xff]
    %v313 = vld [vmem:[#allocation2 + $0x28] sm:$0xff]
    %v314 = vld [vmem:[#allocation2 + $0x30] sm:$0xff]
    %v315 = vld [vmem:[#allocation2 + $0x38] sm:$0xff]
    %v316 = vld [vmem:[#allocation2 + $0x40] sm:$0xff]
    %v317 = vld [vmem:[#allocation2 + $0x48] sm:$0xff]
    %v318 = vld [vmem:[#allocation2 + $0x50] sm:$0xff]
    %v319 = vld [vmem:[#allocation2 + $0x58] sm:$0xff]
    %v320 = vld [vmem:[#allocation2 + $0x60] sm:$0xff]
    %v321 = vld [vmem:[#allocation2 + $0x68] sm:$0xff]
    %v322 = vld [vmem:[#allocation2 + $0x70] sm:$0xff]
    %v323 = vld [vmem:[#allocation2 + $0x78] sm:$0xff]
    %v324 = vld [vmem:[#allocation2 + $0x80] sm:$0xff]
    %v325 = vld [vmem:[#allocation2 + $0x88] sm:$0xff]
    %v326 = vld [vmem:[#allocation2 + $0x90] sm:$0xff]
    %v327 = vld [vmem:[#allocation2 + $0x98] sm:$0xff]
    %v328 = vld [vmem:[#allocation2 + $0xa0] sm:$0xff]
    %v329 = vpack.c.bf16 %v308, %v308
    %v330 = vpack.c.bf16 %v309, %v309
    %v331 = vpack.c.bf16 %v310, %v310
    %v332 = vpack.c.bf16 %v311, %v311
    %v333 = vpack.c.bf16 %v312, %v312
    %v334 = vpack.c.bf16 %v313, %v313
    %v335 = vpack.c.bf16 %v314, %v314
    %v336 = vpack.c.bf16 %v315, %v315
    %v337 = vpack.c.bf16 %v316, %v316
    %v338 = vpack.c.bf16 %v317, %v317
    %v339 = vpack.c.bf16 %v318, %v318
    %v340 = vpack.c.bf16 %v319, %v319
    %v341 = vpack.c.bf16 %v320, %v320
    %v342 = vpack.c.bf16 %v321, %v321
    %v343 = vpack.c.bf16 %v322, %v322
    %v344 = vpack.c.bf16 %v323, %v323
    %v345 = vpack.c.bf16 %v324, %v324
    %v346 = vpack.c.bf16 %v325, %v325
    %v347 = vpack.c.bf16 %v326, %v326
    %v348 = vpack.c.bf16 %v327, %v327
    %v349 = vpack.c.bf16 %v328, %v328
    %vm350 = vcmask 257024
    %351 = vst.msk [vmem:[%s2] sm:$0xf] %vm350, %v329
    %352 = vst.msk [vmem:[%s2 + $0x4] sm:$0xf] %vm350, %v330
    %353 = vst.msk [vmem:[%s2 + $0x8] sm:$0xf] %vm350, %v331
    %354 = vst.msk [vmem:[%s2 + $0xc] sm:$0xf] %vm350, %v332
    %355 = vst.msk [vmem:[%s2 + $0x10] sm:$0xf] %vm350, %v333
    %356 = vst.msk [vmem:[%s2 + $0x14] sm:$0xf] %vm350, %v334
    %357 = vst.msk [vmem:[%s2 + $0x18] sm:$0xf] %vm350, %v335
    %358 = vst.msk [vmem:[%s2 + $0x1c] sm:$0xf] %vm350, %v336
    %359 = vst.msk [vmem:[%s2 + $0x20] sm:$0xf] %vm350, %v337
    %360 = vst.msk [vmem:[%s2 + $0x24] sm:$0xf] %vm350, %v338
    %361 = vst.msk [vmem:[%s2 + $0x28] sm:$0xf] %vm350, %v339
    %362 = vst.msk [vmem:[%s2 + $0x2c] sm:$0xf] %vm350, %v340
    %363 = vst.msk [vmem:[%s2 + $0x30] sm:$0xf] %vm350, %v341
    %364 = vst.msk [vmem:[%s2 + $0x34] sm:$0xf] %vm350, %v342
    %365 = vst.msk [vmem:[%s2 + $0x38] sm:$0xf] %vm350, %v343
    %366 = vst.msk [vmem:[%s2 + $0x3c] sm:$0xf] %vm350, %v344
    %367 = vst.msk [vmem:[%s2 + $0x40] sm:$0xf] %vm350, %v345
    %368 = vst.msk [vmem:[%s2 + $0x44] sm:$0xf] %vm350, %v346
    %369 = vst.msk [vmem:[%s2 + $0x48] sm:$0xf] %vm350, %v347
    %370 = vst.msk [vmem:[%s2 + $0x4c] sm:$0xf] %vm350, %v348
    %371 = vst.msk [vmem:[%s2 + $0x50] sm:$0xf] %vm350, %v349
  $region17: #{generator_forward.22} parent=0 // pred_fallthru
    _
  // Predicated region
  $region18: #{generator_forward.22} parent=0 // pred_check
    _
  $region19: #{generator_forward.22} parent=0 // pred_check_branch
    %373 = sbr.rel (0) target = $region21
  $region20: #{generator_forward.22} parent=0 // pred_region
    _
  $region21: #{generator_forward.22} parent=0 // pred_fallthru
    _
  // Predicated region
  $region22: #{generator_forward.22} parent=0 // pred_check
    _
  $region23: #{generator_forward.22} parent=0 // pred_check_branch
    %375 = sbr.rel (0) target = $region25
  $region24: #{generator_forward.22} parent=0 // pred_region
    _
  $region25: #{generator_forward.22} parent=0 // pred_fallthru
    _

// kernel: generator_forward.23
$region0: #{generator_forward.23}
  #allocation0 [shape = 'u32[]', space=smem, size = 0x4, offset = 0x4, fixed_abs, tag = 'smem constant byte address 0x4 - core index']
  #allocation1 [shape = 'u32[72,128]{1,0:T(1,128)}', space=vmem, size = 0x9000, scoped, tag = 'internal scratch']
  %s0 = inlined_call_operand.vmem [shape: bf16[512,8], index: 0, kind: input, shape index: {}]
  %s1 = inlined_call_operand.vmem [shape: f32[1,8], index: 1, kind: output, shape index: {0}]
  %s2 = inlined_call_operand.vmem [shape: f32[1,8], index: 2, kind: output, shape index: {1}]
  %3 = xla_tuple %s1, %s2
  %s4 = sld [smem:[#allocation0]]
  $region26: #{generator_forward.23} parent=0
    _
  %s6 = ssub.s32 1, %s4
  %s7 = scalar_select 0, %s6, %s4
  // Predicated region
  $region2: #{generator_forward.23} parent=0 // pred_check
    _
  $region3: #{generator_forward.23} parent=0 // pred_check_branch
    %9 = sbr.rel (0) target = $region5
  $region4: #{generator_forward.23} parent=0 // pred_region
    _
  $region5: #{generator_forward.23} parent=0 // pred_fallthru
    _
  %p10 = scmp.eq.s32.totalorder 0, 0
  // Predicated region
  $region6: #{generator_forward.23} parent=0 // pred_check
    %p11 = pneg %p10
  $region7: #{generator_forward.23} parent=0 // pred_check_branch
    %13 = sbr.rel (%p11) target = $region9
  $region8: #{generator_forward.23} parent=0 // pred_region
    %vm14 = vcmask 57344
    %15 = vst.msk [vmem:[%s1] sm:$0x1] %vm14, 0.0
    %16 = vst.msk [vmem:[%s2] sm:$0x1] %vm14, 0.0
  $region9: #{generator_forward.23} parent=0 // pred_fallthru
    _
  %v17 = vld [vmem:[%s0] sm:$0xf]
  %v18 = vld [vmem:[%s0 + $0x4] sm:$0xf]
  %v19 = vld [vmem:[%s0 + $0x8] sm:$0xf]
  %v20 = vld [vmem:[%s0 + $0xc] sm:$0xf]
  %v21 = vld [vmem:[%s0 + $0x10] sm:$0xf]
  %v22 = vld [vmem:[%s0 + $0x14] sm:$0xf]
  %v23 = vld [vmem:[%s0 + $0x18] sm:$0xf]
  %v24 = vld [vmem:[%s0 + $0x1c] sm:$0xf]
  %v25 = vld [vmem:[%s0 + $0x20] sm:$0xf]
  %v26 = vld [vmem:[%s0 + $0x24] sm:$0xf]
  %v27 = vld [vmem:[%s0 + $0x28] sm:$0xf]
  %v28 = vld [vmem:[%s0 + $0x2c] sm:$0xf]
  %v29 = vld [vmem:[%s0 + $0x30] sm:$0xf]
  %v30 = vld [vmem:[%s0 + $0x34] sm:$0xf]
  %v31 = vld [vmem:[%s0 + $0x38] sm:$0xf]
  %v32 = vld [vmem:[%s0 + $0x3c] sm:$0xf]
  %v33 = vld [vmem:[%s0 + $0x40] sm:$0xf]
  %v34 = vld [vmem:[%s0 + $0x44] sm:$0xf]
  %v35 = vld [vmem:[%s0 + $0x48] sm:$0xf]
  %v36 = vld [vmem:[%s0 + $0x4c] sm:$0xf]
  %v37 = vld [vmem:[%s0 + $0x50] sm:$0xf]
  %v38 = vld [vmem:[%s0 + $0x54] sm:$0xf]
  %v39 = vld [vmem:[%s0 + $0x58] sm:$0xf]
  %v40 = vld [vmem:[%s0 + $0x5c] sm:$0xf]
  %v41 = vld [vmem:[%s0 + $0x60] sm:$0xf]
  %v42 = vld [vmem:[%s0 + $0x64] sm:$0xf]
  %v43 = vld [vmem:[%s0 + $0x68] sm:$0xf]
  %v44 = vld [vmem:[%s0 + $0x6c] sm:$0xf]
  %v45 = vld [vmem:[%s0 + $0x70] sm:$0xf]
  %v46 = vld [vmem:[%s0 + $0x74] sm:$0xf]
  %v47 = vld [vmem:[%s0 + $0x78] sm:$0xf]
  %v48 = vld [vmem:[%s0 + $0x7c] sm:$0xf]
  %v49 = vld [vmem:[%s0 + $0x80] sm:$0xf]
  %v50 = vld [vmem:[%s0 + $0x84] sm:$0xf]
  %v51 = vld [vmem:[%s0 + $0x88] sm:$0xf]
  %v52 = vld [vmem:[%s0 + $0x8c] sm:$0xf]
  %v53 = vld [vmem:[%s0 + $0x90] sm:$0xf]
  %v54 = vld [vmem:[%s0 + $0x94] sm:$0xf]
  %v55 = vld [vmem:[%s0 + $0x98] sm:$0xf]
  %v56 = vld [vmem:[%s0 + $0x9c] sm:$0xf]
  %v57 = vld [vmem:[%s0 + $0xa0] sm:$0xf]
  %v58 = vld [vmem:[%s0 + $0xa4] sm:$0xf]
  %v59 = vld [vmem:[%s0 + $0xa8] sm:$0xf]
  %v60 = vld [vmem:[%s0 + $0xac] sm:$0xf]
  %v61 = vld [vmem:[%s0 + $0xb0] sm:$0xf]
  %v62 = vld [vmem:[%s0 + $0xb4] sm:$0xf]
  %v63 = vld [vmem:[%s0 + $0xb8] sm:$0xf]
  %v64 = vld [vmem:[%s0 + $0xbc] sm:$0xf]
  %v65 = vld [vmem:[%s0 + $0xc0] sm:$0xf]
  %v66 = vld [vmem:[%s0 + $0xc4] sm:$0xf]
  %v67 = vld [vmem:[%s0 + $0xc8] sm:$0xf]
  %v68 = vld [vmem:[%s0 + $0xcc] sm:$0xf]
  %v69 = vld [vmem:[%s0 + $0xd0] sm:$0xf]
  %v70 = vld [vmem:[%s0 + $0xd4] sm:$0xf]
  %v71 = vld [vmem:[%s0 + $0xd8] sm:$0xf]
  %v72 = vld [vmem:[%s0 + $0xdc] sm:$0xf]
  %v73 = vld [vmem:[%s0 + $0xe0] sm:$0xf]
  %v74 = vld [vmem:[%s0 + $0xe4] sm:$0xf]
  %v75 = vld [vmem:[%s0 + $0xe8] sm:$0xf]
  %v76 = vld [vmem:[%s0 + $0xec] sm:$0xf]
  %v77 = vld [vmem:[%s0 + $0xf0] sm:$0xf]
  %v78 = vld [vmem:[%s0 + $0xf4] sm:$0xf]
  %v79 = vld [vmem:[%s0 + $0xf8] sm:$0xf]
  %v80 = vld [vmem:[%s0 + $0xfc] sm:$0xf]
  %v81 = vunpack.c.l.bf16 %v17
  %v82 = vunpack.c.l.bf16 %v18
  %v83 = vunpack.c.l.bf16 %v19
  %v84 = vunpack.c.l.bf16 %v20
  %v85 = vunpack.c.l.bf16 %v21
  %v86 = vunpack.c.l.bf16 %v22
  %v87 = vunpack.c.l.bf16 %v23
  %v88 = vunpack.c.l.bf16 %v24
  %v89 = vunpack.c.l.bf16 %v25
  %v90 = vunpack.c.l.bf16 %v26
  %v91 = vunpack.c.l.bf16 %v27
  %v92 = vunpack.c.l.bf16 %v28
  %v93 = vunpack.c.l.bf16 %v29
  %v94 = vunpack.c.l.bf16 %v30
  %v95 = vunpack.c.l.bf16 %v31
  %v96 = vunpack.c.l.bf16 %v32
  %v97 = vunpack.c.l.bf16 %v33
  %v98 = vunpack.c.l.bf16 %v34
  %v99 = vunpack.c.l.bf16 %v35
  %v100 = vunpack.c.l.bf16 %v36
  %v101 = vunpack.c.l.bf16 %v37
  %v102 = vunpack.c.l.bf16 %v38
  %v103 = vunpack.c.l.bf16 %v39
  %v104 = vunpack.c.l.bf16 %v40
  %v105 = vunpack.c.l.bf16 %v41
  %v106 = vunpack.c.l.bf16 %v42
  %v107 = vunpack.c.l.bf16 %v43
  %v108 = vunpack.c.l.bf16 %v44
  %v109 = vunpack.c.l.bf16 %v45
  %v110 = vunpack.c.l.bf16 %v46
  %v111 = vunpack.c.l.bf16 %v47
  %v112 = vunpack.c.l.bf16 %v48
  %v113 = vunpack.c.l.bf16 %v49
  %v114 = vunpack.c.l.bf16 %v50
  %v115 = vunpack.c.l.bf16 %v51
  %v116 = vunpack.c.l.bf16 %v52
  %v117 = vunpack.c.l.bf16 %v53
  %v118 = vunpack.c.l.bf16 %v54
  %v119 = vunpack.c.l.bf16 %v55
  %v120 = vunpack.c.l.bf16 %v56
  %v121 = vunpack.c.l.bf16 %v57
  %v122 = vunpack.c.l.bf16 %v58
  %v123 = vunpack.c.l.bf16 %v59
  %v124 = vunpack.c.l.bf16 %v60
  %v125 = vunpack.c.l.bf16 %v61
  %v126 = vunpack.c.l.bf16 %v62
  %v127 = vunpack.c.l.bf16 %v63
  %v128 = vunpack.c.l.bf16 %v64
  %v129 = vunpack.c.l.bf16 %v65
  %v130 = vunpack.c.l.bf16 %v66
  %v131 = vunpack.c.l.bf16 %v67
  %v132 = vunpack.c.l.bf16 %v68
  %v133 = vunpack.c.l.bf16 %v69
  %v134 = vunpack.c.l.bf16 %v70
  %v135 = vunpack.c.l.bf16 %v71
  %v136 = vunpack.c.l.bf16 %v72
  %v137 = vunpack.c.l.bf16 %v73
  %v138 = vunpack.c.l.bf16 %v74
  %v139 = vunpack.c.l.bf16 %v75
  %v140 = vunpack.c.l.bf16 %v76
  %v141 = vunpack.c.l.bf16 %v77
  %v142 = vunpack.c.l.bf16 %v78
  %v143 = vunpack.c.l.bf16 %v79
  %v144 = vunpack.c.l.bf16 %v80
  %v145 = vld [vmem:[%s1] sm:$0x1]
  %vm146 = vcmask 64512
  %v147 = vsel %vm146, %v81, 0.0
  %v148 = vsel %vm146, %v82, 0.0
  %v149 = vadd.f32 %v147, %v148
  %v150 = vsel %vm146, %v83, 0.0
  %v151 = vadd.f32 %v149, %v150
  %v152 = vsel %vm146, %v84, 0.0
  %v153 = vadd.f32 %v151, %v152
  %v154 = vsel %vm146, %v85, 0.0
  %v155 = vadd.f32 %v153, %v154
  %v156 = vsel %vm146, %v86, 0.0
  %v157 = vadd.f32 %v155, %v156
  %v158 = vsel %vm146, %v87, 0.0
  %v159 = vadd.f32 %v157, %v158
  %v160 = vsel %vm146, %v88, 0.0
  %v161 = vadd.f32 %v159, %v160
  %v162 = vsel %vm146, %v89, 0.0
  %v163 = vadd.f32 %v161, %v162
  %v164 = vsel %vm146, %v90, 0.0
  %v165 = vadd.f32 %v163, %v164
  %v166 = vsel %vm146, %v91, 0.0
  %v167 = vadd.f32 %v165, %v166
  %v168 = vsel %vm146, %v92, 0.0
  %v169 = vadd.f32 %v167, %v168
  %v170 = vsel %vm146, %v93, 0.0
  %v171 = vadd.f32 %v169, %v170
  %v172 = vsel %vm146, %v94, 0.0
  %v173 = vadd.f32 %v171, %v172
  %v174 = vsel %vm146, %v95, 0.0
  %v175 = vadd.f32 %v173, %v174
  %v176 = vsel %vm146, %v96, 0.0
  %v177 = vadd.f32 %v175, %v176
  %v178 = vsel %vm146, %v97, 0.0
  %v179 = vadd.f32 %v177, %v178
  %v180 = vsel %vm146, %v98, 0.0
  %v181 = vadd.f32 %v179, %v180
  %v182 = vsel %vm146, %v99, 0.0
  %v183 = vadd.f32 %v181, %v182
  %v184 = vsel %vm146, %v100, 0.0
  %v185 = vadd.f32 %v183, %v184
  %v186 = vsel %vm146, %v101, 0.0
  %v187 = vadd.f32 %v185, %v186
  %v188 = vsel %vm146, %v102, 0.0
  %v189 = vadd.f32 %v187, %v188
  %v190 = vsel %vm146, %v103, 0.0
  %v191 = vadd.f32 %v189, %v190
  %v192 = vsel %vm146, %v104, 0.0
  %v193 = vadd.f32 %v191, %v192
  %v194 = vsel %vm146, %v105, 0.0
  %v195 = vadd.f32 %v193, %v194
  %v196 = vsel %vm146, %v106, 0.0
  %v197 = vadd.f32 %v195, %v196
  %v198 = vsel %vm146, %v107, 0.0
  %v199 = vadd.f32 %v197, %v198
  %v200 = vsel %vm146, %v108, 0.0
  %v201 = vadd.f32 %v199, %v200
  %v202 = vsel %vm146, %v109, 0.0
  %v203 = vadd.f32 %v201, %v202
  %v204 = vsel %vm146, %v110, 0.0
  %v205 = vadd.f32 %v203, %v204
  %v206 = vsel %vm146, %v111, 0.0
  %v207 = vadd.f32 %v205, %v206
  %v208 = vsel %vm146, %v112, 0.0
  %v209 = vadd.f32 %v207, %v208
  %v210 = vsel %vm146, %v113, 0.0
  %v211 = vadd.f32 %v209, %v210
  %v212 = vsel %vm146, %v114, 0.0
  %v213 = vadd.f32 %v211, %v212
  %v214 = vsel %vm146, %v115, 0.0
  %v215 = vadd.f32 %v213, %v214
  %v216 = vsel %vm146, %v116, 0.0
  %v217 = vadd.f32 %v215, %v216
  %v218 = vsel %vm146, %v117, 0.0
  %v219 = vadd.f32 %v217, %v218
  %v220 = vsel %vm146, %v118, 0.0
  %v221 = vadd.f32 %v219, %v220
  %v222 = vsel %vm146, %v119, 0.0
  %v223 = vadd.f32 %v221, %v222
  %v224 = vsel %vm146, %v120, 0.0
  %v225 = vadd.f32 %v223, %v224
  %v226 = vsel %vm146, %v121, 0.0
  %v227 = vadd.f32 %v225, %v226
  %v228 = vsel %vm146, %v122, 0.0
  %v229 = vadd.f32 %v227, %v228
  %v230 = vsel %vm146, %v123, 0.0
  %v231 = vadd.f32 %v229, %v230
  %v232 = vsel %vm146, %v124, 0.0
  %v233 = vadd.f32 %v231, %v232
  %v234 = vsel %vm146, %v125, 0.0
  %v235 = vadd.f32 %v233, %v234
  %v236 = vsel %vm146, %v126, 0.0
  %v237 = vadd.f32 %v235, %v236
  %v238 = vsel %vm146, %v127, 0.0
  %v239 = vadd.f32 %v237, %v238
  %v240 = vsel %vm146, %v128, 0.0
  %v241 = vadd.f32 %v239, %v240
  %v242 = vsel %vm146, %v129, 0.0
  %v243 = vadd.f32 %v241, %v242
  %v244 = vsel %vm146, %v130, 0.0
  %v245 = vadd.f32 %v243, %v244
  %v246 = vsel %vm146, %v131, 0.0
  %v247 = vadd.f32 %v245, %v246
  %v248 = vsel %vm146, %v132, 0.0
  %v249 = vadd.f32 %v247, %v248
  %v250 = vsel %vm146, %v133, 0.0
  %v251 = vadd.f32 %v249, %v250
  %v252 = vsel %vm146, %v134, 0.0
  %v253 = vadd.f32 %v251, %v252
  %v254 = vsel %vm146, %v135, 0.0
  %v255 = vadd.f32 %v253, %v254
  %v256 = vsel %vm146, %v136, 0.0
  %v257 = vadd.f32 %v255, %v256
  %v258 = vsel %vm146, %v137, 0.0
  %v259 = vadd.f32 %v257, %v258
  %v260 = vsel %vm146, %v138, 0.0
  %v261 = vadd.f32 %v259, %v260
  %v262 = vsel %vm146, %v139, 0.0
  %v263 = vadd.f32 %v261, %v262
  %v264 = vsel %vm146, %v140, 0.0
  %v265 = vadd.f32 %v263, %v264
  %v266 = vsel %vm146, %v141, 0.0
  %v267 = vadd.f32 %v265, %v266
  %v268 = vsel %vm146, %v142, 0.0
  %v269 = vadd.f32 %v267, %v268
  %v270 = vsel %vm146, %v143, 0.0
  %v271 = vadd.f32 %v269, %v270
  %v272 = vsel %vm146, %v144, 0.0
  %v273 = vadd.f32 %v271, %v272
  %v274 = vrot.slane %v273, 4
  %v275 = vadd.f32 %v273, %v274
  %v276 = vrot.slane %v275, 2
  %v277 = vadd.f32 %v275, %v276
  %v278 = vrot.slane %v277, 1
  %v279 = vadd.f32 %v277, %v278
  %v280 = vadd.f32 %v145, %v279
  %vm281 = vcmask 57344
  %282 = vst.msk [vmem:[%s1] sm:$0x1] %vm281, %v280
  %v283 = vld [vmem:[%s2] sm:$0x1]
  %v284 = vmul.f32 %v81, %v81
  %v285 = vmul.f32 %v82, %v82
  %v286 = vmul.f32 %v83, %v83
  %v287 = vmul.f32 %v84, %v84
  %v288 = vmul.f32 %v85, %v85
  %v289 = vmul.f32 %v86, %v86
  %v290 = vmul.f32 %v87, %v87
  %v291 = vmul.f32 %v88, %v88
  %v292 = vmul.f32 %v89, %v89
  %v293 = vmul.f32 %v90, %v90
  %v294 = vmul.f32 %v91, %v91
  %v295 = vmul.f32 %v92, %v92
  %v296 = vmul.f32 %v93, %v93
  %v297 = vmul.f32 %v94, %v94
  %v298 = vmul.f32 %v95, %v95
  %v299 = vmul.f32 %v96, %v96
  %v300 = vmul.f32 %v97, %v97
  %v301 = vmul.f32 %v98, %v98
  %v302 = vmul.f32 %v99, %v99
  %v303 = vmul.f32 %v100, %v100
  %v304 = vmul.f32 %v101, %v101
  %v305 = vmul.f32 %v102, %v102
  %v306 = vmul.f32 %v103, %v103
  %v307 = vmul.f32 %v104, %v104
  %v308 = vmul.f32 %v105, %v105
  %v309 = vmul.f32 %v106, %v106
  %v310 = vmul.f32 %v107, %v107
  %v311 = vmul.f32 %v108, %v108
  %v312 = vmul.f32 %v109, %v109
  %v313 = vmul.f32 %v110, %v110
  %v314 = vmul.f32 %v111, %v111
  %v315 = vmul.f32 %v112, %v112
  %v316 = vmul.f32 %v113, %v113
  %v317 = vmul.f32 %v114, %v114
  %v318 = vmul.f32 %v115, %v115
  %v319 = vmul.f32 %v116, %v116
  %v320 = vmul.f32 %v117, %v117
  %v321 = vmul.f32 %v118, %v118
  %v322 = vmul.f32 %v119, %v119
  %v323 = vmul.f32 %v120, %v120
  %v324 = vmul.f32 %v121, %v121
  %v325 = vmul.f32 %v122, %v122
  %v326 = vmul.f32 %v123, %v123
  %v327 = vmul.f32 %v124, %v124
  %v328 = vmul.f32 %v125, %v125
  %v329 = vmul.f32 %v126, %v126
  %v330 = vmul.f32 %v127, %v127
  %v331 = vmul.f32 %v128, %v128
  %v332 = vmul.f32 %v129, %v129
  %v333 = vmul.f32 %v130, %v130
  %v334 = vmul.f32 %v131, %v131
  %v335 = vmul.f32 %v132, %v132
  %v336 = vmul.f32 %v133, %v133
  %v337 = vmul.f32 %v134, %v134
  %v338 = vmul.f32 %v135, %v135
  %v339 = vmul.f32 %v136, %v136
  %v340 = vmul.f32 %v137, %v137
  %v341 = vmul.f32 %v138, %v138
  %v342 = vmul.f32 %v139, %v139
  %v343 = vmul.f32 %v140, %v140
  %v344 = vmul.f32 %v141, %v141
  %v345 = vmul.f32 %v142, %v142
  %v346 = vmul.f32 %v143, %v143
  %v347 = vmul.f32 %v144, %v144
  %v348 = vsel %vm146, %v284, 0.0
  %v349 = vsel %vm146, %v285, 0.0
  %v350 = vadd.f32 %v348, %v349
  %v351 = vsel %vm146, %v286, 0.0
  %v352 = vadd.f32 %v350, %v351
  %v353 = vsel %vm146, %v287, 0.0
  %v354 = vadd.f32 %v352, %v353
  %v355 = vsel %vm146, %v288, 0.0
  %v356 = vadd.f32 %v354, %v355
  %v357 = vsel %vm146, %v289, 0.0
  %v358 = vadd.f32 %v356, %v357
  %v359 = vsel %vm146, %v290, 0.0
  %v360 = vadd.f32 %v358, %v359
  %v361 = vsel %vm146, %v291, 0.0
  %v362 = vadd.f32 %v360, %v361
  %v363 = vsel %vm146, %v292, 0.0
  %v364 = vadd.f32 %v362, %v363
  %v365 = vsel %vm146, %v293, 0.0
  %v366 = vadd.f32 %v364, %v365
  %v367 = vsel %vm146, %v294, 0.0
  %v368 = vadd.f32 %v366, %v367
  %v369 = vsel %vm146, %v295, 0.0
  %v370 = vadd.f32 %v368, %v369
  %v371 = vsel %vm146, %v296, 0.0
  %v372 = vadd.f32 %v370, %v371
  %v373 = vsel %vm146, %v297, 0.0
  %v374 = vadd.f32 %v372, %v373
  %v375 = vsel %vm146, %v298, 0.0
  %v376 = vadd.f32 %v374, %v375
  %v377 = vsel %vm146, %v299, 0.0
  %v378 = vadd.f32 %v376, %v377
  %v379 = vsel %vm146, %v300, 0.0
  %v380 = vadd.f32 %v378, %v379
  %v381 = vsel %vm146, %v301, 0.0
  %v382 = vadd.f32 %v380, %v381
  %v383 = vsel %vm146, %v302, 0.0
  %v384 = vadd.f32 %v382, %v383
  %v385 = vsel %vm146, %v303, 0.0
  %v386 = vadd.f32 %v384, %v385
  %v387 = vsel %vm146, %v304, 0.0
  %v388 = vadd.f32 %v386, %v387
  %v389 = vsel %vm146, %v305, 0.0
  %v390 = vadd.f32 %v388, %v389
  %v391 = vsel %vm146, %v306, 0.0
  %v392 = vadd.f32 %v390, %v391
  %v393 = vsel %vm146, %v307, 0.0
  %v394 = vadd.f32 %v392, %v393
  %v395 = vsel %vm146, %v308, 0.0
  %v396 = vadd.f32 %v394, %v395
  %v397 = vsel %vm146, %v309, 0.0
  %v398 = vadd.f32 %v396, %v397
  %v399 = vsel %vm146, %v310, 0.0
  %v400 = vadd.f32 %v398, %v399
  %v401 = vsel %vm146, %v311, 0.0
  %v402 = vadd.f32 %v400, %v401
  %v403 = vsel %vm146, %v312, 0.0
  %v404 = vadd.f32 %v402, %v403
  %v405 = vsel %vm146, %v313, 0.0
  %v406 = vadd.f32 %v404, %v405
  %v407 = vsel %vm146, %v314, 0.0
  %v408 = vadd.f32 %v406, %v407
  %v409 = vsel %vm146, %v315, 0.0
  %v410 = vadd.f32 %v408, %v409
  %v411 = vsel %vm146, %v316, 0.0
  %v412 = vadd.f32 %v410, %v411
  %v413 = vsel %vm146, %v317, 0.0
  %v414 = vadd.f32 %v412, %v413
  %v415 = vsel %vm146, %v318, 0.0
  %v416 = vadd.f32 %v414, %v415
  %v417 = vsel %vm146, %v319, 0.0
  %v418 = vadd.f32 %v416, %v417
  %v419 = vsel %vm146, %v320, 0.0
  %v420 = vadd.f32 %v418, %v419
  %v421 = vsel %vm146, %v321, 0.0
  %v422 = vadd.f32 %v420, %v421
  %v423 = vsel %vm146, %v322, 0.0
  %v424 = vadd.f32 %v422, %v423
  %v425 = vsel %vm146, %v323, 0.0
  %v426 = vadd.f32 %v424, %v425
  %v427 = vsel %vm146, %v324, 0.0
  %v428 = vadd.f32 %v426, %v427
  %v429 = vsel %vm146, %v325, 0.0
  %v430 = vadd.f32 %v428, %v429
  %v431 = vsel %vm146, %v326, 0.0
  %v432 = vadd.f32 %v430, %v431
  %v433 = vsel %vm146, %v327, 0.0
  %v434 = vadd.f32 %v432, %v433
  %v435 = vsel %vm146, %v328, 0.0
  %v436 = vadd.f32 %v434, %v435
  %v437 = vsel %vm146, %v329, 0.0
  %v438 = vadd.f32 %v436, %v437
  %v439 = vsel %vm146, %v330, 0.0
  %v440 = vadd.f32 %v438, %v439
  %v441 = vsel %vm146, %v331, 0.0
  %v442 = vadd.f32 %v440, %v441
  %v443 = vsel %vm146, %v332, 0.0
  %v444 = vadd.f32 %v442, %v443
  %v445 = vsel %vm146, %v333, 0.0
  %v446 = vadd.f32 %v444, %v445
  %v447 = vsel %vm146, %v334, 0.0
  %v448 = vadd.f32 %v446, %v447
  %v449 = vsel %vm146, %v335, 0.0
  %v450 = vadd.f32 %v448, %v449
  %v451 = vsel %vm146, %v336, 0.0
  %v452 = vadd.f32 %v450, %v451
  %v453 = vsel %vm146, %v337, 0.0
  %v454 = vadd.f32 %v452, %v453
  %v455 = vsel %vm146, %v338, 0.0
  %v456 = vadd.f32 %v454, %v455
  %v457 = vsel %vm146, %v339, 0.0
  %v458 = vadd.f32 %v456, %v457
  %v459 = vsel %vm146, %v340, 0.0
  %v460 = vadd.f32 %v458, %v459
  %v461 = vsel %vm146, %v341, 0.0
  %v462 = vadd.f32 %v460, %v461
  %v463 = vsel %vm146, %v342, 0.0
  %v464 = vadd.f32 %v462, %v463
  %v465 = vsel %vm146, %v343, 0.0
  %v466 = vadd.f32 %v464, %v465
  %v467 = vsel %vm146, %v344, 0.0
  %v468 = vadd.f32 %v466, %v467
  %v469 = vsel %vm146, %v345, 0.0
  %v470 = vadd.f32 %v468, %v469
  %v471 = vsel %vm146, %v346, 0.0
  %v472 = vadd.f32 %v470, %v471
  %v473 = vsel %vm146, %v347, 0.0
  %v474 = vadd.f32 %v472, %v473
  %v475 = vrot.slane %v474, 4
  %v476 = vadd.f32 %v474, %v475
  %v477 = vrot.slane %v476, 2
  %v478 = vadd.f32 %v476, %v477
  %v479 = vrot.slane %v478, 1
  %v480 = vadd.f32 %v478, %v479
  %v481 = vadd.f32 %v283, %v480
  %482 = vst.msk [vmem:[%s2] sm:$0x1] %vm281, %v481
  // Predicated region
  $region10: #{generator_forward.23} parent=0 // pred_check
    _
  $region11: #{generator_forward.23} parent=0 // pred_check_branch
    %484 = sbr.rel (0) target = $region13
  $region12: #{generator_forward.23} parent=0 // pred_region
    _
  $region13: #{generator_forward.23} parent=0 // pred_fallthru
    _
  // Predicated region
  $region14: #{generator_forward.23} parent=0 // pred_check
    _
  $region15: #{generator_forward.23} parent=0 // pred_check_branch
    %486 = sbr.rel (0) target = $region17
  $region16: #{generator_forward.23} parent=0 // pred_region
    _
  $region17: #{generator_forward.23} parent=0 // pred_fallthru
    _
  // Predicated region
  $region18: #{generator_forward.23} parent=0 // pred_check
    _
  $region19: #{generator_forward.23} parent=0 // pred_check_branch
    %488 = sbr.rel (0) target = $region21
  $region20: #{generator_forward.23} parent=0 // pred_region
    _
  $region21: #{generator_forward.23} parent=0 // pred_fallthru
    _
  // Predicated region
  $region22: #{generator_forward.23} parent=0 // pred_check
    _
  $region23: #{generator_forward.23} parent=0 // pred_check_branch
    %490 = sbr.rel (0) target = $region25
  $region24: #{generator_forward.23} parent=0 // pred_region
    _
  $region25: #{generator_forward.23} parent=0 // pred_fallthru
    _

// kernel: generator_forward.24
$region0: #{generator_forward.24}
  #allocation0 [shape = 'u32[]', space=smem, size = 0x4, offset = 0x4, fixed_abs, tag = 'smem constant byte address 0x4 - core index']
  #allocation1 [shape = 'u32[72,128]{1,0:T(1,128)}', space=vmem, size = 0x9000, scoped, tag = 'internal scratch']
  %s0 = inlined_call_operand.vmem [shape: bf16[512,8], index: 0, kind: input, shape index: {}]
  %s1 = inlined_call_operand.vmem [shape: f32[1,8], index: 1, kind: input, shape index: {}]
  %s2 = inlined_call_operand.vmem [shape: f32[1,8], index: 2, kind: input, shape index: {}]
  %s3 = inlined_call_operand.vmem [shape: f32[1,8], index: 3, kind: input, shape index: {}]
  %s4 = inlined_call_operand.vmem [shape: f32[1,8], index: 4, kind: input, shape index: {}]
  %s5 = inlined_call_operand.vmem [shape: bf16[512,8], index: 5, kind: output, shape index: {}]
  %s6 = sld [smem:[#allocation0]]
  $region30: #{generator_forward.24} parent=0
    _
  %s8 = ssub.s32 1, %s6
  %s9 = scalar_select 0, %s8, %s6
  // Predicated region
  $region2: #{generator_forward.24} parent=0 // pred_check
    _
  $region3: #{generator_forward.24} parent=0 // pred_check_branch
    %11 = sbr.rel (0) target = $region5
  $region4: #{generator_forward.24} parent=0 // pred_region
    _
  $region5: #{generator_forward.24} parent=0 // pred_fallthru
    _
  // Predicated region
  $region6: #{generator_forward.24} parent=0 // pred_check
    _
  $region7: #{generator_forward.24} parent=0 // pred_check_branch
    %13 = sbr.rel (0) target = $region9
  $region8: #{generator_forward.24} parent=0 // pred_region
    _
  $region9: #{generator_forward.24} parent=0 // pred_fallthru
    _
  // Predicated region
  $region10: #{generator_forward.24} parent=0 // pred_check
    _
  $region11: #{generator_forward.24} parent=0 // pred_check_branch
    %15 = sbr.rel (0) target = $region13
  $region12: #{generator_forward.24} parent=0 // pred_region
    _
  $region13: #{generator_forward.24} parent=0 // pred_fallthru
    _
  // Predicated region
  $region14: #{generator_forward.24} parent=0 // pred_check
    _
  $region15: #{generator_forward.24} parent=0 // pred_check_branch
    %17 = sbr.rel (0) target = $region17
  $region16: #{generator_forward.24} parent=0 // pred_region
    _
  $region17: #{generator_forward.24} parent=0 // pred_fallthru
    _
  // Predicated region
  $region18: #{generator_forward.24} parent=0 // pred_check
    _
  $region19: #{generator_forward.24} parent=0 // pred_check_branch
    %19 = sbr.rel (0) target = $region21
  $region20: #{generator_forward.24} parent=0 // pred_region
    _
  $region21: #{generator_forward.24} parent=0 // pred_fallthru
    _
  %v20 = vld [vmem:[%s0] sm:$0xf]
  %v21 = vld [vmem:[%s0 + $0x4] sm:$0xf]
  %v22 = vld [vmem:[%s0 + $0x8] sm:$0xf]
  %v23 = vld [vmem:[%s0 + $0xc] sm:$0xf]
  %v24 = vld [vmem:[%s0 + $0x10] sm:$0xf]
  %v25 = vld [vmem:[%s0 + $0x14] sm:$0xf]
  %v26 = vld [vmem:[%s0 + $0x18] sm:$0xf]
  %v27 = vld [vmem:[%s0 + $0x1c] sm:$0xf]
  %v28 = vld [vmem:[%s0 + $0x20] sm:$0xf]
  %v29 = vld [vmem:[%s0 + $0x24] sm:$0xf]
  %v30 = vld [vmem:[%s0 + $0x28] sm:$0xf]
  %v31 = vld [vmem:[%s0 + $0x2c] sm:$0xf]
  %v32 = vld [vmem:[%s0 + $0x30] sm:$0xf]
  %v33 = vld [vmem:[%s0 + $0x34] sm:$0xf]
  %v34 = vld [vmem:[%s0 + $0x38] sm:$0xf]
  %v35 = vld [vmem:[%s0 + $0x3c] sm:$0xf]
  %v36 = vld [vmem:[%s0 + $0x40] sm:$0xf]
  %v37 = vld [vmem:[%s0 + $0x44] sm:$0xf]
  %v38 = vld [vmem:[%s0 + $0x48] sm:$0xf]
  %v39 = vld [vmem:[%s0 + $0x4c] sm:$0xf]
  %v40 = vld [vmem:[%s0 + $0x50] sm:$0xf]
  %v41 = vld [vmem:[%s0 + $0x54] sm:$0xf]
  %v42 = vld [vmem:[%s0 + $0x58] sm:$0xf]
  %v43 = vld [vmem:[%s0 + $0x5c] sm:$0xf]
  %v44 = vld [vmem:[%s0 + $0x60] sm:$0xf]
  %v45 = vld [vmem:[%s0 + $0x64] sm:$0xf]
  %v46 = vld [vmem:[%s0 + $0x68] sm:$0xf]
  %v47 = vld [vmem:[%s0 + $0x6c] sm:$0xf]
  %v48 = vld [vmem:[%s0 + $0x70] sm:$0xf]
  %v49 = vld [vmem:[%s0 + $0x74] sm:$0xf]
  %v50 = vld [vmem:[%s0 + $0x78] sm:$0xf]
  %v51 = vld [vmem:[%s0 + $0x7c] sm:$0xf]
  %v52 = vld [vmem:[%s0 + $0x80] sm:$0xf]
  %v53 = vld [vmem:[%s0 + $0x84] sm:$0xf]
  %v54 = vld [vmem:[%s0 + $0x88] sm:$0xf]
  %v55 = vld [vmem:[%s0 + $0x8c] sm:$0xf]
  %v56 = vld [vmem:[%s0 + $0x90] sm:$0xf]
  %v57 = vld [vmem:[%s0 + $0x94] sm:$0xf]
  %v58 = vld [vmem:[%s0 + $0x98] sm:$0xf]
  %v59 = vld [vmem:[%s0 + $0x9c] sm:$0xf]
  %v60 = vld [vmem:[%s0 + $0xa0] sm:$0xf]
  %v61 = vld [vmem:[%s0 + $0xa4] sm:$0xf]
  %v62 = vld [vmem:[%s0 + $0xa8] sm:$0xf]
  %v63 = vld [vmem:[%s0 + $0xac] sm:$0xf]
  %v64 = vld [vmem:[%s0 + $0xb0] sm:$0xf]
  %v65 = vld [vmem:[%s0 + $0xb4] sm:$0xf]
  %v66 = vld [vmem:[%s0 + $0xb8] sm:$0xf]
  %v67 = vld [vmem:[%s0 + $0xbc] sm:$0xf]
  %v68 = vld [vmem:[%s0 + $0xc0] sm:$0xf]
  %v69 = vld [vmem:[%s0 + $0xc4] sm:$0xf]
  %v70 = vld [vmem:[%s0 + $0xc8] sm:$0xf]
  %v71 = vld [vmem:[%s0 + $0xcc] sm:$0xf]
  %v72 = vld [vmem:[%s0 + $0xd0] sm:$0xf]
  %v73 = vld [vmem:[%s0 + $0xd4] sm:$0xf]
  %v74 = vld [vmem:[%s0 + $0xd8] sm:$0xf]
  %v75 = vld [vmem:[%s0 + $0xdc] sm:$0xf]
  %v76 = vld [vmem:[%s0 + $0xe0] sm:$0xf]
  %v77 = vld [vmem:[%s0 + $0xe4] sm:$0xf]
  %v78 = vld [vmem:[%s0 + $0xe8] sm:$0xf]
  %v79 = vld [vmem:[%s0 + $0xec] sm:$0xf]
  %v80 = vld [vmem:[%s0 + $0xf0] sm:$0xf]
  %v81 = vld [vmem:[%s0 + $0xf4] sm:$0xf]
  %v82 = vld [vmem:[%s0 + $0xf8] sm:$0xf]
  %v83 = vld [vmem:[%s0 + $0xfc] sm:$0xf]
  %v84 = vunpack.c.l.bf16 %v20
  %v85 = vunpack.c.l.bf16 %v21
  %v86 = vunpack.c.l.bf16 %v22
  %v87 = vunpack.c.l.bf16 %v23
  %v88 = vunpack.c.l.bf16 %v24
  %v89 = vunpack.c.l.bf16 %v25
  %v90 = vunpack.c.l.bf16 %v26
  %v91 = vunpack.c.l.bf16 %v27
  %v92 = vunpack.c.l.bf16 %v28
  %v93 = vunpack.c.l.bf16 %v29
  %v94 = vunpack.c.l.bf16 %v30
  %v95 = vunpack.c.l.bf16 %v31
  %v96 = vunpack.c.l.bf16 %v32
  %v97 = vunpack.c.l.bf16 %v33
  %v98 = vunpack.c.l.bf16 %v34
  %v99 = vunpack.c.l.bf16 %v35
  %v100 = vunpack.c.l.bf16 %v36
  %v101 = vunpack.c.l.bf16 %v37
  %v102 = vunpack.c.l.bf16 %v38
  %v103 = vunpack.c.l.bf16 %v39
  %v104 = vunpack.c.l.bf16 %v40
  %v105 = vunpack.c.l.bf16 %v41
  %v106 = vunpack.c.l.bf16 %v42
  %v107 = vunpack.c.l.bf16 %v43
  %v108 = vunpack.c.l.bf16 %v44
  %v109 = vunpack.c.l.bf16 %v45
  %v110 = vunpack.c.l.bf16 %v46
  %v111 = vunpack.c.l.bf16 %v47
  %v112 = vunpack.c.l.bf16 %v48
  %v113 = vunpack.c.l.bf16 %v49
  %v114 = vunpack.c.l.bf16 %v50
  %v115 = vunpack.c.l.bf16 %v51
  %v116 = vunpack.c.l.bf16 %v52
  %v117 = vunpack.c.l.bf16 %v53
  %v118 = vunpack.c.l.bf16 %v54
  %v119 = vunpack.c.l.bf16 %v55
  %v120 = vunpack.c.l.bf16 %v56
  %v121 = vunpack.c.l.bf16 %v57
  %v122 = vunpack.c.l.bf16 %v58
  %v123 = vunpack.c.l.bf16 %v59
  %v124 = vunpack.c.l.bf16 %v60
  %v125 = vunpack.c.l.bf16 %v61
  %v126 = vunpack.c.l.bf16 %v62
  %v127 = vunpack.c.l.bf16 %v63
  %v128 = vunpack.c.l.bf16 %v64
  %v129 = vunpack.c.l.bf16 %v65
  %v130 = vunpack.c.l.bf16 %v66
  %v131 = vunpack.c.l.bf16 %v67
  %v132 = vunpack.c.l.bf16 %v68
  %v133 = vunpack.c.l.bf16 %v69
  %v134 = vunpack.c.l.bf16 %v70
  %v135 = vunpack.c.l.bf16 %v71
  %v136 = vunpack.c.l.bf16 %v72
  %v137 = vunpack.c.l.bf16 %v73
  %v138 = vunpack.c.l.bf16 %v74
  %v139 = vunpack.c.l.bf16 %v75
  %v140 = vunpack.c.l.bf16 %v76
  %v141 = vunpack.c.l.bf16 %v77
  %v142 = vunpack.c.l.bf16 %v78
  %v143 = vunpack.c.l.bf16 %v79
  %v144 = vunpack.c.l.bf16 %v80
  %v145 = vunpack.c.l.bf16 %v81
  %v146 = vunpack.c.l.bf16 %v82
  %v147 = vunpack.c.l.bf16 %v83
  %v148 = vld [vmem:[%s1] sm:$0x1]
  %v149 = vmul.f32 %v148, 0.001953125
  %v150 = vld [vmem:[%s2] sm:$0x1]
  %v151 = vmul.f32 %v150, 0.001953125
  %v152 = vmul.f32 %v149, %v149
  %v153 = vsub.f32 %v151, %v152
  %v154 = vmax.f32 %v153, 0.0
  %v155 = vld [vmem:[%s3] sm:$0x1]
  %v156 = vadd.f32 %v154, 1e-05
  %v157 = vrsqrt.pop %v156
  %v158 = vmul.f32 %v157, %v156
  %v159 = vmul.f32 %v158, %v157
  %v160 = vmul.f32 0.5, %v159
  %v161 = vsub.f32 1.5, %v160
  %v162 = vmul.f32 %v157, %v161
  %vm163 = vweird.f32 %v156
  %vm164 = vweird.f32 %v157
  %vm165 = vmor %vm163, %vm164
  %v166 = vsel %vm165, %v157, %v162
  %v167 = vmul.f32 %v155, %v166
  %v168 = vld [vmem:[%s4] sm:$0x1]
  %v169 = vmul.f32 %v149, %v167
  %v170 = vsub.f32 %v168, %v169
  %v172 = vperm.slane %v167, 0
  %v174 = vmul.f32 %v84, %v172
  %v175 = vmul.f32 %v85, %v172
  %v176 = vmul.f32 %v86, %v172
  %v177 = vmul.f32 %v87, %v172
  %v178 = vmul.f32 %v88, %v172
  %v179 = vmul.f32 %v89, %v172
  %v180 = vmul.f32 %v90, %v172
  %v181 = vmul.f32 %v91, %v172
  %v182 = vmul.f32 %v92, %v172
  %v183 = vmul.f32 %v93, %v172
  %v184 = vmul.f32 %v94, %v172
  %v185 = vmul.f32 %v95, %v172
  %v186 = vmul.f32 %v96, %v172
  %v187 = vmul.f32 %v97, %v172
  %v188 = vmul.f32 %v98, %v172
  %v189 = vmul.f32 %v99, %v172
  %v190 = vmul.f32 %v100, %v172
  %v191 = vmul.f32 %v101, %v172
  %v192 = vmul.f32 %v102, %v172
  %v193 = vmul.f32 %v103, %v172
  %v194 = vmul.f32 %v104, %v172
  %v195 = vmul.f32 %v105, %v172
  %v196 = vmul.f32 %v106, %v172
  %v197 = vmul.f32 %v107, %v172
  %v198 = vmul.f32 %v108, %v172
  %v199 = vmul.f32 %v109, %v172
  %v200 = vmul.f32 %v110, %v172
  %v201 = vmul.f32 %v111, %v172
  %v202 = vmul.f32 %v112, %v172
  %v203 = vmul.f32 %v113, %v172
  %v204 = vmul.f32 %v114, %v172
  %v205 = vmul.f32 %v115, %v172
  %v206 = vmul.f32 %v116, %v172
  %v207 = vmul.f32 %v117, %v172
  %v208 = vmul.f32 %v118, %v172
  %v209 = vmul.f32 %v119, %v172
  %v210 = vmul.f32 %v120, %v172
  %v211 = vmul.f32 %v121, %v172
  %v212 = vmul.f32 %v122, %v172
  %v213 = vmul.f32 %v123, %v172
  %v214 = vmul.f32 %v124, %v172
  %v215 = vmul.f32 %v125, %v172
  %v216 = vmul.f32 %v126, %v172
  %v217 = vmul.f32 %v127, %v172
  %v218 = vmul.f32 %v128, %v172
  %v219 = vmul.f32 %v129, %v172
  %v220 = vmul.f32 %v130, %v172
  %v221 = vmul.f32 %v131, %v172
  %v222 = vmul.f32 %v132, %v172
  %v223 = vmul.f32 %v133, %v172
  %v224 = vmul.f32 %v134, %v172
  %v225 = vmul.f32 %v135, %v172
  %v226 = vmul.f32 %v136, %v172
  %v227 = vmul.f32 %v137, %v172
  %v228 = vmul.f32 %v138, %v172
  %v229 = vmul.f32 %v139, %v172
  %v230 = vmul.f32 %v140, %v172
  %v231 = vmul.f32 %v141, %v172
  %v232 = vmul.f32 %v142, %v172
  %v233 = vmul.f32 %v143, %v172
  %v234 = vmul.f32 %v144, %v172
  %v235 = vmul.f32 %v145, %v172
  %v236 = vmul.f32 %v146, %v172
  %v237 = vmul.f32 %v147, %v172
  %v239 = vperm.slane %v170, 0
  %v241 = vadd.f32 %v174, %v239
  %v242 = vadd.f32 %v175, %v239
  %v243 = vadd.f32 %v176, %v239
  %v244 = vadd.f32 %v177, %v239
  %v245 = vadd.f32 %v178, %v239
  %v246 = vadd.f32 %v179, %v239
  %v247 = vadd.f32 %v180, %v239
  %v248 = vadd.f32 %v181, %v239
  %v249 = vadd.f32 %v182, %v239
  %v250 = vadd.f32 %v183, %v239
  %v251 = vadd.f32 %v184, %v239
  %v252 = vadd.f32 %v185, %v239
  %v253 = vadd.f32 %v186, %v239
  %v254 = vadd.f32 %v187, %v239
  %v255 = vadd.f32 %v188, %v239
  %v256 = vadd.f32 %v189, %v239
  %v257 = vadd.f32 %v190, %v239
  %v258 = vadd.f32 %v191, %v239
  %v259 = vadd.f32 %v192, %v239
  %v260 = vadd.f32 %v193, %v239
  %v261 = vadd.f32 %v194, %v239
  %v262 = vadd.f32 %v195, %v239
  %v263 = vadd.f32 %v196, %v239
  %v264 = vadd.f32 %v197, %v239
  %v265 = vadd.f32 %v198, %v239
  %v266 = vadd.f32 %v199, %v239
  %v267 = vadd.f32 %v200, %v239
  %v268 = vadd.f32 %v201, %v239
  %v269 = vadd.f32 %v202, %v239
  %v270 = vadd.f32 %v203, %v239
  %v271 = vadd.f32 %v204, %v239
  %v272 = vadd.f32 %v205, %v239
  %v273 = vadd.f32 %v206, %v239
  %v274 = vadd.f32 %v207, %v239
  %v275 = vadd.f32 %v208, %v239
  %v276 = vadd.f32 %v209, %v239
  %v277 = vadd.f32 %v210, %v239
  %v278 = vadd.f32 %v211, %v239
  %v279 = vadd.f32 %v212, %v239
  %v280 = vadd.f32 %v213, %v239
  %v281 = vadd.f32 %v214, %v239
  %v282 = vadd.f32 %v215, %v239
  %v283 = vadd.f32 %v216, %v239
  %v284 = vadd.f32 %v217, %v239
  %v285 = vadd.f32 %v218, %v239
  %v286 = vadd.f32 %v219, %v239
  %v287 = vadd.f32 %v220, %v239
  %v288 = vadd.f32 %v221, %v239
  %v289 = vadd.f32 %v222, %v239
  %v290 = vadd.f32 %v223, %v239
  %v291 = vadd.f32 %v224, %v239
  %v292 = vadd.f32 %v225, %v239
  %v293 = vadd.f32 %v226, %v239
  %v294 = vadd.f32 %v227, %v239
  %v295 = vadd.f32 %v228, %v239
  %v296 = vadd.f32 %v229, %v239
  %v297 = vadd.f32 %v230, %v239
  %v298 = vadd.f32 %v231, %v239
  %v299 = vadd.f32 %v232, %v239
  %v300 = vadd.f32 %v233, %v239
  %v301 = vadd.f32 %v234, %v239
  %v302 = vadd.f32 %v235, %v239
  %v303 = vadd.f32 %v236, %v239
  %v304 = vadd.f32 %v237, %v239
  %v305 = vmax.f32 %v241, 0.0
  %v306 = vmax.f32 %v242, 0.0
  %v307 = vmax.f32 %v243, 0.0
  %v308 = vmax.f32 %v244, 0.0
  %v309 = vmax.f32 %v245, 0.0
  %v310 = vmax.f32 %v246, 0.0
  %v311 = vmax.f32 %v247, 0.0
  %v312 = vmax.f32 %v248, 0.0
  %v313 = vmax.f32 %v249, 0.0
  %v314 = vmax.f32 %v250, 0.0
  %v315 = vmax.f32 %v251, 0.0
  %v316 = vmax.f32 %v252, 0.0
  %v317 = vmax.f32 %v253, 0.0
  %v318 = vmax.f32 %v254, 0.0
  %v319 = vmax.f32 %v255, 0.0
  %v320 = vmax.f32 %v256, 0.0
  %v321 = vmax.f32 %v257, 0.0
  %v322 = vmax.f32 %v258, 0.0
  %v323 = vmax.f32 %v259, 0.0
  %v324 = vmax.f32 %v260, 0.0
  %v325 = vmax.f32 %v261, 0.0
  %v326 = vmax.f32 %v262, 0.0
  %v327 = vmax.f32 %v263, 0.0
  %v328 = vmax.f32 %v264, 0.0
  %v329 = vmax.f32 %v265, 0.0
  %v330 = vmax.f32 %v266, 0.0
  %v331 = vmax.f32 %v267, 0.0
  %v332 = vmax.f32 %v268, 0.0
  %v333 = vmax.f32 %v269, 0.0
  %v334 = vmax.f32 %v270, 0.0
  %v335 = vmax.f32 %v271, 0.0
  %v336 = vmax.f32 %v272, 0.0
  %v337 = vmax.f32 %v273, 0.0
  %v338 = vmax.f32 %v274, 0.0
  %v339 = vmax.f32 %v275, 0.0
  %v340 = vmax.f32 %v276, 0.0
  %v341 = vmax.f32 %v277, 0.0
  %v342 = vmax.f32 %v278, 0.0
  %v343 = vmax.f32 %v279, 0.0
  %v344 = vmax.f32 %v280, 0.0
  %v345 = vmax.f32 %v281, 0.0
  %v346 = vmax.f32 %v282, 0.0
  %v347 = vmax.f32 %v283, 0.0
  %v348 = vmax.f32 %v284, 0.0
  %v349 = vmax.f32 %v285, 0.0
  %v350 = vmax.f32 %v286, 0.0
  %v351 = vmax.f32 %v287, 0.0
  %v352 = vmax.f32 %v288, 0.0
  %v353 = vmax.f32 %v289, 0.0
  %v354 = vmax.f32 %v290, 0.0
  %v355 = vmax.f32 %v291, 0.0
  %v356 = vmax.f32 %v292, 0.0
  %v357 = vmax.f32 %v293, 0.0
  %v358 = vmax.f32 %v294, 0.0
  %v359 = vmax.f32 %v295, 0.0
  %v360 = vmax.f32 %v296, 0.0
  %v361 = vmax.f32 %v297, 0.0
  %v362 = vmax.f32 %v298, 0.0
  %v363 = vmax.f32 %v299, 0.0
  %v364 = vmax.f32 %v300, 0.0
  %v365 = vmax.f32 %v301, 0.0
  %v366 = vmax.f32 %v302, 0.0
  %v367 = vmax.f32 %v303, 0.0
  %v368 = vmax.f32 %v304, 0.0
  %v369 = vpack.c.bf16 %v305, %v305
  %v370 = vpack.c.bf16 %v306, %v306
  %v371 = vpack.c.bf16 %v307, %v307
  %v372 = vpack.c.bf16 %v308, %v308
  %v373 = vpack.c.bf16 %v309, %v309
  %v374 = vpack.c.bf16 %v310, %v310
  %v375 = vpack.c.bf16 %v311, %v311
  %v376 = vpack.c.bf16 %v312, %v312
  %v377 = vpack.c.bf16 %v313, %v313
  %v378 = vpack.c.bf16 %v314, %v314
  %v379 = vpack.c.bf16 %v315, %v315
  %v380 = vpack.c.bf16 %v316, %v316
  %v381 = vpack.c.bf16 %v317, %v317
  %v382 = vpack.c.bf16 %v318, %v318
  %v383 = vpack.c.bf16 %v319, %v319
  %v384 = vpack.c.bf16 %v320, %v320
  %v385 = vpack.c.bf16 %v321, %v321
  %v386 = vpack.c.bf16 %v322, %v322
  %v387 = vpack.c.bf16 %v323, %v323
  %v388 = vpack.c.bf16 %v324, %v324
  %v389 = vpack.c.bf16 %v325, %v325
  %v390 = vpack.c.bf16 %v326, %v326
  %v391 = vpack.c.bf16 %v327, %v327
  %v392 = vpack.c.bf16 %v328, %v328
  %v393 = vpack.c.bf16 %v329, %v329
  %v394 = vpack.c.bf16 %v330, %v330
  %v395 = vpack.c.bf16 %v331, %v331
  %v396 = vpack.c.bf16 %v332, %v332
  %v397 = vpack.c.bf16 %v333, %v333
  %v398 = vpack.c.bf16 %v334, %v334
  %v399 = vpack.c.bf16 %v335, %v335
  %v400 = vpack.c.bf16 %v336, %v336
  %v401 = vpack.c.bf16 %v337, %v337
  %v402 = vpack.c.bf16 %v338, %v338
  %v403 = vpack.c.bf16 %v339, %v339
  %v404 = vpack.c.bf16 %v340, %v340
  %v405 = vpack.c.bf16 %v341, %v341
  %v406 = vpack.c.bf16 %v342, %v342
  %v407 = vpack.c.bf16 %v343, %v343
  %v408 = vpack.c.bf16 %v344, %v344
  %v409 = vpack.c.bf16 %v345, %v345
  %v410 = vpack.c.bf16 %v346, %v346
  %v411 = vpack.c.bf16 %v347, %v347
  %v412 = vpack.c.bf16 %v348, %v348
  %v413 = vpack.c.bf16 %v349, %v349
  %v414 = vpack.c.bf16 %v350, %v350
  %v415 = vpack.c.bf16 %v351, %v351
  %v416 = vpack.c.bf16 %v352, %v352
  %v417 = vpack.c.bf16 %v353, %v353
  %v418 = vpack.c.bf16 %v354, %v354
  %v419 = vpack.c.bf16 %v355, %v355
  %v420 = vpack.c.bf16 %v356, %v356
  %v421 = vpack.c.bf16 %v357, %v357
  %v422 = vpack.c.bf16 %v358, %v358
  %v423 = vpack.c.bf16 %v359, %v359
  %v424 = vpack.c.bf16 %v360, %v360
  %v425 = vpack.c.bf16 %v361, %v361
  %v426 = vpack.c.bf16 %v362, %v362
  %v427 = vpack.c.bf16 %v363, %v363
  %v428 = vpack.c.bf16 %v364, %v364
  %v429 = vpack.c.bf16 %v365, %v365
  %v430 = vpack.c.bf16 %v366, %v366
  %v431 = vpack.c.bf16 %v367, %v367
  %v432 = vpack.c.bf16 %v368, %v368
  %vm433 = vcmask 60416
  %434 = vst.msk [vmem:[%s5] sm:$0xf] %vm433, %v369
  %435 = vst.msk [vmem:[%s5 + $0x4] sm:$0xf] %vm433, %v370
  %436 = vst.msk [vmem:[%s5 + $0x8] sm:$0xf] %vm433, %v371
  %437 = vst.msk [vmem:[%s5 + $0xc] sm:$0xf] %vm433, %v372
  %438 = vst.msk [vmem:[%s5 + $0x10] sm:$0xf] %vm433, %v373
  %439 = vst.msk [vmem:[%s5 + $0x14] sm:$0xf] %vm433, %v374
  %440 = vst.msk [vmem:[%s5 + $0x18] sm:$0xf] %vm433, %v375
  %441 = vst.msk [vmem:[%s5 + $0x1c] sm:$0xf] %vm433, %v376
  %442 = vst.msk [vmem:[%s5 + $0x20] sm:$0xf] %vm433, %v377
  %443 = vst.msk [vmem:[%s5 + $0x24] sm:$0xf] %vm433, %v378
  %444 = vst.msk [vmem:[%s5 + $0x28] sm:$0xf] %vm433, %v379
  %445 = vst.msk [vmem:[%s5 + $0x2c] sm:$0xf] %vm433, %v380
  %446 = vst.msk [vmem:[%s5 + $0x30] sm:$0xf] %vm433, %v381
  %447 = vst.msk [vmem:[%s5 + $0x34] sm:$0xf] %vm433, %v382
  %448 = vst.msk [vmem:[%s5 + $0x38] sm:$0xf] %vm433, %v383
  %449 = vst.msk [vmem:[%s5 + $0x3c] sm:$0xf] %vm433, %v384
  %450 = vst.msk [vmem:[%s5 + $0x40] sm:$0xf] %vm433, %v385
  %451 = vst.msk [vmem:[%s5 + $0x44] sm:$0xf] %vm433, %v386
  %452 = vst.msk [vmem:[%s5 + $0x48] sm:$0xf] %vm433, %v387
  %453 = vst.msk [vmem:[%s5 + $0x4c] sm:$0xf] %vm433, %v388
  %454 = vst.msk [vmem:[%s5 + $0x50] sm:$0xf] %vm433, %v389
  %455 = vst.msk [vmem:[%s5 + $0x54] sm:$0xf] %vm433, %v390
  %456 = vst.msk [vmem:[%s5 + $0x58] sm:$0xf] %vm433, %v391
  %457 = vst.msk [vmem:[%s5 + $0x5c] sm:$0xf] %vm433, %v392
  %458 = vst.msk [vmem:[%s5 + $0x60] sm:$0xf] %vm433, %v393
  %459 = vst.msk [vmem:[%s5 + $0x64] sm:$0xf] %vm433, %v394
  %460 = vst.msk [vmem:[%s5 + $0x68] sm:$0xf] %vm433, %v395
  %461 = vst.msk [vmem:[%s5 + $0x6c] sm:$0xf] %vm433, %v396
  %462 = vst.msk [vmem:[%s5 + $0x70] sm:$0xf] %vm433, %v397
  %463 = vst.msk [vmem:[%s5 + $0x74] sm:$0xf] %vm433, %v398
  %464 = vst.msk [vmem:[%s5 + $0x78] sm:$0xf] %vm433, %v399
  %465 = vst.msk [vmem:[%s5 + $0x7c] sm:$0xf] %vm433, %v400
  %466 = vst.msk [vmem:[%s5 + $0x80] sm:$0xf] %vm433, %v401
  %467 = vst.msk [vmem:[%s5 + $0x84] sm:$0xf] %vm433, %v402
  %468 = vst.msk [vmem:[%s5 + $0x88] sm:$0xf] %vm433, %v403
  %469 = vst.msk [vmem:[%s5 + $0x8c] sm:$0xf] %vm433, %v404
  %470 = vst.msk [vmem:[%s5 + $0x90] sm:$0xf] %vm433, %v405
  %471 = vst.msk [vmem:[%s5 + $0x94] sm:$0xf] %vm433, %v406
  %472 = vst.msk [vmem:[%s5 + $0x98] sm:$0xf] %vm433, %v407
  %473 = vst.msk [vmem:[%s5 + $0x9c] sm:$0xf] %vm433, %v408
  %474 = vst.msk [vmem:[%s5 + $0xa0] sm:$0xf] %vm433, %v409
  %475 = vst.msk [vmem:[%s5 + $0xa4] sm:$0xf] %vm433, %v410
  %476 = vst.msk [vmem:[%s5 + $0xa8] sm:$0xf] %vm433, %v411
  %477 = vst.msk [vmem:[%s5 + $0xac] sm:$0xf] %vm433, %v412
  %478 = vst.msk [vmem:[%s5 + $0xb0] sm:$0xf] %vm433, %v413
  %479 = vst.msk [vmem:[%s5 + $0xb4] sm:$0xf] %vm433, %v414
  %480 = vst.msk [vmem:[%s5 + $0xb8] sm:$0xf] %vm433, %v415
  %481 = vst.msk [vmem:[%s5 + $0xbc] sm:$0xf] %vm433, %v416
  %482 = vst.msk [vmem:[%s5 + $0xc0] sm:$0xf] %vm433, %v417
  %483 = vst.msk [vmem:[%s5 + $0xc4] sm:$0xf] %vm433, %v418
  %484 = vst.msk [vmem:[%s5 + $0xc8] sm:$0xf] %vm433, %v419
  %485 = vst.msk [vmem:[%s5 + $0xcc] sm:$0xf] %vm433, %v420
  %486 = vst.msk [vmem:[%s5 + $0xd0] sm:$0xf] %vm433, %v421
  %487 = vst.msk [vmem:[%s5 + $0xd4] sm:$0xf] %vm433, %v422
  %488 = vst.msk [vmem:[%s5 + $0xd8] sm:$0xf] %vm433, %v423
  %489 = vst.msk [vmem:[%s5 + $0xdc] sm:$0xf] %vm433, %v424
  %490 = vst.msk [vmem:[%s5 + $0xe0] sm:$0xf] %vm433, %v425
  %491 = vst.msk [vmem:[%s5 + $0xe4] sm:$0xf] %vm433, %v426
  %492 = vst.msk [vmem:[%s5 + $0xe8] sm:$0xf] %vm433, %v427
  %493 = vst.msk [vmem:[%s5 + $0xec] sm:$0xf] %vm433, %v428
  %494 = vst.msk [vmem:[%s5 + $0xf0] sm:$0xf] %vm433, %v429
  %495 = vst.msk [vmem:[%s5 + $0xf4] sm:$0xf] %vm433, %v430
  %496 = vst.msk [vmem:[%s5 + $0xf8] sm:$0xf] %vm433, %v431
  %497 = vst.msk [vmem:[%s5 + $0xfc] sm:$0xf] %vm433, %v432
  // Predicated region
  $region22: #{generator_forward.24} parent=0 // pred_check
    _
  $region23: #{generator_forward.24} parent=0 // pred_check_branch
    %499 = sbr.rel (0) target = $region25
  $region24: #{generator_forward.24} parent=0 // pred_region
    _
  $region25: #{generator_forward.24} parent=0 // pred_fallthru
    _
  // Predicated region
  $region26: #{generator_forward.24} parent=0 // pred_check
    _
  $region27: #{generator_forward.24} parent=0 // pred_check_branch
    %501 = sbr.rel (0) target = $region29
  $region28: #{generator_forward.24} parent=0 // pred_region
    _
  $region29: #{generator_forward.24} parent=0 // pred_fallthru
    _

// kernel: generator_forward.25
$region0: #{generator_forward.25}
  #allocation0 [shape = 'u32[]', space=smem, size = 0x4, offset = 0x4, fixed_abs, tag = 'smem constant byte address 0x4 - core index']
  #allocation1 [shape = 'u32[72,128]{1,0:T(1,128)}', space=vmem, size = 0x9000, scoped, tag = 'internal scratch']
  #allocation2 [shape = 'f32[512,12]{1,0:T(8,128)}', space=vmem, size = 0x40000, scoped, tag = 'scratch operand']
  %s0 = inlined_call_operand.vmem [shape: bf16[1024,32], index: 0, kind: input, shape index: {}]
  %s1 = inlined_call_operand.vmem [shape: bf16[32,12], index: 1, kind: input, shape index: {}]
  %s2 = inlined_call_operand.vmem [shape: f32[1,12], index: 2, kind: input, shape index: {}]
  %s3 = inlined_call_operand.vmem [shape: f32[1024,12], index: 3, kind: output, shape index: {}]
  %s4 = sld [smem:[#allocation0]]
  $region53: #{generator_forward.25} parent=0
    _
  %s6 = ssub.s32 1, %s4
  %s7 = scalar_select 0, %s6, %s4
  loop: start=0, step=1, limit=4
  $region2: #{generator_forward.25} parent=0 // loop_pre_header
    _
  $region3: #{generator_forward.25} parent=0 // loop_header
    %s9 = sphi 0, %s13
    %p10 = scmp.ge.s32.totalorder %s9, 4
    %s16 = sphi 0, %s35
    %s17 = sphi 0, %s31
    %s18 = sphi 0, %s27
    %s19 = sphi 0, %s16
    %s20 = sphi 0, %s17
    %s21 = sphi 0, %s18
    %s22 = sphi 0, %s19
    %s23 = sphi 0, %s20
    %s24 = sphi 0, %s21
    %s40 = sphi 0, %s42
    %s43 = sphi 0, %s40
    %s44 = sphi 0, %s43
    %s60 = sphi 0, %s44
    %s68 = sphi 0, %s70
    %s71 = sphi 0, %s68
    %s72 = sphi 0, %s71
    %s88 = sphi 0, %s72
    %s94 = sphi 0, %s96
    %s97 = sphi 0, %s94
    %s98 = sphi 0, %s97
    %s114 = sphi 0, %s98
    %s122 = sphi 0, %s124
    %s125 = sphi 0, %s122
    %s126 = sphi 0, %s125
    %s142 = sphi 0, %s126
  $region4: #{generator_forward.25} parent=0 // loop_header_branch
    %12 = sbr.rel (%p10) target = $region8
  $region5: #{generator_forward.25} parent=0 // loop_body
    %s14 = ssub.s32 %s9, 1
    %s15 = ssub.s32 %s9, 2
    %s25 = sadd.s32 1, %s18
    %p26 = scmp.ge.s32.totalorder %s25, 1
    %s27 = scalar_select %p26, 0, %s25
    %s28 = sadd.s32 1, %s17
    %s29 = scalar_select %p26, %s28, %s17
    %p30 = scmp.ge.s32.totalorder %s29, 1
    %s31 = scalar_select %p30, 0, %s29
    %s32 = sadd.s32 1, %s16
    %s33 = scalar_select %p30, %s32, %s16
    %p34 = scmp.ge.s32.totalorder %s33, 2
    %s35 = scalar_select %p34, 0, %s33
    %s36 = ssub.s32 %s16, %s35
    %s37 = ssub.s32 %s18, %s27
    %s38 = sor.u32 %s36, %s37
    %p39 = scmp.eq.s32.totalorder %s38, 0
    %s41 = sadd.s32 %s40, 1
    %s42 = scalar_select %p39, %s40, %s41
    %p45 = pneg %p39
    %p46 = scmp.eq.s32.totalorder %s9, 1
    %p47 = por %p45, %p46
    %p48 = scmp.ne.s32.totalorder %s40, %s43
    %p49 = scmp.eq.s32.totalorder %s9, 0
    %p50 = por %p48, %p49
    %p51 = scmp.ne.s32.totalorder %s40, %s43
    %p52 = scmp.eq.s32.totalorder %s14, 1
    %p53 = por %p51, %p52
    %p54 = scmp.ne.s32.totalorder %s43, %s44
    %p55 = scmp.eq.s32.totalorder %s14, 0
    %p56 = por %p54, %p55
    %p57 = scmp.ne.s32.totalorder %s43, %s44
    %p58 = scmp.eq.s32.totalorder %s15, 1
    %p59 = por %p57, %p58
    %p61 = scmp.ne.s32.totalorder %s44, %s60
    %p62 = scmp.eq.s32.totalorder %s15, 0
    %p63 = por %p61, %p62
    %s64 = ssub.s32 %s18, %s27
    %s65 = ssub.s32 %s17, %s31
    %s66 = sor.u32 %s64, %s65
    %p67 = scmp.eq.s32.totalorder %s66, 0
    %s69 = sadd.s32 %s68, 1
    %s70 = scalar_select %p67, %s68, %s69
    %p73 = pneg %p67
    %p74 = scmp.eq.s32.totalorder %s9, 1
    %p75 = por %p73, %p74
    %p76 = scmp.ne.s32.totalorder %s68, %s71
    %p77 = scmp.eq.s32.totalorder %s9, 0
    %p78 = por %p76, %p77
    %p79 = scmp.ne.s32.totalorder %s68, %s71
    %p80 = scmp.eq.s32.totalorder %s14, 1
    %p81 = por %p79, %p80
    %p82 = scmp.ne.s32.totalorder %s71, %s72
    %p83 = scmp.eq.s32.totalorder %s14, 0
    %p84 = por %p82, %p83
    %p85 = scmp.ne.s32.totalorder %s71, %s72
    %p86 = scmp.eq.s32.totalorder %s15, 1
    %p87 = por %p85, %p86
    %p89 = scmp.ne.s32.totalorder %s72, %s88
    %p90 = scmp.eq.s32.totalorder %s15, 0
    %p91 = por %p89, %p90
    %s92 = ssub.s32 %s17, %s31
    %p93 = scmp.eq.s32.totalorder %s92, 0
    %s95 = sadd.s32 %s94, 1
    %s96 = scalar_select %p93, %s94, %s95
    %p99 = pneg %p93
    %p100 = scmp.eq.s32.totalorder %s9, 1
    %p101 = por %p99, %p100
    %p102 = scmp.ne.s32.totalorder %s94, %s97
    %p103 = scmp.eq.s32.totalorder %s9, 0
    %p104 = por %p102, %p103
    %p105 = scmp.ne.s32.totalorder %s94, %s97
    %p106 = scmp.eq.s32.totalorder %s14, 1
    %p107 = por %p105, %p106
    %p108 = scmp.ne.s32.totalorder %s97, %s98
    %p109 = scmp.eq.s32.totalorder %s14, 0
    %p110 = por %p108, %p109
    %p111 = scmp.ne.s32.totalorder %s97, %s98
    %p112 = scmp.eq.s32.totalorder %s15, 1
    %p113 = por %p111, %p112
    %p115 = scmp.ne.s32.totalorder %s98, %s114
    %p116 = scmp.eq.s32.totalorder %s15, 0
    %p117 = por %p115, %p116
    %s118 = ssub.s32 %s16, %s35
    %s119 = ssub.s32 %s17, %s31
    %s120 = sor.u32 %s118, %s119
    %p121 = scmp.eq.s32.totalorder %s120, 0
    %s123 = sadd.s32 %s122, 1
    %s124 = scalar_select %p121, %s122, %s123
    %p127 = pneg %p121
    %p128 = scmp.eq.s32.totalorder %s9, 1
    %p129 = por %p127, %p128
    %p130 = scmp.ne.s32.totalorder %s122, %s125
    %p131 = scmp.eq.s32.totalorder %s9, 0
    %p132 = por %p130, %p131
    %p133 = scmp.ne.s32.totalorder %s122, %s125
    %p134 = scmp.eq.s32.totalorder %s14, 1
    %p135 = por %p133, %p134
    %p136 = scmp.ne.s32.totalorder %s125, %s126
    %p137 = scmp.eq.s32.totalorder %s14, 0
    %p138 = por %p136, %p137
    %p139 = scmp.ne.s32.totalorder %s125, %s126
    %p140 = scmp.eq.s32.totalorder %s15, 1
    %p141 = por %p139, %p140
    %p143 = scmp.ne.s32.totalorder %s126, %s142
    %p144 = scmp.eq.s32.totalorder %s15, 0
    %p145 = por %p143, %p144
    %p146 = scmp.le.s32.totalorder 1, %s9
    %p147 = scmp.lt.s32.totalorder %s9, 3
    %p148 = pnand %p146, %p147
    %p149 = pneg %p148
    // Predicated region
    $region9: #{generator_forward.25} parent=5 // pred_check
      _
    $region10: #{generator_forward.25} parent=5 // pred_check_branch
      %151 = sbr.rel (%p148) target = $region12
    $region11: #{generator_forward.25} parent=5 // pred_region
      %s152 = ssub.s32 %s9, 1
      // Predicated region
      $region13: #{generator_forward.25} parent=11 // pred_check
        %p153 = pneg %p84
      $region14: #{generator_forward.25} parent=11 // pred_check_branch
        %155 = sbr.rel (%p153) target = $region16
      $region15: #{generator_forward.25} parent=11 // pred_region
        %s156 = smul.u32 4, %s21
        %p157 = scmp.lt.s32.totalorder %s156, 3
        %s158 = scalar_select %p157, %s156, 3
        %p159 = scmp.lt.s32.totalorder %s20, 0
        %s160 = scalar_select %p159, %s20, 0
        %s161 = sadd.s32 %s160, %s158
        %s162 = smul.addr %s161, 4
        %s163 = scalar_lea.vmem %s1, %s162
        %s164 = smul.u32 4, %s21
      $region16: #{generator_forward.25} parent=11 // pred_fallthru
        _
      // Predicated region
      $region17: #{generator_forward.25} parent=11 // pred_check
        %p165 = pneg %p110
      $region18: #{generator_forward.25} parent=11 // pred_check_branch
        %167 = sbr.rel (%p165) target = $region20
      $region19: #{generator_forward.25} parent=11 // pred_region
        %p168 = scmp.lt.s32.totalorder %s20, 0
        %s169 = scalar_select %p168, %s20, 0
        %s170 = scalar_lea.vmem %s2, %s169
      $region20: #{generator_forward.25} parent=11 // pred_fallthru
        _
    $region12: #{generator_forward.25} parent=5 // pred_fallthru
      _
    %p171 = scmp.lt.s32.totalorder %s9, 2
    // Predicated region
    $region21: #{generator_forward.25} parent=5 // pred_check
      %p172 = pneg %p171
    $region22: #{generator_forward.25} parent=5 // pred_check_branch
      %174 = sbr.rel (%p172) target = $region24
    $region23: #{generator_forward.25} parent=5 // pred_region
      // Predicated region
      $region25: #{generator_forward.25} parent=23 // pred_check
        %p175 = pneg %p50
      $region26: #{generator_forward.25} parent=23 // pred_check_branch
        %177 = sbr.rel (%p175) target = $region28
      $region27: #{generator_forward.25} parent=23 // pred_region
        %s178 = smul.u32 64, %s16
        %p179 = scmp.lt.s32.totalorder %s178, 127
        %s180 = scalar_select %p179, %s178, 127
        %p181 = scmp.lt.s32.totalorder %s18, 0
        %s182 = scalar_select %p181, %s18, 0
        %s183 = sadd.s32 %s182, %s180
        %s184 = smul.addr %s183, 4
        %s185 = scalar_lea.vmem %s0, %s184
        %s186 = smul.u32 64, %s16
      $region28: #{generator_forward.25} parent=23 // pred_fallthru
        _
    $region24: #{generator_forward.25} parent=5 // pred_fallthru
      _
    %p187 = scmp.le.s32.totalorder 1, %s9
    %p188 = scmp.lt.s32.totalorder %s9, 3
    %p189 = pnand %p187, %p188
    %p190 = pneg %p189
    // Predicated region
    $region29: #{generator_forward.25} parent=5 // pred_check
      _
    $region30: #{generator_forward.25} parent=5 // pred_check_branch
      %192 = sbr.rel (%p189) target = $region32
    $region31: #{generator_forward.25} parent=5 // pred_region
      %s193 = ssub.s32 %s9, 1
      %s194 = smul.u32 64, %s19
      %p195 = scmp.lt.s32.totalorder %s194, 127
      %s196 = scalar_select %p195, %s194, 127
      %p197 = scmp.lt.s32.totalorder %s21, 0
      %s198 = scalar_select %p197, %s21, 0
      %s199 = sadd.s32 %s198, %s196
      %s200 = smul.addr %s199, 4
      %s201 = scalar_lea.vmem %s0, %s200
      %p202 = pneg %p56
      %p203 = pneg %p53
      %s204 = smul.u32 4, %s21
      %p205 = scmp.lt.s32.totalorder %s204, 3
      %s206 = scalar_select %p205, %s204, 3
      %p207 = scmp.lt.s32.totalorder %s20, 0
      %s208 = scalar_select %p207, %s20, 0
      %s209 = sadd.s32 %s208, %s206
      %s210 = smul.addr %s209, 4
      %s211 = scalar_lea.vmem %s1, %s210
      %p212 = pneg %p84
      %p213 = pneg %p81
      %p214 = scmp.lt.s32.totalorder %s20, 0
      %s215 = scalar_select %p214, %s20, 0
      %s216 = scalar_lea.vmem %s2, %s215
      %p217 = pneg %p110
      %p218 = pneg %p107
      %p219 = pneg %p138
      %p220 = pneg %p135
      %s221 = smul.u32 64, %s19
      %p222 = scmp.lt.s32.totalorder %s221, 127
      %s223 = scalar_select %p222, %s221, 127
      %p224 = scmp.lt.s32.totalorder %s20, 0
      %s225 = scalar_select %p224, %s20, 0
      %s226 = sadd.s32 %s225, %s223
      %s227 = smul.addr %s226, 8
      %s228 = scalar_lea.vmem %s3, %s227
      %s229 = smul.u32 64, %s19
      %p230 = scmp.lt.s32.totalorder %s229, 127
      %s231 = scalar_select %p230, %s229, 127
      %p232 = scmp.lt.s32.totalorder %s21, 0
      %s233 = scalar_select %p232, %s21, 0
      %s234 = sadd.s32 %s233, %s231
      %s235 = smul.addr %s234, 4
      %s236 = scalar_lea.vmem %s0, %s235
      %s237 = smul.u32 64, %s19
      %s238 = smul.u32 4, %s21
      %p239 = scmp.lt.s32.totalorder %s238, 3
      %s240 = scalar_select %p239, %s238, 3
      %p241 = scmp.lt.s32.totalorder %s20, 0
      %s242 = scalar_select %p241, %s20, 0
      %s243 = sadd.s32 %s242, %s240
      %s244 = smul.addr %s243, 4
      %s245 = scalar_lea.vmem %s1, %s244
      %s246 = smul.u32 4, %s21
      %p247 = scmp.lt.s32.totalorder %s20, 0
      %s248 = scalar_select %p247, %s20, 0
      %s249 = scalar_lea.vmem %s2, %s248
      %s250 = smul.u32 64, %s19
      %p251 = scmp.lt.s32.totalorder %s250, 127
      %s252 = scalar_select %p251, %s250, 127
      %p253 = scmp.lt.s32.totalorder %s20, 0
      %s254 = scalar_select %p253, %s20, 0
      %s255 = sadd.s32 %s254, %s252
      %s256 = smul.addr %s255, 8
      %s257 = scalar_lea.vmem %s3, %s256
      %s258 = smul.u32 64, %s19
      %p260 = scmp.eq.s32.totalorder %s21, 0
      // Predicated region
      $region33: #{generator_forward.25} parent=31 // pred_check
        %p261 = pneg %p260
      $region34: #{generator_forward.25} parent=31 // pred_check_branch
        %263 = sbr.rel (%p261) target = $region36
      $region35: #{generator_forward.25} parent=31 // pred_region
        %vm264 = vcmask 97280
        %265 = vst.msk [vmem:[#allocation2] sm:$0xff] %vm264, 0.0
        %266 = vst.msk [vmem:[#allocation2 + $0x8] sm:$0xff] %vm264, 0.0
        %267 = vst.msk [vmem:[#allocation2 + $0x10] sm:$0xff] %vm264, 0.0
        %268 = vst.msk [vmem:[#allocation2 + $0x18] sm:$0xff] %vm264, 0.0
        %269 = vst.msk [vmem:[#allocation2 + $0x20] sm:$0xff] %vm264, 0.0
        %270 = vst.msk [vmem:[#allocation2 + $0x28] sm:$0xff] %vm264, 0.0
        %271 = vst.msk [vmem:[#allocation2 + $0x30] sm:$0xff] %vm264, 0.0
        %272 = vst.msk [vmem:[#allocation2 + $0x38] sm:$0xff] %vm264, 0.0
        %273 = vst.msk [vmem:[#allocation2 + $0x40] sm:$0xff] %vm264, 0.0
        %274 = vst.msk [vmem:[#allocation2 + $0x48] sm:$0xff] %vm264, 0.0
        %275 = vst.msk [vmem:[#allocation2 + $0x50] sm:$0xff] %vm264, 0.0
        %276 = vst.msk [vmem:[#allocation2 + $0x58] sm:$0xff] %vm264, 0.0
        %277 = vst.msk [vmem:[#allocation2 + $0x60] sm:$0xff] %vm264, 0.0
        %278 = vst.msk [vmem:[#allocation2 + $0x68] sm:$0xff] %vm264, 0.0
        %279 = vst.msk [vmem:[#allocation2 + $0x70] sm:$0xff] %vm264, 0.0
        %280 = vst.msk [vmem:[#allocation2 + $0x78] sm:$0xff] %vm264, 0.0
        %281 = vst.msk [vmem:[#allocation2 + $0x80] sm:$0xff] %vm264, 0.0
        %282 = vst.msk [vmem:[#allocation2 + $0x88] sm:$0xff] %vm264, 0.0
        %283 = vst.msk [vmem:[#allocation2 + $0x90] sm:$0xff] %vm264, 0.0
        %284 = vst.msk [vmem:[#allocation2 + $0x98] sm:$0xff] %vm264, 0.0
        %285 = vst.msk [vmem:[#allocation2 + $0xa0] sm:$0xff] %vm264, 0.0
        %286 = vst.msk [vmem:[#allocation2 + $0xa8] sm:$0xff] %vm264, 0.0
        %287 = vst.msk [vmem:[#allocation2 + $0xb0] sm:$0xff] %vm264, 0.0
        %288 = vst.msk [vmem:[#allocation2 + $0xb8] sm:$0xff] %vm264, 0.0
        %289 = vst.msk [vmem:[#allocation2 + $0xc0] sm:$0xff] %vm264, 0.0
        %290 = vst.msk [vmem:[#allocation2 + $0xc8] sm:$0xff] %vm264, 0.0
        %291 = vst.msk [vmem:[#allocation2 + $0xd0] sm:$0xff] %vm264, 0.0
        %292 = vst.msk [vmem:[#allocation2 + $0xd8] sm:$0xff] %vm264, 0.0
        %293 = vst.msk [vmem:[#allocation2 + $0xe0] sm:$0xff] %vm264, 0.0
        %294 = vst.msk [vmem:[#allocation2 + $0xe8] sm:$0xff] %vm264, 0.0
        %295 = vst.msk [vmem:[#allocation2 + $0xf0] sm:$0xff] %vm264, 0.0
        %296 = vst.msk [vmem:[#allocation2 + $0xf8] sm:$0xff] %vm264, 0.0
        %297 = vst.msk [vmem:[#allocation2 + $0x100] sm:$0xff] %vm264, 0.0
        %298 = vst.msk [vmem:[#allocation2 + $0x108] sm:$0xff] %vm264, 0.0
        %299 = vst.msk [vmem:[#allocation2 + $0x110] sm:$0xff] %vm264, 0.0
        %300 = vst.msk [vmem:[#allocation2 + $0x118] sm:$0xff] %vm264, 0.0
        %301 = vst.msk [vmem:[#allocation2 + $0x120] sm:$0xff] %vm264, 0.0
        %302 = vst.msk [vmem:[#allocation2 + $0x128] sm:$0xff] %vm264, 0.0
        %303 = vst.msk [vmem:[#allocation2 + $0x130] sm:$0xff] %vm264, 0.0
        %304 = vst.msk [vmem:[#allocation2 + $0x138] sm:$0xff] %vm264, 0.0
        %305 = vst.msk [vmem:[#allocation2 + $0x140] sm:$0xff] %vm264, 0.0
        %306 = vst.msk [vmem:[#allocation2 + $0x148] sm:$0xff] %vm264, 0.0
        %307 = vst.msk [vmem:[#allocation2 + $0x150] sm:$0xff] %vm264, 0.0
        %308 = vst.msk [vmem:[#allocation2 + $0x158] sm:$0xff] %vm264, 0.0
        %309 = vst.msk [vmem:[#allocation2 + $0x160] sm:$0xff] %vm264, 0.0
        %310 = vst.msk [vmem:[#allocation2 + $0x168] sm:$0xff] %vm264, 0.0
        %311 = vst.msk [vmem:[#allocation2 + $0x170] sm:$0xff] %vm264, 0.0
        %312 = vst.msk [vmem:[#allocation2 + $0x178] sm:$0xff] %vm264, 0.0
        %313 = vst.msk [vmem:[#allocation2 + $0x180] sm:$0xff] %vm264, 0.0
        %314 = vst.msk [vmem:[#allocation2 + $0x188] sm:$0xff] %vm264, 0.0
        %315 = vst.msk [vmem:[#allocation2 + $0x190] sm:$0xff] %vm264, 0.0
        %316 = vst.msk [vmem:[#allocation2 + $0x198] sm:$0xff] %vm264, 0.0
        %317 = vst.msk [vmem:[#allocation2 + $0x1a0] sm:$0xff] %vm264, 0.0
        %318 = vst.msk [vmem:[#allocation2 + $0x1a8] sm:$0xff] %vm264, 0.0
        %319 = vst.msk [vmem:[#allocation2 + $0x1b0] sm:$0xff] %vm264, 0.0
        %320 = vst.msk [vmem:[#allocation2 + $0x1b8] sm:$0xff] %vm264, 0.0
        %321 = vst.msk [vmem:[#allocation2 + $0x1c0] sm:$0xff] %vm264, 0.0
        %322 = vst.msk [vmem:[#allocation2 + $0x1c8] sm:$0xff] %vm264, 0.0
        %323 = vst.msk [vmem:[#allocation2 + $0x1d0] sm:$0xff] %vm264, 0.0
        %324 = vst.msk [vmem:[#allocation2 + $0x1d8] sm:$0xff] %vm264, 0.0
        %325 = vst.msk [vmem:[#allocation2 + $0x1e0] sm:$0xff] %vm264, 0.0
        %326 = vst.msk [vmem:[#allocation2 + $0x1e8] sm:$0xff] %vm264, 0.0
        %327 = vst.msk [vmem:[#allocation2 + $0x1f0] sm:$0xff] %vm264, 0.0
        %328 = vst.msk [vmem:[#allocation2 + $0x1f8] sm:$0xff] %vm264, 0.0
      $region36: #{generator_forward.25} parent=31 // pred_fallthru
        _
      %v329 = vld [vmem:[#allocation2] sm:$0xff]
      %v330 = vld [vmem:[#allocation2 + $0x8] sm:$0xff]
      %v331 = vld [vmem:[#allocation2 + $0x10] sm:$0xff]
      %v332 = vld [vmem:[#allocation2 + $0x18] sm:$0xff]
      %v333 = vld [vmem:[#allocation2 + $0x20] sm:$0xff]
      %v334 = vld [vmem:[#allocation2 + $0x28] sm:$0xff]
      %v335 = vld [vmem:[#allocation2 + $0x30] sm:$0xff]
      %v336 = vld [vmem:[#allocation2 + $0x38] sm:$0xff]
      %v337 = vld [vmem:[#allocation2 + $0x40] sm:$0xff]
      %v338 = vld [vmem:[#allocation2 + $0x48] sm:$0xff]
      %v339 = vld [vmem:[#allocation2 + $0x50] sm:$0xff]
      %v340 = vld [vmem:[#allocation2 + $0x58] sm:$0xff]
      %v341 = vld [vmem:[#allocation2 + $0x60] sm:$0xff]
      %v342 = vld [vmem:[#allocation2 + $0x68] sm:$0xff]
      %v343 = vld [vmem:[#allocation2 + $0x70] sm:$0xff]
      %v344 = vld [vmem:[#allocation2 + $0x78] sm:$0xff]
      %v345 = vld [vmem:[#allocation2 + $0x80] sm:$0xff]
      %v346 = vld [vmem:[#allocation2 + $0x88] sm:$0xff]
      %v347 = vld [vmem:[#allocation2 + $0x90] sm:$0xff]
      %v348 = vld [vmem:[#allocation2 + $0x98] sm:$0xff]
      %v349 = vld [vmem:[#allocation2 + $0xa0] sm:$0xff]
      %v350 = vld [vmem:[#allocation2 + $0xa8] sm:$0xff]
      %v351 = vld [vmem:[#allocation2 + $0xb0] sm:$0xff]
      %v352 = vld [vmem:[#allocation2 + $0xb8] sm:$0xff]
      %v353 = vld [vmem:[#allocation2 + $0xc0] sm:$0xff]
      %v354 = vld [vmem:[#allocation2 + $0xc8] sm:$0xff]
      %v355 = vld [vmem:[#allocation2 + $0xd0] sm:$0xff]
      %v356 = vld [vmem:[#allocation2 + $0xd8] sm:$0xff]
      %v357 = vld [vmem:[#allocation2 + $0xe0] sm:$0xff]
      %v358 = vld [vmem:[#allocation2 + $0xe8] sm:$0xff]
      %v359 = vld [vmem:[#allocation2 + $0xf0] sm:$0xff]
      %v360 = vld [vmem:[#allocation2 + $0xf8] sm:$0xff]
      %v361 = vld [vmem:[#allocation2 + $0x100] sm:$0xff]
      %v362 = vld [vmem:[#allocation2 + $0x108] sm:$0xff]
      %v363 = vld [vmem:[#allocation2 + $0x110] sm:$0xff]
      %v364 = vld [vmem:[#allocation2 + $0x118] sm:$0xff]
      %v365 = vld [vmem:[#allocation2 + $0x120] sm:$0xff]
      %v366 = vld [vmem:[#allocation2 + $0x128] sm:$0xff]
      %v367 = vld [vmem:[#allocation2 + $0x130] sm:$0xff]
      %v368 = vld [vmem:[#allocation2 + $0x138] sm:$0xff]
      %v369 = vld [vmem:[#allocation2 + $0x140] sm:$0xff]
      %v370 = vld [vmem:[#allocation2 + $0x148] sm:$0xff]
      %v371 = vld [vmem:[#allocation2 + $0x150] sm:$0xff]
      %v372 = vld [vmem:[#allocation2 + $0x158] sm:$0xff]
      %v373 = vld [vmem:[#allocation2 + $0x160] sm:$0xff]
      %v374 = vld [vmem:[#allocation2 + $0x168] sm:$0xff]
      %v375 = vld [vmem:[#allocation2 + $0x170] sm:$0xff]
      %v376 = vld [vmem:[#allocation2 + $0x178] sm:$0xff]
      %v377 = vld [vmem:[#allocation2 + $0x180] sm:$0xff]
      %v378 = vld [vmem:[#allocation2 + $0x188] sm:$0xff]
      %v379 = vld [vmem:[#allocation2 + $0x190] sm:$0xff]
      %v380 = vld [vmem:[#allocation2 + $0x198] sm:$0xff]
      %v381 = vld [vmem:[#allocation2 + $0x1a0] sm:$0xff]
      %v382 = vld [vmem:[#allocation2 + $0x1a8] sm:$0xff]
      %v383 = vld [vmem:[#allocation2 + $0x1b0] sm:$0xff]
      %v384 = vld [vmem:[#allocation2 + $0x1b8] sm:$0xff]
      %v385 = vld [vmem:[#allocation2 + $0x1c0] sm:$0xff]
      %v386 = vld [vmem:[#allocation2 + $0x1c8] sm:$0xff]
      %v387 = vld [vmem:[#allocation2 + $0x1d0] sm:$0xff]
      %v388 = vld [vmem:[#allocation2 + $0x1d8] sm:$0xff]
      %v389 = vld [vmem:[#allocation2 + $0x1e0] sm:$0xff]
      %v390 = vld [vmem:[#allocation2 + $0x1e8] sm:$0xff]
      %v391 = vld [vmem:[#allocation2 + $0x1f0] sm:$0xff]
      %v392 = vld [vmem:[#allocation2 + $0x1f8] sm:$0xff]
      %v393 = vld [vmem:[%s236] sm:$0xf]
      %v394 = vld [vmem:[%s236 + $0x4] sm:$0xf]
      %v395 = vld [vmem:[%s236 + $0x8] sm:$0xf]
      %v396 = vld [vmem:[%s236 + $0xc] sm:$0xf]
      %v397 = vld [vmem:[%s236 + $0x10] sm:$0xf]
      %v398 = vld [vmem:[%s236 + $0x14] sm:$0xf]
      %v399 = vld [vmem:[%s236 + $0x18] sm:$0xf]
      %v400 = vld [vmem:[%s236 + $0x1c] sm:$0xf]
      %v401 = vld [vmem:[%s236 + $0x20] sm:$0xf]
      %v402 = vld [vmem:[%s236 + $0x24] sm:$0xf]
      %v403 = vld [vmem:[%s236 + $0x28] sm:$0xf]
      %v404 = vld [vmem:[%s236 + $0x2c] sm:$0xf]
      %v405 = vld [vmem:[%s236 + $0x30] sm:$0xf]
      %v406 = vld [vmem:[%s236 + $0x34] sm:$0xf]
      %v407 = vld [vmem:[%s236 + $0x38] sm:$0xf]
      %v408 = vld [vmem:[%s236 + $0x3c] sm:$0xf]
      %v409 = vld [vmem:[%s236 + $0x40] sm:$0xf]
      %v410 = vld [vmem:[%s236 + $0x44] sm:$0xf]
      %v411 = vld [vmem:[%s236 + $0x48] sm:$0xf]
      %v412 = vld [vmem:[%s236 + $0x4c] sm:$0xf]
      %v413 = vld [vmem:[%s236 + $0x50] sm:$0xf]
      %v414 = vld [vmem:[%s236 + $0x54] sm:$0xf]
      %v415 = vld [vmem:[%s236 + $0x58] sm:$0xf]
      %v416 = vld [vmem:[%s236 + $0x5c] sm:$0xf]
      %v417 = vld [vmem:[%s236 + $0x60] sm:$0xf]
      %v418 = vld [vmem:[%s236 + $0x64] sm:$0xf]
      %v419 = vld [vmem:[%s236 + $0x68] sm:$0xf]
      %v420 = vld [vmem:[%s236 + $0x6c] sm:$0xf]
      %v421 = vld [vmem:[%s236 + $0x70] sm:$0xf]
      %v422 = vld [vmem:[%s236 + $0x74] sm:$0xf]
      %v423 = vld [vmem:[%s236 + $0x78] sm:$0xf]
      %v424 = vld [vmem:[%s236 + $0x7c] sm:$0xf]
      %v425 = vld [vmem:[%s236 + $0x80] sm:$0xf]
      %v426 = vld [vmem:[%s236 + $0x84] sm:$0xf]
      %v427 = vld [vmem:[%s236 + $0x88] sm:$0xf]
      %v428 = vld [vmem:[%s236 + $0x8c] sm:$0xf]
      %v429 = vld [vmem:[%s236 + $0x90] sm:$0xf]
      %v430 = vld [vmem:[%s236 + $0x94] sm:$0xf]
      %v431 = vld [vmem:[%s236 + $0x98] sm:$0xf]
      %v432 = vld [vmem:[%s236 + $0x9c] sm:$0xf]
      %v433 = vld [vmem:[%s236 + $0xa0] sm:$0xf]
      %v434 = vld [vmem:[%s236 + $0xa4] sm:$0xf]
      %v435 = vld [vmem:[%s236 + $0xa8] sm:$0xf]
      %v436 = vld [vmem:[%s236 + $0xac] sm:$0xf]
      %v437 = vld [vmem:[%s236 + $0xb0] sm:$0xf]
      %v438 = vld [vmem:[%s236 + $0xb4] sm:$0xf]
      %v439 = vld [vmem:[%s236 + $0xb8] sm:$0xf]
      %v440 = vld [vmem:[%s236 + $0xbc] sm:$0xf]
      %v441 = vld [vmem:[%s236 + $0xc0] sm:$0xf]
      %v442 = vld [vmem:[%s236 + $0xc4] sm:$0xf]
      %v443 = vld [vmem:[%s236 + $0xc8] sm:$0xf]
      %v444 = vld [vmem:[%s236 + $0xcc] sm:$0xf]
      %v445 = vld [vmem:[%s236 + $0xd0] sm:$0xf]
      %v446 = vld [vmem:[%s236 + $0xd4] sm:$0xf]
      %v447 = vld [vmem:[%s236 + $0xd8] sm:$0xf]
      %v448 = vld [vmem:[%s236 + $0xdc] sm:$0xf]
      %v449 = vld [vmem:[%s236 + $0xe0] sm:$0xf]
      %v450 = vld [vmem:[%s236 + $0xe4] sm:$0xf]
      %v451 = vld [vmem:[%s236 + $0xe8] sm:$0xf]
      %v452 = vld [vmem:[%s236 + $0xec] sm:$0xf]
      %v453 = vld [vmem:[%s236 + $0xf0] sm:$0xf]
      %v454 = vld [vmem:[%s236 + $0xf4] sm:$0xf]
      %v455 = vld [vmem:[%s236 + $0xf8] sm:$0xf]
      %v456 = vld [vmem:[%s236 + $0xfc] sm:$0xf]
      %v457 = vld [vmem:[%s245] sm:$0xf]
      %v458 = vld [vmem:[%s245 + $0x4] sm:$0xf]
      %v459 = vld [vmem:[%s245 + $0x8] sm:$0xf]
      %v460 = vld [vmem:[%s245 + $0xc] sm:$0xf]
      %v525 = vunpack.c.l.b16 %v393
      %v526 = vunpack.c.l.b16 %v394
      %v527 = vunpack.c.l.b16 %v395
      %v528 = vunpack.c.l.b16 %v396
      %v529 = vunpack.c.l.b16 %v397
      %v530 = vunpack.c.l.b16 %v398
      %v531 = vunpack.c.l.b16 %v399
      %v532 = vunpack.c.l.b16 %v400
      %v533 = vunpack.c.l.b16 %v401
      %v534 = vunpack.c.l.b16 %v402
      %v535 = vunpack.c.l.b16 %v403
      %v536 = vunpack.c.l.b16 %v404
      %v537 = vunpack.c.l.b16 %v405
      %v538 = vunpack.c.l.b16 %v406
      %v539 = vunpack.c.l.b16 %v407
      %v540 = vunpack.c.l.b16 %v408
      %v541 = vunpack.c.l.b16 %v409
      %v542 = vunpack.c.l.b16 %v410
      %v543 = vunpack.c.l.b16 %v411
      %v544 = vunpack.c.l.b16 %v412
      %v545 = vunpack.c.l.b16 %v413
      %v546 = vunpack.c.l.b16 %v414
      %v547 = vunpack.c.l.b16 %v415
      %v548 = vunpack.c.l.b16 %v416
      %v549 = vunpack.c.l.b16 %v417
      %v550 = vunpack.c.l.b16 %v418
      %v551 = vunpack.c.l.b16 %v419
      %v552 = vunpack.c.l.b16 %v420
      %v553 = vunpack.c.l.b16 %v421
      %v554 = vunpack.c.l.b16 %v422
      %v555 = vunpack.c.l.b16 %v423
      %v556 = vunpack.c.l.b16 %v424
      %v557 = vunpack.c.l.b16 %v425
      %v558 = vunpack.c.l.b16 %v426
      %v559 = vunpack.c.l.b16 %v427
      %v560 = vunpack.c.l.b16 %v428
      %v561 = vunpack.c.l.b16 %v429
      %v562 = vunpack.c.l.b16 %v430
      %v563 = vunpack.c.l.b16 %v431
      %v564 = vunpack.c.l.b16 %v432
      %v565 = vunpack.c.l.b16 %v433
      %v566 = vunpack.c.l.b16 %v434
      %v567 = vunpack.c.l.b16 %v435
      %v568 = vunpack.c.l.b16 %v436
      %v569 = vunpack.c.l.b16 %v437
      %v570 = vunpack.c.l.b16 %v438
      %v571 = vunpack.c.l.b16 %v439
      %v572 = vunpack.c.l.b16 %v440
      %v573 = vunpack.c.l.b16 %v441
      %v574 = vunpack.c.l.b16 %v442
      %v575 = vunpack.c.l.b16 %v443
      %v576 = vunpack.c.l.b16 %v444
      %v577 = vunpack.c.l.b16 %v445
      %v578 = vunpack.c.l.b16 %v446
      %v579 = vunpack.c.l.b16 %v447
      %v580 = vunpack.c.l.b16 %v448
      %v581 = vunpack.c.l.b16 %v449
      %v582 = vunpack.c.l.b16 %v450
      %v583 = vunpack.c.l.b16 %v451
      %v584 = vunpack.c.l.b16 %v452
      %v585 = vunpack.c.l.b16 %v453
      %v586 = vunpack.c.l.b16 %v454
      %v587 = vunpack.c.l.b16 %v455
      %v588 = vunpack.c.l.b16 %v456
      %v589 = vpack.c.b16 %v526, %v525
      %v590 = vpack.c.b16 %v528, %v527
      %v591 = vpack.c.b16 %v530, %v529
      %v592 = vpack.c.b16 %v532, %v531
      %v593 = vpack.c.b16 %v534, %v533
      %v594 = vpack.c.b16 %v536, %v535
      %v595 = vpack.c.b16 %v538, %v537
      %v596 = vpack.c.b16 %v540, %v539
      %v597 = vpack.c.b16 %v542, %v541
      %v598 = vpack.c.b16 %v544, %v543
      %v599 = vpack.c.b16 %v546, %v545
      %v600 = vpack.c.b16 %v548, %v547
      %v601 = vpack.c.b16 %v550, %v549
      %v602 = vpack.c.b16 %v552, %v551
      %v603 = vpack.c.b16 %v554, %v553
      %v604 = vpack.c.b16 %v556, %v555
      %v605 = vpack.c.b16 %v558, %v557
      %v606 = vpack.c.b16 %v560, %v559
      %v607 = vpack.c.b16 %v562, %v561
      %v608 = vpack.c.b16 %v564, %v563
      %v609 = vpack.c.b16 %v566, %v565
      %v610 = vpack.c.b16 %v568, %v567
      %v611 = vpack.c.b16 %v570, %v569
      %v612 = vpack.c.b16 %v572, %v571
      %v613 = vpack.c.b16 %v574, %v573
      %v614 = vpack.c.b16 %v576, %v575
      %v615 = vpack.c.b16 %v578, %v577
      %v616 = vpack.c.b16 %v580, %v579
      %v617 = vpack.c.b16 %v582, %v581
      %v618 = vpack.c.b16 %v584, %v583
      %v619 = vpack.c.b16 %v586, %v585
      %v620 = vpack.c.b16 %v588, %v587
      %v625 = vunpack.c.l.b16 %v457
      %v626 = vunpack.c.l.b16 %v458
      %v627 = vunpack.c.l.b16 %v459
      %v628 = vunpack.c.l.b16 %v460
      %v629 = vpack.c.b16 %v626, %v625
      %v630 = vpack.c.b16 %v628, %v627
      %vm633 = vcmask 261120
      %v635 = vsel %vm633, %v589, 0
      %v638 = vsel %vm633, %v590, 0
      %v641 = vsel %vm633, %v591, 0
      %v644 = vsel %vm633, %v592, 0
      %v647 = vsel %vm633, %v593, 0
      %v650 = vsel %vm633, %v594, 0
      %v653 = vsel %vm633, %v595, 0
      %v656 = vsel %vm633, %v596, 0
      %v659 = vsel %vm633, %v597, 0
      %v662 = vsel %vm633, %v598, 0
      %v665 = vsel %vm633, %v599, 0
      %v668 = vsel %vm633, %v600, 0
      %v671 = vsel %vm633, %v601, 0
      %v674 = vsel %vm633, %v602, 0
      %v677 = vsel %vm633, %v603, 0
      %v680 = vsel %vm633, %v604, 0
      %v683 = vsel %vm633, %v605, 0
      %v686 = vsel %vm633, %v606, 0
      %v689 = vsel %vm633, %v607, 0
      %v692 = vsel %vm633, %v608, 0
      %v695 = vsel %vm633, %v609, 0
      %v698 = vsel %vm633, %v610, 0
      %v701 = vsel %vm633, %v611, 0
      %v704 = vsel %vm633, %v612, 0
      %v707 = vsel %vm633, %v613, 0
      %v710 = vsel %vm633, %v614, 0
      %v713 = vsel %vm633, %v615, 0
      %v716 = vsel %vm633, %v616, 0
      %v719 = vsel %vm633, %v617, 0
      %v722 = vsel %vm633, %v618, 0
      %v725 = vsel %vm633, %v619, 0
      %v728 = vsel %vm633, %v620, 0
      %730 = vmatpush.bf16.msra.mxu0 0
      %731 = vmatpush.bf16.msra.mxu0 0
      %732 = vmatpush.bf16.msra.mxu0 0
      %733 = vmatpush.bf16.msra.mxu0 0
      %734 = vmatpush.bf16.msra.mxu0 0
      %735 = vmatpush.bf16.msra.mxu0 0
      %736 = vmatpush.bf16.msra.mxu0 %v630
      %737 = vmatpush.bf16.msra.mxu0 %v629
      %738 = vmatmul.bf16.gmra.mxu0 %v635
      %v739 = vpop.f32.mrf.mxu0
      %v740 = vadd.f32 0.0, %v739
      %v741 = vpop.f32.mrf.mxu0
      %v742 = vadd.f32 0.0, %v741
      %743 = vmatmul.bf16.gmra.mxu0 %v638
      %v744 = vpop.f32.mrf.mxu0
      %v745 = vadd.f32 0.0, %v744
      %v746 = vpop.f32.mrf.mxu0
      %v747 = vadd.f32 0.0, %v746
      %748 = vmatmul.bf16.gmra.mxu0 %v641
      %v749 = vpop.f32.mrf.mxu0
      %v750 = vadd.f32 0.0, %v749
      %v751 = vpop.f32.mrf.mxu0
      %v752 = vadd.f32 0.0, %v751
      %753 = vmatmul.bf16.gmra.mxu0 %v644
      %v754 = vpop.f32.mrf.mxu0
      %v755 = vadd.f32 0.0, %v754
      %v756 = vpop.f32.mrf.mxu0
      %v757 = vadd.f32 0.0, %v756
      %758 = vmatmul.bf16.gmra.mxu0 %v647
      %v759 = vpop.f32.mrf.mxu0
      %v760 = vadd.f32 0.0, %v759
      %v761 = vpop.f32.mrf.mxu0
      %v762 = vadd.f32 0.0, %v761
      %763 = vmatmul.bf16.gmra.mxu0 %v650
      %v764 = vpop.f32.mrf.mxu0
      %v765 = vadd.f32 0.0, %v764
      %v766 = vpop.f32.mrf.mxu0
      %v767 = vadd.f32 0.0, %v766
      %768 = vmatmul.bf16.gmra.mxu0 %v653
      %v769 = vpop.f32.mrf.mxu0
      %v770 = vadd.f32 0.0, %v769
      %v771 = vpop.f32.mrf.mxu0
      %v772 = vadd.f32 0.0, %v771
      %773 = vmatmul.bf16.gmra.mxu0 %v656
      %v774 = vpop.f32.mrf.mxu0
      %v775 = vadd.f32 0.0, %v774
      %v776 = vpop.f32.mrf.mxu0
      %v777 = vadd.f32 0.0, %v776
      %778 = vmatmul.bf16.gmra.mxu0 %v659
      %v779 = vpop.f32.mrf.mxu0
      %v780 = vadd.f32 0.0, %v779
      %v781 = vpop.f32.mrf.mxu0
      %v782 = vadd.f32 0.0, %v781
      %783 = vmatmul.bf16.gmra.mxu0 %v662
      %v784 = vpop.f32.mrf.mxu0
      %v785 = vadd.f32 0.0, %v784
      %v786 = vpop.f32.mrf.mxu0
      %v787 = vadd.f32 0.0, %v786
      %788 = vmatmul.bf16.gmra.mxu0 %v665
      %v789 = vpop.f32.mrf.mxu0
      %v790 = vadd.f32 0.0, %v789
      %v791 = vpop.f32.mrf.mxu0
      %v792 = vadd.f32 0.0, %v791
      %793 = vmatmul.bf16.gmra.mxu0 %v668
      %v794 = vpop.f32.mrf.mxu0
      %v795 = vadd.f32 0.0, %v794
      %v796 = vpop.f32.mrf.mxu0
      %v797 = vadd.f32 0.0, %v796
      %798 = vmatmul.bf16.gmra.mxu0 %v671
      %v799 = vpop.f32.mrf.mxu0
      %v800 = vadd.f32 0.0, %v799
      %v801 = vpop.f32.mrf.mxu0
      %v802 = vadd.f32 0.0, %v801
      %803 = vmatmul.bf16.gmra.mxu0 %v674
      %v804 = vpop.f32.mrf.mxu0
      %v805 = vadd.f32 0.0, %v804
      %v806 = vpop.f32.mrf.mxu0
      %v807 = vadd.f32 0.0, %v806
      %808 = vmatmul.bf16.gmra.mxu0 %v677
      %v809 = vpop.f32.mrf.mxu0
      %v810 = vadd.f32 0.0, %v809
      %v811 = vpop.f32.mrf.mxu0
      %v812 = vadd.f32 0.0, %v811
      %813 = vmatmul.bf16.gmra.mxu0 %v680
      %v814 = vpop.f32.mrf.mxu0
      %v815 = vadd.f32 0.0, %v814
      %v816 = vpop.f32.mrf.mxu0
      %v817 = vadd.f32 0.0, %v816
      %818 = vmatmul.bf16.gmra.mxu0 %v683
      %v819 = vpop.f32.mrf.mxu0
      %v820 = vadd.f32 0.0, %v819
      %v821 = vpop.f32.mrf.mxu0
      %v822 = vadd.f32 0.0, %v821
      %823 = vmatmul.bf16.gmra.mxu0 %v686
      %v824 = vpop.f32.mrf.mxu0
      %v825 = vadd.f32 0.0, %v824
      %v826 = vpop.f32.mrf.mxu0
      %v827 = vadd.f32 0.0, %v826
      %828 = vmatmul.bf16.gmra.mxu0 %v689
      %v829 = vpop.f32.mrf.mxu0
      %v830 = vadd.f32 0.0, %v829
      %v831 = vpop.f32.mrf.mxu0
      %v832 = vadd.f32 0.0, %v831
      %833 = vmatmul.bf16.gmra.mxu0 %v692
      %v834 = vpop.f32.mrf.mxu0
      %v835 = vadd.f32 0.0, %v834
      %v836 = vpop.f32.mrf.mxu0
      %v837 = vadd.f32 0.0, %v836
      %838 = vmatmul.bf16.gmra.mxu0 %v695
      %v839 = vpop.f32.mrf.mxu0
      %v840 = vadd.f32 0.0, %v839
      %v841 = vpop.f32.mrf.mxu0
      %v842 = vadd.f32 0.0, %v841
      %843 = vmatmul.bf16.gmra.mxu0 %v698
      %v844 = vpop.f32.mrf.mxu0
      %v845 = vadd.f32 0.0, %v844
      %v846 = vpop.f32.mrf.mxu0
      %v847 = vadd.f32 0.0, %v846
      %848 = vmatmul.bf16.gmra.mxu0 %v701
      %v849 = vpop.f32.mrf.mxu0
      %v850 = vadd.f32 0.0, %v849
      %v851 = vpop.f32.mrf.mxu0
      %v852 = vadd.f32 0.0, %v851
      %853 = vmatmul.bf16.gmra.mxu0 %v704
      %v854 = vpop.f32.mrf.mxu0
      %v855 = vadd.f32 0.0, %v854
      %v856 = vpop.f32.mrf.mxu0
      %v857 = vadd.f32 0.0, %v856
      %858 = vmatmul.bf16.gmra.mxu0 %v707
      %v859 = vpop.f32.mrf.mxu0
      %v860 = vadd.f32 0.0, %v859
      %v861 = vpop.f32.mrf.mxu0
      %v862 = vadd.f32 0.0, %v861
      %863 = vmatmul.bf16.gmra.mxu0 %v710
      %v864 = vpop.f32.mrf.mxu0
      %v865 = vadd.f32 0.0, %v864
      %v866 = vpop.f32.mrf.mxu0
      %v867 = vadd.f32 0.0, %v866
      %868 = vmatmul.bf16.gmra.mxu0 %v713
      %v869 = vpop.f32.mrf.mxu0
      %v870 = vadd.f32 0.0, %v869
      %v871 = vpop.f32.mrf.mxu0
      %v872 = vadd.f32 0.0, %v871
      %873 = vmatmul.bf16.gmra.mxu0 %v716
      %v874 = vpop.f32.mrf.mxu0
      %v875 = vadd.f32 0.0, %v874
      %v876 = vpop.f32.mrf.mxu0
      %v877 = vadd.f32 0.0, %v876
      %878 = vmatmul.bf16.gmra.mxu0 %v719
      %v879 = vpop.f32.mrf.mxu0
      %v880 = vadd.f32 0.0, %v879
      %v881 = vpop.f32.mrf.mxu0
      %v882 = vadd.f32 0.0, %v881
      %883 = vmatmul.bf16.gmra.mxu0 %v722
      %v884 = vpop.f32.mrf.mxu0
      %v885 = vadd.f32 0.0, %v884
      %v886 = vpop.f32.mrf.mxu0
      %v887 = vadd.f32 0.0, %v886
      %888 = vmatmul.bf16.gmra.mxu0 %v725
      %v889 = vpop.f32.mrf.mxu0
      %v890 = vadd.f32 0.0, %v889
      %v891 = vpop.f32.mrf.mxu0
      %v892 = vadd.f32 0.0, %v891
      %893 = vmatmul.bf16.gmra.mxu0 %v728
      %v894 = vpop.f32.mrf.mxu0
      %v895 = vadd.f32 0.0, %v894
      %v896 = vpop.f32.mrf.mxu0
      %v897 = vadd.f32 0.0, %v896
      %898 = vdwg.mxu0
      %v899 = vadd.f32 %v329, %v740
      %v900 = vadd.f32 %v330, %v742
      %v901 = vadd.f32 %v331, %v745
      %v902 = vadd.f32 %v332, %v747
      %v903 = vadd.f32 %v333, %v750
      %v904 = vadd.f32 %v334, %v752
      %v905 = vadd.f32 %v335, %v755
      %v906 = vadd.f32 %v336, %v757
      %v907 = vadd.f32 %v337, %v760
      %v908 = vadd.f32 %v338, %v762
      %v909 = vadd.f32 %v339, %v765
      %v910 = vadd.f32 %v340, %v767
      %v911 = vadd.f32 %v341, %v770
      %v912 = vadd.f32 %v342, %v772
      %v913 = vadd.f32 %v343, %v775
      %v914 = vadd.f32 %v344, %v777
      %v915 = vadd.f32 %v345, %v780
      %v916 = vadd.f32 %v346, %v782
      %v917 = vadd.f32 %v347, %v785
      %v918 = vadd.f32 %v348, %v787
      %v919 = vadd.f32 %v349, %v790
      %v920 = vadd.f32 %v350, %v792
      %v921 = vadd.f32 %v351, %v795
      %v922 = vadd.f32 %v352, %v797
      %v923 = vadd.f32 %v353, %v800
      %v924 = vadd.f32 %v354, %v802
      %v925 = vadd.f32 %v355, %v805
      %v926 = vadd.f32 %v356, %v807
      %v927 = vadd.f32 %v357, %v810
      %v928 = vadd.f32 %v358, %v812
      %v929 = vadd.f32 %v359, %v815
      %v930 = vadd.f32 %v360, %v817
      %v931 = vadd.f32 %v361, %v820
      %v932 = vadd.f32 %v362, %v822
      %v933 = vadd.f32 %v363, %v825
      %v934 = vadd.f32 %v364, %v827
      %v935 = vadd.f32 %v365, %v830
      %v936 = vadd.f32 %v366, %v832
      %v937 = vadd.f32 %v367, %v835
      %v938 = vadd.f32 %v368, %v837
      %v939 = vadd.f32 %v369, %v840
      %v940 = vadd.f32 %v370, %v842
      %v941 = vadd.f32 %v371, %v845
      %v942 = vadd.f32 %v372, %v847
      %v943 = vadd.f32 %v373, %v850
      %v944 = vadd.f32 %v374, %v852
      %v945 = vadd.f32 %v375, %v855
      %v946 = vadd.f32 %v376, %v857
      %v947 = vadd.f32 %v377, %v860
      %v948 = vadd.f32 %v378, %v862
      %v949 = vadd.f32 %v379, %v865
      %v950 = vadd.f32 %v380, %v867
      %v951 = vadd.f32 %v381, %v870
      %v952 = vadd.f32 %v382, %v872
      %v953 = vadd.f32 %v383, %v875
      %v954 = vadd.f32 %v384, %v877
      %v955 = vadd.f32 %v385, %v880
      %v956 = vadd.f32 %v386, %v882
      %v957 = vadd.f32 %v387, %v885
      %v958 = vadd.f32 %v388, %v887
      %v959 = vadd.f32 %v389, %v890
      %v960 = vadd.f32 %v390, %v892
      %v961 = vadd.f32 %v391, %v895
      %v962 = vadd.f32 %v392, %v897
      %vm963 = vcmask 97280
      %964 = vst.msk [vmem:[#allocation2] sm:$0xff] %vm963, %v899
      %965 = vst.msk [vmem:[#allocation2 + $0x8] sm:$0xff] %vm963, %v900
      %966 = vst.msk [vmem:[#allocation2 + $0x10] sm:$0xff] %vm963, %v901
      %967 = vst.msk [vmem:[#allocation2 + $0x18] sm:$0xff] %vm963, %v902
      %968 = vst.msk [vmem:[#allocation2 + $0x20] sm:$0xff] %vm963, %v903
      %969 = vst.msk [vmem:[#allocation2 + $0x28] sm:$0xff] %vm963, %v904
      %970 = vst.msk [vmem:[#allocation2 + $0x30] sm:$0xff] %vm963, %v905
      %971 = vst.msk [vmem:[#allocation2 + $0x38] sm:$0xff] %vm963, %v906
      %972 = vst.msk [vmem:[#allocation2 + $0x40] sm:$0xff] %vm963, %v907
      %973 = vst.msk [vmem:[#allocation2 + $0x48] sm:$0xff] %vm963, %v908
      %974 = vst.msk [vmem:[#allocation2 + $0x50] sm:$0xff] %vm963, %v909
      %975 = vst.msk [vmem:[#allocation2 + $0x58] sm:$0xff] %vm963, %v910
      %976 = vst.msk [vmem:[#allocation2 + $0x60] sm:$0xff] %vm963, %v911
      %977 = vst.msk [vmem:[#allocation2 + $0x68] sm:$0xff] %vm963, %v912
      %978 = vst.msk [vmem:[#allocation2 + $0x70] sm:$0xff] %vm963, %v913
      %979 = vst.msk [vmem:[#allocation2 + $0x78] sm:$0xff] %vm963, %v914
      %980 = vst.msk [vmem:[#allocation2 + $0x80] sm:$0xff] %vm963, %v915
      %981 = vst.msk [vmem:[#allocation2 + $0x88] sm:$0xff] %vm963, %v916
      %982 = vst.msk [vmem:[#allocation2 + $0x90] sm:$0xff] %vm963, %v917
      %983 = vst.msk [vmem:[#allocation2 + $0x98] sm:$0xff] %vm963, %v918
      %984 = vst.msk [vmem:[#allocation2 + $0xa0] sm:$0xff] %vm963, %v919
      %985 = vst.msk [vmem:[#allocation2 + $0xa8] sm:$0xff] %vm963, %v920
      %986 = vst.msk [vmem:[#allocation2 + $0xb0] sm:$0xff] %vm963, %v921
      %987 = vst.msk [vmem:[#allocation2 + $0xb8] sm:$0xff] %vm963, %v922
      %988 = vst.msk [vmem:[#allocation2 + $0xc0] sm:$0xff] %vm963, %v923
      %989 = vst.msk [vmem:[#allocation2 + $0xc8] sm:$0xff] %vm963, %v924
      %990 = vst.msk [vmem:[#allocation2 + $0xd0] sm:$0xff] %vm963, %v925
      %991 = vst.msk [vmem:[#allocation2 + $0xd8] sm:$0xff] %vm963, %v926
      %992 = vst.msk [vmem:[#allocation2 + $0xe0] sm:$0xff] %vm963, %v927
      %993 = vst.msk [vmem:[#allocation2 + $0xe8] sm:$0xff] %vm963, %v928
      %994 = vst.msk [vmem:[#allocation2 + $0xf0] sm:$0xff] %vm963, %v929
      %995 = vst.msk [vmem:[#allocation2 + $0xf8] sm:$0xff] %vm963, %v930
      %996 = vst.msk [vmem:[#allocation2 + $0x100] sm:$0xff] %vm963, %v931
      %997 = vst.msk [vmem:[#allocation2 + $0x108] sm:$0xff] %vm963, %v932
      %998 = vst.msk [vmem:[#allocation2 + $0x110] sm:$0xff] %vm963, %v933
      %999 = vst.msk [vmem:[#allocation2 + $0x118] sm:$0xff] %vm963, %v934
      %1000 = vst.msk [vmem:[#allocation2 + $0x120] sm:$0xff] %vm963, %v935
      %1001 = vst.msk [vmem:[#allocation2 + $0x128] sm:$0xff] %vm963, %v936
      %1002 = vst.msk [vmem:[#allocation2 + $0x130] sm:$0xff] %vm963, %v937
      %1003 = vst.msk [vmem:[#allocation2 + $0x138] sm:$0xff] %vm963, %v938
      %1004 = vst.msk [vmem:[#allocation2 + $0x140] sm:$0xff] %vm963, %v939
      %1005 = vst.msk [vmem:[#allocation2 + $0x148] sm:$0xff] %vm963, %v940
      %1006 = vst.msk [vmem:[#allocation2 + $0x150] sm:$0xff] %vm963, %v941
      %1007 = vst.msk [vmem:[#allocation2 + $0x158] sm:$0xff] %vm963, %v942
      %1008 = vst.msk [vmem:[#allocation2 + $0x160] sm:$0xff] %vm963, %v943
      %1009 = vst.msk [vmem:[#allocation2 + $0x168] sm:$0xff] %vm963, %v944
      %1010 = vst.msk [vmem:[#allocation2 + $0x170] sm:$0xff] %vm963, %v945
      %1011 = vst.msk [vmem:[#allocation2 + $0x178] sm:$0xff] %vm963, %v946
      %1012 = vst.msk [vmem:[#allocation2 + $0x180] sm:$0xff] %vm963, %v947
      %1013 = vst.msk [vmem:[#allocation2 + $0x188] sm:$0xff] %vm963, %v948
      %1014 = vst.msk [vmem:[#allocation2 + $0x190] sm:$0xff] %vm963, %v949
      %1015 = vst.msk [vmem:[#allocation2 + $0x198] sm:$0xff] %vm963, %v950
      %1016 = vst.msk [vmem:[#allocation2 + $0x1a0] sm:$0xff] %vm963, %v951
      %1017 = vst.msk [vmem:[#allocation2 + $0x1a8] sm:$0xff] %vm963, %v952
      %1018 = vst.msk [vmem:[#allocation2 + $0x1b0] sm:$0xff] %vm963, %v953
      %1019 = vst.msk [vmem:[#allocation2 + $0x1b8] sm:$0xff] %vm963, %v954
      %1020 = vst.msk [vmem:[#allocation2 + $0x1c0] sm:$0xff] %vm963, %v955
      %1021 = vst.msk [vmem:[#allocation2 + $0x1c8] sm:$0xff] %vm963, %v956
      %1022 = vst.msk [vmem:[#allocation2 + $0x1d0] sm:$0xff] %vm963, %v957
      %1023 = vst.msk [vmem:[#allocation2 + $0x1d8] sm:$0xff] %vm963, %v958
      %1024 = vst.msk [vmem:[#allocation2 + $0x1e0] sm:$0xff] %vm963, %v959
      %1025 = vst.msk [vmem:[#allocation2 + $0x1e8] sm:$0xff] %vm963, %v960
      %1026 = vst.msk [vmem:[#allocation2 + $0x1f0] sm:$0xff] %vm963, %v961
      %1027 = vst.msk [vmem:[#allocation2 + $0x1f8] sm:$0xff] %vm963, %v962
      // Predicated region
      $region37: #{generator_forward.25} parent=31 // pred_check
        %p1028 = pneg %p260
      $region38: #{generator_forward.25} parent=31 // pred_check_branch
        %1030 = sbr.rel (%p1028) target = $region40
      $region39: #{generator_forward.25} parent=31 // pred_region
        %v1031 = vld [vmem:[#allocation2] sm:$0xff]
        %v1032 = vld [vmem:[#allocation2 + $0x8] sm:$0xff]
        %v1033 = vld [vmem:[#allocation2 + $0x10] sm:$0xff]
        %v1034 = vld [vmem:[#allocation2 + $0x18] sm:$0xff]
        %v1035 = vld [vmem:[#allocation2 + $0x20] sm:$0xff]
        %v1036 = vld [vmem:[#allocation2 + $0x28] sm:$0xff]
        %v1037 = vld [vmem:[#allocation2 + $0x30] sm:$0xff]
        %v1038 = vld [vmem:[#allocation2 + $0x38] sm:$0xff]
        %v1039 = vld [vmem:[#allocation2 + $0x40] sm:$0xff]
        %v1040 = vld [vmem:[#allocation2 + $0x48] sm:$0xff]
        %v1041 = vld [vmem:[#allocation2 + $0x50] sm:$0xff]
        %v1042 = vld [vmem:[#allocation2 + $0x58] sm:$0xff]
        %v1043 = vld [vmem:[#allocation2 + $0x60] sm:$0xff]
        %v1044 = vld [vmem:[#allocation2 + $0x68] sm:$0xff]
        %v1045 = vld [vmem:[#allocation2 + $0x70] sm:$0xff]
        %v1046 = vld [vmem:[#allocation2 + $0x78] sm:$0xff]
        %v1047 = vld [vmem:[#allocation2 + $0x80] sm:$0xff]
        %v1048 = vld [vmem:[#allocation2 + $0x88] sm:$0xff]
        %v1049 = vld [vmem:[#allocation2 + $0x90] sm:$0xff]
        %v1050 = vld [vmem:[#allocation2 + $0x98] sm:$0xff]
        %v1051 = vld [vmem:[#allocation2 + $0xa0] sm:$0xff]
        %v1052 = vld [vmem:[#allocation2 + $0xa8] sm:$0xff]
        %v1053 = vld [vmem:[#allocation2 + $0xb0] sm:$0xff]
        %v1054 = vld [vmem:[#allocation2 + $0xb8] sm:$0xff]
        %v1055 = vld [vmem:[#allocation2 + $0xc0] sm:$0xff]
        %v1056 = vld [vmem:[#allocation2 + $0xc8] sm:$0xff]
        %v1057 = vld [vmem:[#allocation2 + $0xd0] sm:$0xff]
        %v1058 = vld [vmem:[#allocation2 + $0xd8] sm:$0xff]
        %v1059 = vld [vmem:[#allocation2 + $0xe0] sm:$0xff]
        %v1060 = vld [vmem:[#allocation2 + $0xe8] sm:$0xff]
        %v1061 = vld [vmem:[#allocation2 + $0xf0] sm:$0xff]
        %v1062 = vld [vmem:[#allocation2 + $0xf8] sm:$0xff]
        %v1063 = vld [vmem:[#allocation2 + $0x100] sm:$0xff]
        %v1064 = vld [vmem:[#allocation2 + $0x108] sm:$0xff]
        %v1065 = vld [vmem:[#allocation2 + $0x110] sm:$0xff]
        %v1066 = vld [vmem:[#allocation2 + $0x118] sm:$0xff]
        %v1067 = vld [vmem:[#allocation2 + $0x120] sm:$0xff]
        %v1068 = vld [vmem:[#allocation2 + $0x128] sm:$0xff]
        %v1069 = vld [vmem:[#allocation2 + $0x130] sm:$0xff]
        %v1070 = vld [vmem:[#allocation2 + $0x138] sm:$0xff]
        %v1071 = vld [vmem:[#allocation2 + $0x140] sm:$0xff]
        %v1072 = vld [vmem:[#allocation2 + $0x148] sm:$0xff]
        %v1073 = vld [vmem:[#allocation2 + $0x150] sm:$0xff]
        %v1074 = vld [vmem:[#allocation2 + $0x158] sm:$0xff]
        %v1075 = vld [vmem:[#allocation2 + $0x160] sm:$0xff]
        %v1076 = vld [vmem:[#allocation2 + $0x168] sm:$0xff]
        %v1077 = vld [vmem:[#allocation2 + $0x170] sm:$0xff]
        %v1078 = vld [vmem:[#allocation2 + $0x178] sm:$0xff]
        %v1079 = vld [vmem:[#allocation2 + $0x180] sm:$0xff]
        %v1080 = vld [vmem:[#allocation2 + $0x188] sm:$0xff]
        %v1081 = vld [vmem:[#allocation2 + $0x190] sm:$0xff]
        %v1082 = vld [vmem:[#allocation2 + $0x198] sm:$0xff]
        %v1083 = vld [vmem:[#allocation2 + $0x1a0] sm:$0xff]
        %v1084 = vld [vmem:[#allocation2 + $0x1a8] sm:$0xff]
        %v1085 = vld [vmem:[#allocation2 + $0x1b0] sm:$0xff]
        %v1086 = vld [vmem:[#allocation2 + $0x1b8] sm:$0xff]
        %v1087 = vld [vmem:[#allocation2 + $0x1c0] sm:$0xff]
        %v1088 = vld [vmem:[#allocation2 + $0x1c8] sm:$0xff]
        %v1089 = vld [vmem:[#allocation2 + $0x1d0] sm:$0xff]
        %v1090 = vld [vmem:[#allocation2 + $0x1d8] sm:$0xff]
        %v1091 = vld [vmem:[#allocation2 + $0x1e0] sm:$0xff]
        %v1092 = vld [vmem:[#allocation2 + $0x1e8] sm:$0xff]
        %v1093 = vld [vmem:[#allocation2 + $0x1f0] sm:$0xff]
        %v1094 = vld [vmem:[#allocation2 + $0x1f8] sm:$0xff]
        %v1095 = vld [vmem:[%s249] sm:$0x1]
        %v1097 = vperm.slane %v1095, 0
        %v1099 = vadd.f32 %v1031, %v1097
        %v1100 = vadd.f32 %v1032, %v1097
        %v1101 = vadd.f32 %v1033, %v1097
        %v1102 = vadd.f32 %v1034, %v1097
        %v1103 = vadd.f32 %v1035, %v1097
        %v1104 = vadd.f32 %v1036, %v1097
        %v1105 = vadd.f32 %v1037, %v1097
        %v1106 = vadd.f32 %v1038, %v1097
        %v1107 = vadd.f32 %v1039, %v1097
        %v1108 = vadd.f32 %v1040, %v1097
        %v1109 = vadd.f32 %v1041, %v1097
        %v1110 = vadd.f32 %v1042, %v1097
        %v1111 = vadd.f32 %v1043, %v1097
        %v1112 = vadd.f32 %v1044, %v1097
        %v1113 = vadd.f32 %v1045, %v1097
        %v1114 = vadd.f32 %v1046, %v1097
        %v1115 = vadd.f32 %v1047, %v1097
        %v1116 = vadd.f32 %v1048, %v1097
        %v1117 = vadd.f32 %v1049, %v1097
        %v1118 = vadd.f32 %v1050, %v1097
        %v1119 = vadd.f32 %v1051, %v1097
        %v1120 = vadd.f32 %v1052, %v1097
        %v1121 = vadd.f32 %v1053, %v1097
        %v1122 = vadd.f32 %v1054, %v1097
        %v1123 = vadd.f32 %v1055, %v1097
        %v1124 = vadd.f32 %v1056, %v1097
        %v1125 = vadd.f32 %v1057, %v1097
        %v1126 = vadd.f32 %v1058, %v1097
        %v1127 = vadd.f32 %v1059, %v1097
        %v1128 = vadd.f32 %v1060, %v1097
        %v1129 = vadd.f32 %v1061, %v1097
        %v1130 = vadd.f32 %v1062, %v1097
        %v1131 = vadd.f32 %v1063, %v1097
        %v1132 = vadd.f32 %v1064, %v1097
        %v1133 = vadd.f32 %v1065, %v1097
        %v1134 = vadd.f32 %v1066, %v1097
        %v1135 = vadd.f32 %v1067, %v1097
        %v1136 = vadd.f32 %v1068, %v1097
        %v1137 = vadd.f32 %v1069, %v1097
        %v1138 = vadd.f32 %v1070, %v1097
        %v1139 = vadd.f32 %v1071, %v1097
        %v1140 = vadd.f32 %v1072, %v1097
        %v1141 = vadd.f32 %v1073, %v1097
        %v1142 = vadd.f32 %v1074, %v1097
        %v1143 = vadd.f32 %v1075, %v1097
        %v1144 = vadd.f32 %v1076, %v1097
        %v1145 = vadd.f32 %v1077, %v1097
        %v1146 = vadd.f32 %v1078, %v1097
        %v1147 = vadd.f32 %v1079, %v1097
        %v1148 = vadd.f32 %v1080, %v1097
        %v1149 = vadd.f32 %v1081, %v1097
        %v1150 = vadd.f32 %v1082, %v1097
        %v1151 = vadd.f32 %v1083, %v1097
        %v1152 = vadd.f32 %v1084, %v1097
        %v1153 = vadd.f32 %v1085, %v1097
        %v1154 = vadd.f32 %v1086, %v1097
        %v1155 = vadd.f32 %v1087, %v1097
        %v1156 = vadd.f32 %v1088, %v1097
        %v1157 = vadd.f32 %v1089, %v1097
        %v1158 = vadd.f32 %v1090, %v1097
        %v1159 = vadd.f32 %v1091, %v1097
        %v1160 = vadd.f32 %v1092, %v1097
        %v1161 = vadd.f32 %v1093, %v1097
        %v1162 = vadd.f32 %v1094, %v1097
        %v1163 = vtanh.pop %v1099
        %v1164 = vtanh.pop %v1100
        %v1165 = vtanh.pop %v1101
        %v1166 = vtanh.pop %v1102
        %v1167 = vtanh.pop %v1103
        %v1168 = vtanh.pop %v1104
        %v1169 = vtanh.pop %v1105
        %v1170 = vtanh.pop %v1106
        %v1171 = vtanh.pop %v1107
        %v1172 = vtanh.pop %v1108
        %v1173 = vtanh.pop %v1109
        %v1174 = vtanh.pop %v1110
        %v1175 = vtanh.pop %v1111
        %v1176 = vtanh.pop %v1112
        %v1177 = vtanh.pop %v1113
        %v1178 = vtanh.pop %v1114
        %v1179 = vtanh.pop %v1115
        %v1180 = vtanh.pop %v1116
        %v1181 = vtanh.pop %v1117
        %v1182 = vtanh.pop %v1118
        %v1183 = vtanh.pop %v1119
        %v1184 = vtanh.pop %v1120
        %v1185 = vtanh.pop %v1121
        %v1186 = vtanh.pop %v1122
        %v1187 = vtanh.pop %v1123
        %v1188 = vtanh.pop %v1124
        %v1189 = vtanh.pop %v1125
        %v1190 = vtanh.pop %v1126
        %v1191 = vtanh.pop %v1127
        %v1192 = vtanh.pop %v1128
        %v1193 = vtanh.pop %v1129
        %v1194 = vtanh.pop %v1130
        %v1195 = vtanh.pop %v1131
        %v1196 = vtanh.pop %v1132
        %v1197 = vtanh.pop %v1133
        %v1198 = vtanh.pop %v1134
        %v1199 = vtanh.pop %v1135
        %v1200 = vtanh.pop %v1136
        %v1201 = vtanh.pop %v1137
        %v1202 = vtanh.pop %v1138
        %v1203 = vtanh.pop %v1139
        %v1204 = vtanh.pop %v1140
        %v1205 = vtanh.pop %v1141
        %v1206 = vtanh.pop %v1142
        %v1207 = vtanh.pop %v1143
        %v1208 = vtanh.pop %v1144
        %v1209 = vtanh.pop %v1145
        %v1210 = vtanh.pop %v1146
        %v1211 = vtanh.pop %v1147
        %v1212 = vtanh.pop %v1148
        %v1213 = vtanh.pop %v1149
        %v1214 = vtanh.pop %v1150
        %v1215 = vtanh.pop %v1151
        %v1216 = vtanh.pop %v1152
        %v1217 = vtanh.pop %v1153
        %v1218 = vtanh.pop %v1154
        %v1219 = vtanh.pop %v1155
        %v1220 = vtanh.pop %v1156
        %v1221 = vtanh.pop %v1157
        %v1222 = vtanh.pop %v1158
        %v1223 = vtanh.pop %v1159
        %v1224 = vtanh.pop %v1160
        %v1225 = vtanh.pop %v1161
        %v1226 = vtanh.pop %v1162
        %1227 = vst.msk [vmem:[%s257] sm:$0xff] %vm963, %v1163
        %1228 = vst.msk [vmem:[%s257 + $0x8] sm:$0xff] %vm963, %v1164
        %1229 = vst.msk [vmem:[%s257 + $0x10] sm:$0xff] %vm963, %v1165
        %1230 = vst.msk [vmem:[%s257 + $0x18] sm:$0xff] %vm963, %v1166
        %1231 = vst.msk [vmem:[%s257 + $0x20] sm:$0xff] %vm963, %v1167
        %1232 = vst.msk [vmem:[%s257 + $0x28] sm:$0xff] %vm963, %v1168
        %1233 = vst.msk [vmem:[%s257 + $0x30] sm:$0xff] %vm963, %v1169
        %1234 = vst.msk [vmem:[%s257 + $0x38] sm:$0xff] %vm963, %v1170
        %1235 = vst.msk [vmem:[%s257 + $0x40] sm:$0xff] %vm963, %v1171
        %1236 = vst.msk [vmem:[%s257 + $0x48] sm:$0xff] %vm963, %v1172
        %1237 = vst.msk [vmem:[%s257 + $0x50] sm:$0xff] %vm963, %v1173
        %1238 = vst.msk [vmem:[%s257 + $0x58] sm:$0xff] %vm963, %v1174
        %1239 = vst.msk [vmem:[%s257 + $0x60] sm:$0xff] %vm963, %v1175
        %1240 = vst.msk [vmem:[%s257 + $0x68] sm:$0xff] %vm963, %v1176
        %1241 = vst.msk [vmem:[%s257 + $0x70] sm:$0xff] %vm963, %v1177
        %1242 = vst.msk [vmem:[%s257 + $0x78] sm:$0xff] %vm963, %v1178
        %1243 = vst.msk [vmem:[%s257 + $0x80] sm:$0xff] %vm963, %v1179
        %1244 = vst.msk [vmem:[%s257 + $0x88] sm:$0xff] %vm963, %v1180
        %1245 = vst.msk [vmem:[%s257 + $0x90] sm:$0xff] %vm963, %v1181
        %1246 = vst.msk [vmem:[%s257 + $0x98] sm:$0xff] %vm963, %v1182
        %1247 = vst.msk [vmem:[%s257 + $0xa0] sm:$0xff] %vm963, %v1183
        %1248 = vst.msk [vmem:[%s257 + $0xa8] sm:$0xff] %vm963, %v1184
        %1249 = vst.msk [vmem:[%s257 + $0xb0] sm:$0xff] %vm963, %v1185
        %1250 = vst.msk [vmem:[%s257 + $0xb8] sm:$0xff] %vm963, %v1186
        %1251 = vst.msk [vmem:[%s257 + $0xc0] sm:$0xff] %vm963, %v1187
        %1252 = vst.msk [vmem:[%s257 + $0xc8] sm:$0xff] %vm963, %v1188
        %1253 = vst.msk [vmem:[%s257 + $0xd0] sm:$0xff] %vm963, %v1189
        %1254 = vst.msk [vmem:[%s257 + $0xd8] sm:$0xff] %vm963, %v1190
        %1255 = vst.msk [vmem:[%s257 + $0xe0] sm:$0xff] %vm963, %v1191
        %1256 = vst.msk [vmem:[%s257 + $0xe8] sm:$0xff] %vm963, %v1192
        %1257 = vst.msk [vmem:[%s257 + $0xf0] sm:$0xff] %vm963, %v1193
        %1258 = vst.msk [vmem:[%s257 + $0xf8] sm:$0xff] %vm963, %v1194
        %1259 = vst.msk [vmem:[%s257 + $0x100] sm:$0xff] %vm963, %v1195
        %1260 = vst.msk [vmem:[%s257 + $0x108] sm:$0xff] %vm963, %v1196
        %1261 = vst.msk [vmem:[%s257 + $0x110] sm:$0xff] %vm963, %v1197
        %1262 = vst.msk [vmem:[%s257 + $0x118] sm:$0xff] %vm963, %v1198
        %1263 = vst.msk [vmem:[%s257 + $0x120] sm:$0xff] %vm963, %v1199
        %1264 = vst.msk [vmem:[%s257 + $0x128] sm:$0xff] %vm963, %v1200
        %1265 = vst.msk [vmem:[%s257 + $0x130] sm:$0xff] %vm963, %v1201
        %1266 = vst.msk [vmem:[%s257 + $0x138] sm:$0xff] %vm963, %v1202
        %1267 = vst.msk [vmem:[%s257 + $0x140] sm:$0xff] %vm963, %v1203
        %1268 = vst.msk [vmem:[%s257 + $0x148] sm:$0xff] %vm963, %v1204
        %1269 = vst.msk [vmem:[%s257 + $0x150] sm:$0xff] %vm963, %v1205
        %1270 = vst.msk [vmem:[%s257 + $0x158] sm:$0xff] %vm963, %v1206
        %1271 = vst.msk [vmem:[%s257 + $0x160] sm:$0xff] %vm963, %v1207
        %1272 = vst.msk [vmem:[%s257 + $0x168] sm:$0xff] %vm963, %v1208
        %1273 = vst.msk [vmem:[%s257 + $0x170] sm:$0xff] %vm963, %v1209
        %1274 = vst.msk [vmem:[%s257 + $0x178] sm:$0xff] %vm963, %v1210
        %1275 = vst.msk [vmem:[%s257 + $0x180] sm:$0xff] %vm963, %v1211
        %1276 = vst.msk [vmem:[%s257 + $0x188] sm:$0xff] %vm963, %v1212
        %1277 = vst.msk [vmem:[%s257 + $0x190] sm:$0xff] %vm963, %v1213
        %1278 = vst.msk [vmem:[%s257 + $0x198] sm:$0xff] %vm963, %v1214
        %1279 = vst.msk [vmem:[%s257 + $0x1a0] sm:$0xff] %vm963, %v1215
        %1280 = vst.msk [vmem:[%s257 + $0x1a8] sm:$0xff] %vm963, %v1216
        %1281 = vst.msk [vmem:[%s257 + $0x1b0] sm:$0xff] %vm963, %v1217
        %1282 = vst.msk [vmem:[%s257 + $0x1b8] sm:$0xff] %vm963, %v1218
        %1283 = vst.msk [vmem:[%s257 + $0x1c0] sm:$0xff] %vm963, %v1219
        %1284 = vst.msk [vmem:[%s257 + $0x1c8] sm:$0xff] %vm963, %v1220
        %1285 = vst.msk [vmem:[%s257 + $0x1d0] sm:$0xff] %vm963, %v1221
        %1286 = vst.msk [vmem:[%s257 + $0x1d8] sm:$0xff] %vm963, %v1222
        %1287 = vst.msk [vmem:[%s257 + $0x1e0] sm:$0xff] %vm963, %v1223
        %1288 = vst.msk [vmem:[%s257 + $0x1e8] sm:$0xff] %vm963, %v1224
        %1289 = vst.msk [vmem:[%s257 + $0x1f0] sm:$0xff] %vm963, %v1225
        %1290 = vst.msk [vmem:[%s257 + $0x1f8] sm:$0xff] %vm963, %v1226
      $region40: #{generator_forward.25} parent=31 // pred_fallthru
        _
      %s1291 = smul.u32 64, %s19
      %p1292 = scmp.lt.s32.totalorder %s1291, 127
      %s1293 = scalar_select %p1292, %s1291, 127
      %p1294 = scmp.lt.s32.totalorder %s20, 0
      %s1295 = scalar_select %p1294, %s20, 0
      %s1296 = sadd.s32 %s1295, %s1293
      %s1297 = smul.addr %s1296, 8
      %s1298 = scalar_lea.vmem %s3, %s1297
      // Predicated region
      $region41: #{generator_forward.25} parent=31 // pred_check
        %p1299 = pneg %p135
      $region42: #{generator_forward.25} parent=31 // pred_check_branch
        %1301 = sbr.rel (%p1299) target = $region44
      $region43: #{generator_forward.25} parent=31 // pred_region
        %s1302 = smul.u32 64, %s19
      $region44: #{generator_forward.25} parent=31 // pred_fallthru
        _
    $region32: #{generator_forward.25} parent=5 // pred_fallthru
      _
    %p1303 = scmp.le.s32.totalorder 2, %s9
    // Predicated region
    $region45: #{generator_forward.25} parent=5 // pred_check
      %p1304 = pneg %p1303
    $region46: #{generator_forward.25} parent=5 // pred_check_branch
      %1306 = sbr.rel (%p1304) target = $region48
    $region47: #{generator_forward.25} parent=5 // pred_region
      %s1307 = ssub.s32 %s9, 2
      // Predicated region
      $region49: #{generator_forward.25} parent=47 // pred_check
        %p1308 = pneg %p141
      $region50: #{generator_forward.25} parent=47 // pred_check_branch
        %1310 = sbr.rel (%p1308) target = $region52
      $region51: #{generator_forward.25} parent=47 // pred_region
        %s1311 = smul.u32 64, %s22
        %p1312 = scmp.lt.s32.totalorder %s1311, 127
        %s1313 = scalar_select %p1312, %s1311, 127
        %p1314 = scmp.lt.s32.totalorder %s23, 0
        %s1315 = scalar_select %p1314, %s23, 0
        %s1316 = sadd.s32 %s1315, %s1313
        %s1317 = smul.addr %s1316, 8
        %s1318 = scalar_lea.vmem %s3, %s1317
      $region52: #{generator_forward.25} parent=47 // pred_fallthru
        _
    $region48: #{generator_forward.25} parent=5 // pred_fallthru
      _
  $region6: #{generator_forward.25} parent=0 // loop_footer
    %s13 = sadd.s32 1, %s9
  $region7: #{generator_forward.25} parent=0 // loop_footer_branch
    %8 = sbr.rel target = $region3
  $region8: #{generator_forward.25} parent=0 // loop_exit
    _

</llo_original>
